<compile_context>
chip_gen: v6e
topology: v6e:2x2x1
jax: 0.10.0
libtpu: 0.0.40
codegen_flags: <defaults>
</compile_context>

<pallas_src>
import jax
import jax.numpy as jnp
from jax.experimental import pallas as pl
from jax.experimental.pallas import tpu as pltpu

LANE = 128  # all kernel outputs are padded to the 128-lane width


# ----------------------------------------------------------------------------
# Pallas kernels
# ----------------------------------------------------------------------------
def _conv_bn_relu_pool_kernel(x_ref, w_ref, s_ref, o_ref):
    """Fused Conv(as matmul) + folded BN/bias + ReLU + AvgPool2d(2,2).

    x_ref: (4, TM, K) bf16 im2col patches; leading axis = the 4 taps of each
           2x2 pool window, rows = pooled output positions (b, hp, wp).
    w_ref: (K, 128) bf16 conv weights with BN scale folded, Cout zero-padded.
    s_ref: (1, 128) f32  fused bias + BN shift (zero-padded).
    o_ref: (TM, 128)     pooled activations (padded channels are exactly 0).
    """
    w = w_ref[...]
    s = s_ref[...]
    acc = None
    for u in range(4):  # unrolled: 4 MXU matmuls per tile
        y = jnp.dot(x_ref[u], w, preferred_element_type=jnp.float32)
        y = jnp.maximum(y + s, 0.0)
        acc = y if acc is None else acc + y
    o_ref[...] = (acc * 0.25).astype(o_ref.dtype)


def conv_bn_relu_pool(patches, w, s, *, out_dtype=jnp.bfloat16):
    """patches: (4, M, K) bf16 -> (M, 128) pooled activations (lane-dense)."""
    _, M, K = patches.shape
    N = w.shape[1]
    tm = M if M <= 2048 else 512  # multiple of 8; VMEM-safe even on v7x (64 MiB)
    grid = (pl.cdiv(M, tm),)
    return pl.pallas_call(
        _conv_bn_relu_pool_kernel,
        out_shape=jax.ShapeDtypeStruct((M, N), out_dtype),
        grid=grid,
        in_specs=[
            pl.BlockSpec((4, tm, K), lambda i: (0, i, 0)),
            pl.BlockSpec((K, N), lambda i: (0, 0)),
            pl.BlockSpec((1, N), lambda i: (0, 0)),
        ],
        out_specs=pl.BlockSpec((tm, N), lambda i: (i, 0)),
        compiler_params=pltpu.CompilerParams(dimension_semantics=("parallel",)),
    )(patches, w, s)


def _fc_stack_kernel(x_ref, w1_ref, s1_ref, w2_ref, s2_ref, w3_ref, s3_ref, o_ref):
    """Whole FC head in one kernel: fc1+BN+ReLU -> fc2+BN+ReLU -> (Dropout=id) -> fc3."""
    h = jnp.dot(x_ref[...], w1_ref[...], preferred_element_type=jnp.float32)
    h = jnp.maximum(h + s1_ref[...], 0.0)
    h = jnp.dot(h.astype(jnp.bfloat16), w2_ref[...], preferred_element_type=jnp.float32)
    h = jnp.maximum(h + s2_ref[...], 0.0)
    # Dropout(0.5) is identity in eval mode.
    h = jnp.dot(h.astype(jnp.bfloat16), w3_ref[...], preferred_element_type=jnp.float32)
    o_ref[...] = (h + s3_ref[...]).astype(o_ref.dtype)


def fc_stack(x, w1, s1, w2, s2, w3, s3):
    """x: (B, 3200) bf16 -> (B, 128) f32 logits slab (cols >= 10 are zero)."""
    B, K = x.shape
    N = w3.shape[1]
    tb = B if B <= 512 else 512
    grid = (pl.cdiv(B, tb),)
    return pl.pallas_call(
        _fc_stack_kernel,
        out_shape=jax.ShapeDtypeStruct((B, N), jnp.float32),
        grid=grid,
        in_specs=[
            pl.BlockSpec((tb, K), lambda i: (i, 0)),
            pl.BlockSpec(w1.shape, lambda i: (0, 0)),
            pl.BlockSpec(s1.shape, lambda i: (0, 0)),
            pl.BlockSpec(w2.shape, lambda i: (0, 0)),
            pl.BlockSpec(s2.shape, lambda i: (0, 0)),
            pl.BlockSpec(w3.shape, lambda i: (0, 0)),
            pl.BlockSpec(s3.shape, lambda i: (0, 0)),
        ],
        out_specs=pl.BlockSpec((tb, N), lambda i: (i, 0)),
        compiler_params=pltpu.CompilerParams(dimension_semantics=("parallel",)),
    )(x, w1, s1, w2, s2, w3, s3)


# ----------------------------------------------------------------------------
# Plain-JAX glue (tiny shapes: patch gather / reorder only)
# ----------------------------------------------------------------------------
def im2col_pooled(x_nhwc, k):
    """Pool-ordered im2col for a valid kxk conv followed by AvgPool2d(2,2).

    Returns (4, B*Hp*Wp, k*k*C) patches; tap u = 2*pi + pj is the conv output
    at position (2*hp + pi, 2*wp + pj), i.e. the 4 members of each pool window.
    Column order is (di*k + dj)*C + c, matching conv_weight prep below.
    """
    B, H, W, C = x_nhwc.shape
    Ho, Wo = H - k + 1, W - k + 1
    Hp, Wp = Ho // 2, Wo // 2
    taps = []
    for pi in range(2):
        for pj in range(2):
            cols = []
            for di in range(k):
                for dj in range(k):
                    cols.append(
                        x_nhwc[:, pi + di:pi + di + 2 * Hp:2,
                               pj + dj:pj + dj + 2 * Wp:2, :])
            t = jnp.stack(cols, axis=3)                 # (B, Hp, Wp, k*k, C)
            taps.append(t.reshape(B * Hp * Wp, k * k * C))
    return jnp.stack(taps, axis=0), (B, Hp, Wp)


def bn_eval_scale_shift(gamma, beta, running_mean, running_var, eps=1e-5):
    scale = gamma / jnp.sqrt(running_var + eps)
    shift = beta - running_mean * scale
    return scale, shift


def _pad_cols(a, n):
    return jnp.pad(a, ((0, 0), (0, n - a.shape[1])))


def prepare_inference_params(p):
    """Fold BN + bias into weights, pad to 128 lanes, cast matmul inputs to bf16."""
    ip = {}
    # conv1: (6,1,5,5) -> (25, 6) in (di,dj,cin) row order, BN scale folded.
    w = jnp.transpose(p["conv1_w"], (2, 3, 1, 0)).reshape(25, 6) * p["bn1_scale"][None, :]
    s = p["conv1_b"] * p["bn1_scale"] + p["bn1_shift"]
    ip["c1_w"] = _pad_cols(w, LANE).astype(jnp.bfloat16)
    ip["c1_s"] = jnp.pad(s, (0, LANE - 6)).reshape(1, LANE).astype(jnp.float32)
    # conv2: (16,6,5,5) -> (150, 16)
    w = jnp.transpose(p["conv2_w"], (2, 3, 1, 0)).reshape(150, 16) * p["bn2_scale"][None, :]
    s = p["conv2_b"] * p["bn2_scale"] + p["bn2_shift"]
    ip["c2_w"] = _pad_cols(w, LANE).astype(jnp.bfloat16)
    ip["c2_s"] = jnp.pad(s, (0, LANE - 16)).reshape(1, LANE).astype(jnp.float32)
    # fc1: absorb the NCHW flatten permutation: PyTorch input index c*25+h*5+w
    # is remapped to our (h, w, c-padded-to-128) slab order -> rows (5*5*128).
    w = p["fc1_w"].reshape(120, 16, 5, 5)                 # (out, c, h, w)
    w = jnp.transpose(w, (2, 3, 1, 0))                    # (h, w, c, out)
    w = w * p["bn3_scale"][None, None, None, :]
    w = jnp.pad(w, ((0, 0), (0, 0), (0, LANE - 16), (0, LANE - 120)))
    ip["f1_w"] = w.reshape(5 * 5 * LANE, LANE).astype(jnp.bfloat16)
    s = p["fc1_b"] * p["bn3_scale"] + p["bn3_shift"]
    ip["f1_s"] = jnp.pad(s, (0, LANE - 120)).reshape(1, LANE).astype(jnp.float32)
    # fc2
    w = p["fc2_w"].T * p["bn4_scale"][None, :]            # (120, 84)
    ip["f2_w"] = jnp.pad(w, ((0, LANE - 120), (0, LANE - 84))).astype(jnp.bfloat16)
    s = p["fc2_b"] * p["bn4_scale"] + p["bn4_shift"]
    ip["f2_s"] = jnp.pad(s, (0, LANE - 84)).reshape(1, LANE).astype(jnp.float32)
    # fc3
    w = p["fc3_w"].T                                      # (84, 10)
    ip["f3_w"] = jnp.pad(w, ((0, LANE - 84), (0, LANE - 10))).astype(jnp.bfloat16)
    ip["f3_s"] = jnp.pad(p["fc3_b"], (0, LANE - 10)).reshape(1, LANE).astype(jnp.float32)
    return ip


def init_params(key):
    ks = jax.random.split(key, 24)
    rnd = lambda k, shape, sd: sd * jax.random.normal(k, shape, jnp.float32)
    p = {
        "conv1_w": rnd(ks[0], (6, 1, 5, 5), 0.20),
        "conv1_b": rnd(ks[1], (6,), 0.10),
        "conv2_w": rnd(ks[2], (16, 6, 5, 5), 0.08),
        "conv2_b": rnd(ks[3], (16,), 0.10),
        "fc1_w": rnd(ks[4], (120, 400), 0.05),
        "fc1_b": rnd(ks[5], (120,), 0.05),
        "fc2_w": rnd(ks[6], (84, 120), 0.09),
        "fc2_b": rnd(ks[7], (84,), 0.05),
        "fc3_w": rnd(ks[8], (10, 84), 0.10),
        "fc3_b": rnd(ks[9], (10,), 0.05),
    }
    # BatchNorm affine params (eval mode: fresh running stats mean=0, var=1).
    bn_sizes = {"bn1": 6, "bn2": 16, "bn3": 120, "bn4": 84}
    ki = 10
    for name, n in bn_sizes.items():
        gamma = 1.0 + rnd(ks[ki], (n,), 0.1)
        beta = rnd(ks[ki + 1], (n,), 0.1)
        ki += 2
        scale, shift = bn_eval_scale_shift(
            gamma, beta, jnp.zeros((n,), jnp.float32), jnp.ones((n,), jnp.float32))
        p[name + "_scale"] = scale
        p[name + "_shift"] = shift
    return p


# ----------------------------------------------------------------------------
# Forward pass (kernels + thin glue)
# ----------------------------------------------------------------------------
def lenet5_forward(x_nchw, ip):
    x = jnp.transpose(x_nchw, (0, 2, 3, 1)).astype(jnp.float32)      # (B,32,32,1) NHWC
    B = x.shape[0]

    # conv block 1: Conv(1->6,k5)+BN+ReLU+AvgPool fused in one kernel
    p1, (_, hp1, wp1) = im2col_pooled(x, 5)                          # (4, B*196, 25)
    y1 = conv_bn_relu_pool(p1.astype(jnp.bfloat16), ip["c1_w"], ip["c1_s"])  # (B*196, 128)
    y1 = y1.reshape(B, hp1, wp1, LANE)[..., :6]                      # (B,14,14,6)

    # conv block 2: Conv(6->16,k5)+BN+ReLU+AvgPool
    p2, (_, hp2, wp2) = im2col_pooled(y1, 5)                         # (4, B*25, 150) bf16
    y2 = conv_bn_relu_pool(p2.astype(jnp.bfloat16), ip["c2_w"], ip["c2_s"])  # (B*25, 128)

    # Flatten: contiguous reshape only; the NCHW permutation is folded into f1_w.
    feat = y2.reshape(B, hp2 * wp2 * LANE)                           # (B, 3200)

    # FC head (fc1+BN+ReLU -> fc2+BN+ReLU -> dropout(id) -> fc3) in one kernel.
    logits = fc_stack(feat.astype(jnp.bfloat16),
                      ip["f1_w"], ip["f1_s"], ip["f2_w"], ip["f2_s"],
                      ip["f3_w"], ip["f3_s"])                        # (B, 128) f32
    return logits[:, :10]


# ----------------------------------------------------------------------------
# Pure-JAX reference (independent implementation, for a sanity check)
# ----------------------------------------------------------------------------
def _avgpool_ref(y_nchw):
    return jax.lax.reduce_window(y_nchw, 0.0, jax.lax.add,
                                 (1, 1, 2, 2), (1, 1, 2, 2), "VALID") * 0.25


def lenet5_reference(x_nchw, p):
    dn = ("NCHW", "OIHW", "NCHW")
    y = jax.lax.conv_general_dilated(x_nchw.astype(jnp.float32), p["conv1_w"],
                                     (1, 1), "VALID", dimension_numbers=dn)
    y = (y + p["conv1_b"][None, :, None, None]) * p["bn1_scale"][None, :, None, None] \
        + p["bn1_shift"][None, :, None, None]
    y = _avgpool_ref(jnp.maximum(y, 0.0))
    y = jax.lax.conv_general_dilated(y, p["conv2_w"], (1, 1), "VALID", dimension_numbers=dn)
    y = (y + p["conv2_b"][None, :, None, None]) * p["bn2_scale"][None, :, None, None] \
        + p["bn2_shift"][None, :, None, None]
    y = _avgpool_ref(jnp.maximum(y, 0.0))
    y = y.reshape(y.shape[0], -1)                                    # NCHW flatten
    y = jnp.maximum((y @ p["fc1_w"].T + p["fc1_b"]) * p["bn3_scale"] + p["bn3_shift"], 0.0)
    y = jnp.maximum((y @ p["fc2_w"].T + p["fc2_b"]) * p["bn4_scale"] + p["bn4_shift"], 0.0)
    return y @ p["fc3_w"].T + p["fc3_b"]


if __name__ == "__main__":
    key = jax.random.PRNGKey(0)
    params = init_params(key)
    x = jax.random.normal(jax.random.fold_in(key, 123), (2, 1, 32, 32), jnp.float32)

    iparams = prepare_inference_params(params)   # host-side BN/bias fold + lane padding
    fwd = jax.jit(lenet5_forward)
    out = jax.block_until_ready(fwd(x, iparams))

    assert out.shape == (2, 10) and out.dtype == jnp.float32
    assert bool(jnp.all(jnp.isfinite(out)))

    ref = lenet5_reference(x, params)
    max_err = float(jnp.max(jnp.abs(out - ref)))
    assert max_err < 0.25, f"mismatch vs reference: {max_err}"

    print("KERNEL_OK")
</pallas_src>

<mosaic_0001>
module attributes {stable_mosaic.version = 11 : i64} {
  func.func @_conv_bn_relu_pool_kernel(%arg0: i32, %arg1: memref<4x392x25xbf16, #tpu.memory_space<vmem>>, %arg2: memref<25x128xbf16, #tpu.memory_space<vmem>>, %arg3: memref<1x128xf32, #tpu.memory_space<vmem>>, %arg4: memref<392x128xbf16, #tpu.memory_space<vmem>>) attributes {dimension_semantics = [#tpu.dimension_semantics<parallel>], iteration_bounds = array<i64: 1>, scalar_prefetch = 0 : i64, scratch_operands = 0 : i64, tpu.core_type = #tpu.core_type<tc>, window_params = [{transform_indices = @transform_0, window_bounds = array<i64: 4, 392, 25>}, {pipeline_mode = #tpu.pipeline_mode<synchronous>, transform_indices = @transform_1, window_bounds = array<i64: 25, 128>}, {pipeline_mode = #tpu.pipeline_mode<synchronous>, transform_indices = @transform_2, window_bounds = array<i64: 1, 128>}, {transform_indices = @transform_3, window_bounds = array<i64: 392, 128>}]} {
    %c0 = arith.constant 0 : index
    %c0_0 = arith.constant 0 : index
    %0 = vector.load %arg2[%c0, %c0_0] : memref<25x128xbf16, #tpu.memory_space<vmem>>, vector<25x128xbf16>
    %c0_1 = arith.constant 0 : index
    %c0_2 = arith.constant 0 : index
    %1 = vector.load %arg3[%c0_1, %c0_2] : memref<1x128xf32, #tpu.memory_space<vmem>>, vector<1x128xf32>
    %c0_3 = arith.constant 0 : index
    %c0_4 = arith.constant 0 : index
    %c0_5 = arith.constant 0 : index
    %2 = vector.load %arg1[%c0_3, %c0_4, %c0_5] : memref<4x392x25xbf16, #tpu.memory_space<vmem>>, vector<1x392x25xbf16>
    %3 = vector.shape_cast %2 : vector<1x392x25xbf16> to vector<392x25xbf16>
    %cst = arith.constant dense<0.000000e+00> : vector<392x128xf32>
    %4 = tpu.matmul %3, %0, %cst {dimension_numbers = #tpu.dot_dimension_numbers<[1], [0], [0], [1], [0, 0, 1, 1], [], []>} : vector<392x25xbf16>, vector<25x128xbf16>, vector<392x128xf32> -> vector<392x128xf32>
    %5 = vector.broadcast %1 : vector<1x128xf32> to vector<392x128xf32>
    %6 = arith.addf %4, %5 : vector<392x128xf32>
    %cst_6 = arith.constant 0.000000e+00 : f32
    %7 = vector.broadcast %cst_6 : f32 to vector<392x128xf32>
    %8 = arith.maximumf %6, %7 : vector<392x128xf32>
    %c1 = arith.constant 1 : index
    %c0_7 = arith.constant 0 : index
    %c0_8 = arith.constant 0 : index
    %9 = vector.load %arg1[%c1, %c0_7, %c0_8] : memref<4x392x25xbf16, #tpu.memory_space<vmem>>, vector<1x392x25xbf16>
    %10 = vector.shape_cast %9 : vector<1x392x25xbf16> to vector<392x25xbf16>
    %cst_9 = arith.constant dense<0.000000e+00> : vector<392x128xf32>
    %11 = tpu.matmul %10, %0, %cst_9 {dimension_numbers = #tpu.dot_dimension_numbers<[1], [0], [0], [1], [0, 0, 1, 1], [], []>} : vector<392x25xbf16>, vector<25x128xbf16>, vector<392x128xf32> -> vector<392x128xf32>
    %12 = vector.broadcast %1 : vector<1x128xf32> to vector<392x128xf32>
    %13 = arith.addf %11, %12 : vector<392x128xf32>
    %cst_10 = arith.constant 0.000000e+00 : f32
    %14 = vector.broadcast %cst_10 : f32 to vector<392x128xf32>
    %15 = arith.maximumf %13, %14 : vector<392x128xf32>
    %16 = arith.addf %8, %15 : vector<392x128xf32>
    %c2 = arith.constant 2 : index
    %c0_11 = arith.constant 0 : index
    %c0_12 = arith.constant 0 : index
    %17 = vector.load %arg1[%c2, %c0_11, %c0_12] : memref<4x392x25xbf16, #tpu.memory_space<vmem>>, vector<1x392x25xbf16>
    %18 = vector.shape_cast %17 : vector<1x392x25xbf16> to vector<392x25xbf16>
    %cst_13 = arith.constant dense<0.000000e+00> : vector<392x128xf32>
    %19 = tpu.matmul %18, %0, %cst_13 {dimension_numbers = #tpu.dot_dimension_numbers<[1], [0], [0], [1], [0, 0, 1, 1], [], []>} : vector<392x25xbf16>, vector<25x128xbf16>, vector<392x128xf32> -> vector<392x128xf32>
    %20 = vector.broadcast %1 : vector<1x128xf32> to vector<392x128xf32>
    %21 = arith.addf %19, %20 : vector<392x128xf32>
    %cst_14 = arith.constant 0.000000e+00 : f32
    %22 = vector.broadcast %cst_14 : f32 to vector<392x128xf32>
    %23 = arith.maximumf %21, %22 : vector<392x128xf32>
    %24 = arith.addf %16, %23 : vector<392x128xf32>
    %c3 = arith.constant 3 : index
    %c0_15 = arith.constant 0 : index
    %c0_16 = arith.constant 0 : index
    %25 = vector.load %arg1[%c3, %c0_15, %c0_16] : memref<4x392x25xbf16, #tpu.memory_space<vmem>>, vector<1x392x25xbf16>
    %26 = vector.shape_cast %25 : vector<1x392x25xbf16> to vector<392x25xbf16>
    %cst_17 = arith.constant dense<0.000000e+00> : vector<392x128xf32>
    %27 = tpu.matmul %26, %0, %cst_17 {dimension_numbers = #tpu.dot_dimension_numbers<[1], [0], [0], [1], [0, 0, 1, 1], [], []>} : vector<392x25xbf16>, vector<25x128xbf16>, vector<392x128xf32> -> vector<392x128xf32>
    %28 = vector.broadcast %1 : vector<1x128xf32> to vector<392x128xf32>
    %29 = arith.addf %27, %28 : vector<392x128xf32>
    %cst_18 = arith.constant 0.000000e+00 : f32
    %30 = vector.broadcast %cst_18 : f32 to vector<392x128xf32>
    %31 = arith.maximumf %29, %30 : vector<392x128xf32>
    %32 = arith.addf %24, %31 : vector<392x128xf32>
    %cst_19 = arith.constant 2.500000e-01 : f32
    %33 = vector.broadcast %cst_19 : f32 to vector<392x128xf32>
    %34 = arith.mulf %32, %33 : vector<392x128xf32>
    %35 = arith.truncf %34 : vector<392x128xf32> to vector<392x128xbf16>
    %c0_20 = arith.constant 0 : index
    %c0_21 = arith.constant 0 : index
    %36 = vector.load %arg4[%c0_20, %c0_21] : memref<392x128xbf16, #tpu.memory_space<vmem>>, vector<392x128xbf16>
    tpu.vector_store %arg4[%c0_20, %c0_21], %35 {strides = array<i32>} : memref<392x128xbf16, #tpu.memory_space<vmem>>, vector<392x128xbf16>,
    return
  }
  func.func @transform_0(%arg0: i32) -> (i32, i32, i32) {
    %c0_i32 = arith.constant 0 : i32
    %c0_i32_0 = arith.constant 0 : i32
    %c0_i32_1 = arith.constant 0 : i32
    return %c0_i32, %arg0, %c0_i32_0 : i32, i32, i32
  }
  func.func @transform_1(%arg0: i32) -> (i32, i32) {
    %c0_i32 = arith.constant 0 : i32
    %c0_i32_0 = arith.constant 0 : i32
    %c0_i32_1 = arith.constant 0 : i32
    return %c0_i32, %c0_i32_0 : i32, i32
  }
  func.func @transform_2(%arg0: i32) -> (i32, i32) {
    %c0_i32 = arith.constant 0 : i32
    %c0_i32_0 = arith.constant 0 : i32
    %c0_i32_1 = arith.constant 0 : i32
    return %c0_i32, %c0_i32_0 : i32, i32
  }
  func.func @transform_3(%arg0: i32) -> (i32, i32) {
    %c0_i32 = arith.constant 0 : i32
    %c0_i32_0 = arith.constant 0 : i32
    return %arg0, %c0_i32 : i32, i32
  }
}

module attributes {stable_mosaic.version = 11 : i64} {
  func.func @_conv_bn_relu_pool_kernel(%arg0: i32, %arg1: memref<4x50x150xbf16, #tpu.memory_space<vmem>>, %arg2: memref<150x128xbf16, #tpu.memory_space<vmem>>, %arg3: memref<1x128xf32, #tpu.memory_space<vmem>>, %arg4: memref<50x128xbf16, #tpu.memory_space<vmem>>) attributes {dimension_semantics = [#tpu.dimension_semantics<parallel>], iteration_bounds = array<i64: 1>, scalar_prefetch = 0 : i64, scratch_operands = 0 : i64, tpu.core_type = #tpu.core_type<tc>, window_params = [{transform_indices = @transform_0, window_bounds = array<i64: 4, 50, 150>}, {pipeline_mode = #tpu.pipeline_mode<synchronous>, transform_indices = @transform_1, window_bounds = array<i64: 150, 128>}, {pipeline_mode = #tpu.pipeline_mode<synchronous>, transform_indices = @transform_2, window_bounds = array<i64: 1, 128>}, {transform_indices = @transform_3, window_bounds = array<i64: 50, 128>}]} {
    %c0 = arith.constant 0 : index
    %c0_0 = arith.constant 0 : index
    %0 = vector.load %arg2[%c0, %c0_0] : memref<150x128xbf16, #tpu.memory_space<vmem>>, vector<150x128xbf16>
    %c0_1 = arith.constant 0 : index
    %c0_2 = arith.constant 0 : index
    %1 = vector.load %arg3[%c0_1, %c0_2] : memref<1x128xf32, #tpu.memory_space<vmem>>, vector<1x128xf32>
    %c0_3 = arith.constant 0 : index
    %c0_4 = arith.constant 0 : index
    %c0_5 = arith.constant 0 : index
    %2 = vector.load %arg1[%c0_3, %c0_4, %c0_5] : memref<4x50x150xbf16, #tpu.memory_space<vmem>>, vector<1x50x150xbf16>
    %3 = vector.shape_cast %2 : vector<1x50x150xbf16> to vector<50x150xbf16>
    %cst = arith.constant dense<0.000000e+00> : vector<50x128xf32>
    %4 = tpu.matmul %3, %0, %cst {dimension_numbers = #tpu.dot_dimension_numbers<[1], [0], [0], [1], [0, 0, 1, 1], [], []>} : vector<50x150xbf16>, vector<150x128xbf16>, vector<50x128xf32> -> vector<50x128xf32>
    %5 = vector.broadcast %1 : vector<1x128xf32> to vector<50x128xf32>
    %6 = arith.addf %4, %5 : vector<50x128xf32>
    %cst_6 = arith.constant 0.000000e+00 : f32
    %7 = vector.broadcast %cst_6 : f32 to vector<50x128xf32>
    %8 = arith.maximumf %6, %7 : vector<50x128xf32>
    %c1 = arith.constant 1 : index
    %c0_7 = arith.constant 0 : index
    %c0_8 = arith.constant 0 : index
    %9 = vector.load %arg1[%c1, %c0_7, %c0_8] : memref<4x50x150xbf16, #tpu.memory_space<vmem>>, vector<1x50x150xbf16>
    %10 = vector.shape_cast %9 : vector<1x50x150xbf16> to vector<50x150xbf16>
    %cst_9 = arith.constant dense<0.000000e+00> : vector<50x128xf32>
    %11 = tpu.matmul %10, %0, %cst_9 {dimension_numbers = #tpu.dot_dimension_numbers<[1], [0], [0], [1], [0, 0, 1, 1], [], []>} : vector<50x150xbf16>, vector<150x128xbf16>, vector<50x128xf32> -> vector<50x128xf32>
    %12 = vector.broadcast %1 : vector<1x128xf32> to vector<50x128xf32>
    %13 = arith.addf %11, %12 : vector<50x128xf32>
    %cst_10 = arith.constant 0.000000e+00 : f32
    %14 = vector.broadcast %cst_10 : f32 to vector<50x128xf32>
    %15 = arith.maximumf %13, %14 : vector<50x128xf32>
    %16 = arith.addf %8, %15 : vector<50x128xf32>
    %c2 = arith.constant 2 : index
    %c0_11 = arith.constant 0 : index
    %c0_12 = arith.constant 0 : index
    %17 = vector.load %arg1[%c2, %c0_11, %c0_12] : memref<4x50x150xbf16, #tpu.memory_space<vmem>>, vector<1x50x150xbf16>
    %18 = vector.shape_cast %17 : vector<1x50x150xbf16> to vector<50x150xbf16>
    %cst_13 = arith.constant dense<0.000000e+00> : vector<50x128xf32>
    %19 = tpu.matmul %18, %0, %cst_13 {dimension_numbers = #tpu.dot_dimension_numbers<[1], [0], [0], [1], [0, 0, 1, 1], [], []>} : vector<50x150xbf16>, vector<150x128xbf16>, vector<50x128xf32> -> vector<50x128xf32>
    %20 = vector.broadcast %1 : vector<1x128xf32> to vector<50x128xf32>
    %21 = arith.addf %19, %20 : vector<50x128xf32>
    %cst_14 = arith.constant 0.000000e+00 : f32
    %22 = vector.broadcast %cst_14 : f32 to vector<50x128xf32>
    %23 = arith.maximumf %21, %22 : vector<50x128xf32>
    %24 = arith.addf %16, %23 : vector<50x128xf32>
    %c3 = arith.constant 3 : index
    %c0_15 = arith.constant 0 : index
    %c0_16 = arith.constant 0 : index
    %25 = vector.load %arg1[%c3, %c0_15, %c0_16] : memref<4x50x150xbf16, #tpu.memory_space<vmem>>, vector<1x50x150xbf16>
    %26 = vector.shape_cast %25 : vector<1x50x150xbf16> to vector<50x150xbf16>
    %cst_17 = arith.constant dense<0.000000e+00> : vector<50x128xf32>
    %27 = tpu.matmul %26, %0, %cst_17 {dimension_numbers = #tpu.dot_dimension_numbers<[1], [0], [0], [1], [0, 0, 1, 1], [], []>} : vector<50x150xbf16>, vector<150x128xbf16>, vector<50x128xf32> -> vector<50x128xf32>
    %28 = vector.broadcast %1 : vector<1x128xf32> to vector<50x128xf32>
    %29 = arith.addf %27, %28 : vector<50x128xf32>
    %cst_18 = arith.constant 0.000000e+00 : f32
    %30 = vector.broadcast %cst_18 : f32 to vector<50x128xf32>
    %31 = arith.maximumf %29, %30 : vector<50x128xf32>
    %32 = arith.addf %24, %31 : vector<50x128xf32>
    %cst_19 = arith.constant 2.500000e-01 : f32
    %33 = vector.broadcast %cst_19 : f32 to vector<50x128xf32>
    %34 = arith.mulf %32, %33 : vector<50x128xf32>
    %35 = arith.truncf %34 : vector<50x128xf32> to vector<50x128xbf16>
    %c0_20 = arith.constant 0 : index
    %c0_21 = arith.constant 0 : index
    %36 = vector.load %arg4[%c0_20, %c0_21] : memref<50x128xbf16, #tpu.memory_space<vmem>>, vector<50x128xbf16>
    tpu.vector_store %arg4[%c0_20, %c0_21], %35 {strides = array<i32>} : memref<50x128xbf16, #tpu.memory_space<vmem>>, vector<50x128xbf16>,
    return
  }
  func.func @transform_0(%arg0: i32) -> (i32, i32, i32) {
    %c0_i32 = arith.constant 0 : i32
    %c0_i32_0 = arith.constant 0 : i32
    %c0_i32_1 = arith.constant 0 : i32
    return %c0_i32, %arg0, %c0_i32_0 : i32, i32, i32
  }
  func.func @transform_1(%arg0: i32) -> (i32, i32) {
    %c0_i32 = arith.constant 0 : i32
    %c0_i32_0 = arith.constant 0 : i32
    %c0_i32_1 = arith.constant 0 : i32
    return %c0_i32, %c0_i32_0 : i32, i32
  }
  func.func @transform_2(%arg0: i32) -> (i32, i32) {
    %c0_i32 = arith.constant 0 : i32
    %c0_i32_0 = arith.constant 0 : i32
    %c0_i32_1 = arith.constant 0 : i32
    return %c0_i32, %c0_i32_0 : i32, i32
  }
  func.func @transform_3(%arg0: i32) -> (i32, i32) {
    %c0_i32 = arith.constant 0 : i32
    %c0_i32_0 = arith.constant 0 : i32
    return %arg0, %c0_i32 : i32, i32
  }
}

module attributes {stable_mosaic.version = 11 : i64} {
  func.func @_fc_stack_kernel(%arg0: i32, %arg1: memref<2x3200xbf16, #tpu.memory_space<vmem>>, %arg2: memref<3200x128xbf16, #tpu.memory_space<vmem>>, %arg3: memref<1x128xf32, #tpu.memory_space<vmem>>, %arg4: memref<128x128xbf16, #tpu.memory_space<vmem>>, %arg5: memref<1x128xf32, #tpu.memory_space<vmem>>, %arg6: memref<128x128xbf16, #tpu.memory_space<vmem>>, %arg7: memref<1x128xf32, #tpu.memory_space<vmem>>, %arg8: memref<2x128xf32, #tpu.memory_space<vmem>>) attributes {dimension_semantics = [#tpu.dimension_semantics<parallel>], iteration_bounds = array<i64: 1>, scalar_prefetch = 0 : i64, scratch_operands = 0 : i64, tpu.core_type = #tpu.core_type<tc>, window_params = [{transform_indices = @transform_0, window_bounds = array<i64: 2, 3200>}, {pipeline_mode = #tpu.pipeline_mode<synchronous>, transform_indices = @transform_1, window_bounds = array<i64: 3200, 128>}, {pipeline_mode = #tpu.pipeline_mode<synchronous>, transform_indices = @transform_2, window_bounds = array<i64: 1, 128>}, {pipeline_mode = #tpu.pipeline_mode<synchronous>, transform_indices = @transform_3, window_bounds = array<i64: 128, 128>}, {pipeline_mode = #tpu.pipeline_mode<synchronous>, transform_indices = @transform_4, window_bounds = array<i64: 1, 128>}, {pipeline_mode = #tpu.pipeline_mode<synchronous>, transform_indices = @transform_5, window_bounds = array<i64: 128, 128>}, {pipeline_mode = #tpu.pipeline_mode<synchronous>, transform_indices = @transform_6, window_bounds = array<i64: 1, 128>}, {transform_indices = @transform_7, window_bounds = array<i64: 2, 128>}]} {
    %c0 = arith.constant 0 : index
    %c0_0 = arith.constant 0 : index
    %0 = vector.load %arg1[%c0, %c0_0] : memref<2x3200xbf16, #tpu.memory_space<vmem>>, vector<2x3200xbf16>
    %c0_1 = arith.constant 0 : index
    %c0_2 = arith.constant 0 : index
    %1 = vector.load %arg2[%c0_1, %c0_2] : memref<3200x128xbf16, #tpu.memory_space<vmem>>, vector<3200x128xbf16>
    %cst = arith.constant dense<0.000000e+00> : vector<2x128xf32>
    %2 = tpu.matmul %0, %1, %cst {dimension_numbers = #tpu.dot_dimension_numbers<[1], [0], [0], [1], [0, 0, 1, 1], [], []>} : vector<2x3200xbf16>, vector<3200x128xbf16>, vector<2x128xf32> -> vector<2x128xf32>
    %c0_3 = arith.constant 0 : index
    %c0_4 = arith.constant 0 : index
    %3 = vector.load %arg3[%c0_3, %c0_4] : memref<1x128xf32, #tpu.memory_space<vmem>>, vector<1x128xf32>
    %4 = vector.broadcast %3 : vector<1x128xf32> to vector<2x128xf32>
    %5 = arith.addf %2, %4 : vector<2x128xf32>
    %cst_5 = arith.constant 0.000000e+00 : f32
    %6 = vector.broadcast %cst_5 : f32 to vector<2x128xf32>
    %7 = arith.maximumf %5, %6 : vector<2x128xf32>
    %8 = arith.truncf %7 : vector<2x128xf32> to vector<2x128xbf16>
    %c0_6 = arith.constant 0 : index
    %c0_7 = arith.constant 0 : index
    %9 = vector.load %arg4[%c0_6, %c0_7] : memref<128x128xbf16, #tpu.memory_space<vmem>>, vector<128x128xbf16>
    %cst_8 = arith.constant dense<0.000000e+00> : vector<2x128xf32>
    %10 = tpu.matmul %8, %9, %cst_8 {dimension_numbers = #tpu.dot_dimension_numbers<[1], [0], [0], [1], [0, 0, 1, 1], [], []>} : vector<2x128xbf16>, vector<128x128xbf16>, vector<2x128xf32> -> vector<2x128xf32>
    %c0_9 = arith.constant 0 : index
    %c0_10 = arith.constant 0 : index
    %11 = vector.load %arg5[%c0_9, %c0_10] : memref<1x128xf32, #tpu.memory_space<vmem>>, vector<1x128xf32>
    %12 = vector.broadcast %11 : vector<1x128xf32> to vector<2x128xf32>
    %13 = arith.addf %10, %12 : vector<2x128xf32>
    %cst_11 = arith.constant 0.000000e+00 : f32
    %14 = vector.broadcast %cst_11 : f32 to vector<2x128xf32>
    %15 = arith.maximumf %13, %14 : vector<2x128xf32>
    %16 = arith.truncf %15 : vector<2x128xf32> to vector<2x128xbf16>
    %c0_12 = arith.constant 0 : index
    %c0_13 = arith.constant 0 : index
    %17 = vector.load %arg6[%c0_12, %c0_13] : memref<128x128xbf16, #tpu.memory_space<vmem>>, vector<128x128xbf16>
    %cst_14 = arith.constant dense<0.000000e+00> : vector<2x128xf32>
    %18 = tpu.matmul %16, %17, %cst_14 {dimension_numbers = #tpu.dot_dimension_numbers<[1], [0], [0], [1], [0, 0, 1, 1], [], []>} : vector<2x128xbf16>, vector<128x128xbf16>, vector<2x128xf32> -> vector<2x128xf32>
    %c0_15 = arith.constant 0 : index
    %c0_16 = arith.constant 0 : index
    %19 = vector.load %arg7[%c0_15, %c0_16] : memref<1x128xf32, #tpu.memory_space<vmem>>, vector<1x128xf32>
    %20 = vector.broadcast %19 : vector<1x128xf32> to vector<2x128xf32>
    %21 = arith.addf %18, %20 : vector<2x128xf32>
    %c0_17 = arith.constant 0 : index
    %c0_18 = arith.constant 0 : index
    %22 = vector.load %arg8[%c0_17, %c0_18] : memref<2x128xf32, #tpu.memory_space<vmem>>, vector<2x128xf32>
    tpu.vector_store %arg8[%c0_17, %c0_18], %21 {strides = array<i32>} : memref<2x128xf32, #tpu.memory_space<vmem>>, vector<2x128xf32>,
    return
  }
  func.func @transform_0(%arg0: i32) -> (i32, i32) {
    %c0_i32 = arith.constant 0 : i32
    %c0_i32_0 = arith.constant 0 : i32
    return %arg0, %c0_i32 : i32, i32
  }
  func.func @transform_1(%arg0: i32) -> (i32, i32) {
    %c0_i32 = arith.constant 0 : i32
    %c0_i32_0 = arith.constant 0 : i32
    %c0_i32_1 = arith.constant 0 : i32
    return %c0_i32, %c0_i32_0 : i32, i32
  }
  func.func @transform_2(%arg0: i32) -> (i32, i32) {
    %c0_i32 = arith.constant 0 : i32
    %c0_i32_0 = arith.constant 0 : i32
    %c0_i32_1 = arith.constant 0 : i32
    return %c0_i32, %c0_i32_0 : i32, i32
  }
  func.func @transform_3(%arg0: i32) -> (i32, i32) {
    %c0_i32 = arith.constant 0 : i32
    %c0_i32_0 = arith.constant 0 : i32
    %c0_i32_1 = arith.constant 0 : i32
    return %c0_i32, %c0_i32_0 : i32, i32
  }
  func.func @transform_4(%arg0: i32) -> (i32, i32) {
    %c0_i32 = arith.constant 0 : i32
    %c0_i32_0 = arith.constant 0 : i32
    %c0_i32_1 = arith.constant 0 : i32
    return %c0_i32, %c0_i32_0 : i32, i32
  }
  func.func @transform_5(%arg0: i32) -> (i32, i32) {
    %c0_i32 = arith.constant 0 : i32
    %c0_i32_0 = arith.constant 0 : i32
    %c0_i32_1 = arith.constant 0 : i32
    return %c0_i32, %c0_i32_0 : i32, i32
  }
  func.func @transform_6(%arg0: i32) -> (i32, i32) {
    %c0_i32 = arith.constant 0 : i32
    %c0_i32_0 = arith.constant 0 : i32
    %c0_i32_1 = arith.constant 0 : i32
    return %c0_i32, %c0_i32_0 : i32, i32
  }
  func.func @transform_7(%arg0: i32) -> (i32, i32) {
    %c0_i32 = arith.constant 0 : i32
    %c0_i32_0 = arith.constant 0 : i32
    return %arg0, %c0_i32 : i32, i32
  }
}

</mosaic_0001>

<llo_original>
// kernel: lenet5_forward.3
$region0: #{lenet5_forward.3}
  #allocation0 [shape = 'u32[]', space=smem, size = 0x4, offset = 0x4, fixed_abs, tag = 'smem constant byte address 0x4 - core index']
  #allocation1 [shape = 'u32[144,128]{1,0:T(1,128)}', space=vmem, size = 0x12000, scoped, tag = 'internal scratch']
  %s0 = inlined_call_operand.vmem [shape: bf16[4,392,25], index: 0, kind: input, shape index: {}]
  %s1 = inlined_call_operand.vmem [shape: bf16[25,128], index: 1, kind: input, shape index: {}]
  %s2 = inlined_call_operand.vmem [shape: f32[1,128], index: 2, kind: input, shape index: {}]
  %s3 = inlined_call_operand.vmem [shape: bf16[392,128], index: 3, kind: output, shape index: {}]
  %s4 = sld [smem:[#allocation0]]
  $region22: #{lenet5_forward.3} parent=0
    _
  %s6 = ssub.s32 1, %s4
  %s7 = scalar_select 0, %s6, %s4
  // Predicated region
  $region2: #{lenet5_forward.3} parent=0 // pred_check
    _
  $region3: #{lenet5_forward.3} parent=0 // pred_check_branch
    %9 = sbr.rel (0) target = $region5
  $region4: #{lenet5_forward.3} parent=0 // pred_region
    _
  $region5: #{lenet5_forward.3} parent=0 // pred_fallthru
    _
  // Predicated region
  $region6: #{lenet5_forward.3} parent=0 // pred_check
    _
  $region7: #{lenet5_forward.3} parent=0 // pred_check_branch
    %11 = sbr.rel (0) target = $region9
  $region8: #{lenet5_forward.3} parent=0 // pred_region
    _
  $region9: #{lenet5_forward.3} parent=0 // pred_fallthru
    _
  // Predicated region
  $region10: #{lenet5_forward.3} parent=0 // pred_check
    _
  $region11: #{lenet5_forward.3} parent=0 // pred_check_branch
    %13 = sbr.rel (0) target = $region13
  $region12: #{lenet5_forward.3} parent=0 // pred_region
    _
  $region13: #{lenet5_forward.3} parent=0 // pred_fallthru
    _
  %v15 = vld [vmem:[%s1] sm:$0xf]
  %v16 = vld [vmem:[%s1 + $0x4] sm:$0xf]
  %v17 = vld [vmem:[%s1 + $0x8] sm:$0xf]
  %v18 = vld [vmem:[%s1 + $0xc] sm:$0x1]
  %v19 = vld [vmem:[%s2] sm:$0x1]
  %v20 = vld [vmem:[%s0] sm:$0xf]
  %v21 = vld [vmem:[%s0 + $0x4] sm:$0xf]
  %v22 = vld [vmem:[%s0 + $0x8] sm:$0xf]
  %v23 = vld [vmem:[%s0 + $0xc] sm:$0xf]
  %v24 = vld [vmem:[%s0 + $0x10] sm:$0xf]
  %v25 = vld [vmem:[%s0 + $0x14] sm:$0xf]
  %v26 = vld [vmem:[%s0 + $0x18] sm:$0xf]
  %v27 = vld [vmem:[%s0 + $0x1c] sm:$0xf]
  %v28 = vld [vmem:[%s0 + $0x20] sm:$0xf]
  %v29 = vld [vmem:[%s0 + $0x24] sm:$0xf]
  %v30 = vld [vmem:[%s0 + $0x28] sm:$0xf]
  %v31 = vld [vmem:[%s0 + $0x2c] sm:$0xf]
  %v32 = vld [vmem:[%s0 + $0x30] sm:$0xf]
  %v33 = vld [vmem:[%s0 + $0x34] sm:$0xf]
  %v34 = vld [vmem:[%s0 + $0x38] sm:$0xf]
  %v35 = vld [vmem:[%s0 + $0x3c] sm:$0xf]
  %v36 = vld [vmem:[%s0 + $0x40] sm:$0xf]
  %v37 = vld [vmem:[%s0 + $0x44] sm:$0xf]
  %v38 = vld [vmem:[%s0 + $0x48] sm:$0xf]
  %v39 = vld [vmem:[%s0 + $0x4c] sm:$0xf]
  %v40 = vld [vmem:[%s0 + $0x50] sm:$0xf]
  %v41 = vld [vmem:[%s0 + $0x54] sm:$0xf]
  %v42 = vld [vmem:[%s0 + $0x58] sm:$0xf]
  %v43 = vld [vmem:[%s0 + $0x5c] sm:$0xf]
  %v44 = vld [vmem:[%s0 + $0x60] sm:$0xf]
  %v45 = vld [vmem:[%s0 + $0x64] sm:$0xf]
  %v46 = vld [vmem:[%s0 + $0x68] sm:$0xf]
  %v47 = vld [vmem:[%s0 + $0x6c] sm:$0xf]
  %v48 = vld [vmem:[%s0 + $0x70] sm:$0xf]
  %v49 = vld [vmem:[%s0 + $0x74] sm:$0xf]
  %v50 = vld [vmem:[%s0 + $0x78] sm:$0xf]
  %v51 = vld [vmem:[%s0 + $0x7c] sm:$0xf]
  %v52 = vld [vmem:[%s0 + $0x80] sm:$0xf]
  %v53 = vld [vmem:[%s0 + $0x84] sm:$0xf]
  %v54 = vld [vmem:[%s0 + $0x88] sm:$0xf]
  %v55 = vld [vmem:[%s0 + $0x8c] sm:$0xf]
  %v56 = vld [vmem:[%s0 + $0x90] sm:$0xf]
  %v57 = vld [vmem:[%s0 + $0x94] sm:$0xf]
  %v58 = vld [vmem:[%s0 + $0x98] sm:$0xf]
  %v59 = vld [vmem:[%s0 + $0x9c] sm:$0xf]
  %v60 = vld [vmem:[%s0 + $0xa0] sm:$0xf]
  %v61 = vld [vmem:[%s0 + $0xa4] sm:$0xf]
  %v62 = vld [vmem:[%s0 + $0xa8] sm:$0xf]
  %v63 = vld [vmem:[%s0 + $0xac] sm:$0xf]
  %v64 = vld [vmem:[%s0 + $0xb0] sm:$0xf]
  %v65 = vld [vmem:[%s0 + $0xb4] sm:$0xf]
  %v66 = vld [vmem:[%s0 + $0xb8] sm:$0xf]
  %v67 = vld [vmem:[%s0 + $0xbc] sm:$0xf]
  %v68 = vld [vmem:[%s0 + $0xc0] sm:$0xf]
  %v70 = vlaneseq
  %v71 = vshrl.u32 %v70, 7
  %v72 = vsub.s32 0, %v71
  %v73 = vrot.slane %v19, %v72
  %v124 = vunpack.c.l.b16 %v20
  %v125 = vunpack.c.l.b16 %v21
  %v126 = vunpack.c.l.b16 %v22
  %v127 = vunpack.c.l.b16 %v23
  %v128 = vunpack.c.l.b16 %v24
  %v129 = vunpack.c.l.b16 %v25
  %v130 = vunpack.c.l.b16 %v26
  %v131 = vunpack.c.l.b16 %v27
  %v132 = vunpack.c.l.b16 %v28
  %v133 = vunpack.c.l.b16 %v29
  %v134 = vunpack.c.l.b16 %v30
  %v135 = vunpack.c.l.b16 %v31
  %v136 = vunpack.c.l.b16 %v32
  %v137 = vunpack.c.l.b16 %v33
  %v138 = vunpack.c.l.b16 %v34
  %v139 = vunpack.c.l.b16 %v35
  %v140 = vunpack.c.l.b16 %v36
  %v141 = vunpack.c.l.b16 %v37
  %v142 = vunpack.c.l.b16 %v38
  %v143 = vunpack.c.l.b16 %v39
  %v144 = vunpack.c.l.b16 %v40
  %v145 = vunpack.c.l.b16 %v41
  %v146 = vunpack.c.l.b16 %v42
  %v147 = vunpack.c.l.b16 %v43
  %v148 = vunpack.c.l.b16 %v44
  %v149 = vunpack.c.l.b16 %v45
  %v150 = vunpack.c.l.b16 %v46
  %v151 = vunpack.c.l.b16 %v47
  %v152 = vunpack.c.l.b16 %v48
  %v153 = vunpack.c.l.b16 %v49
  %v154 = vunpack.c.l.b16 %v50
  %v155 = vunpack.c.l.b16 %v51
  %v156 = vunpack.c.l.b16 %v52
  %v157 = vunpack.c.l.b16 %v53
  %v158 = vunpack.c.l.b16 %v54
  %v159 = vunpack.c.l.b16 %v55
  %v160 = vunpack.c.l.b16 %v56
  %v161 = vunpack.c.l.b16 %v57
  %v162 = vunpack.c.l.b16 %v58
  %v163 = vunpack.c.l.b16 %v59
  %v164 = vunpack.c.l.b16 %v60
  %v165 = vunpack.c.l.b16 %v61
  %v166 = vunpack.c.l.b16 %v62
  %v167 = vunpack.c.l.b16 %v63
  %v168 = vunpack.c.l.b16 %v64
  %v169 = vunpack.c.l.b16 %v65
  %v170 = vunpack.c.l.b16 %v66
  %v171 = vunpack.c.l.b16 %v67
  %v172 = vunpack.c.l.b16 %v68
  %v173 = vpack.c.b16 %v125, %v124
  %v174 = vpack.c.b16 %v127, %v126
  %v175 = vpack.c.b16 %v129, %v128
  %v176 = vpack.c.b16 %v131, %v130
  %v177 = vpack.c.b16 %v133, %v132
  %v178 = vpack.c.b16 %v135, %v134
  %v179 = vpack.c.b16 %v137, %v136
  %v180 = vpack.c.b16 %v139, %v138
  %v181 = vpack.c.b16 %v141, %v140
  %v182 = vpack.c.b16 %v143, %v142
  %v183 = vpack.c.b16 %v145, %v144
  %v184 = vpack.c.b16 %v147, %v146
  %v185 = vpack.c.b16 %v149, %v148
  %v186 = vpack.c.b16 %v151, %v150
  %v187 = vpack.c.b16 %v153, %v152
  %v188 = vpack.c.b16 %v155, %v154
  %v189 = vpack.c.b16 %v157, %v156
  %v190 = vpack.c.b16 %v159, %v158
  %v191 = vpack.c.b16 %v161, %v160
  %v192 = vpack.c.b16 %v163, %v162
  %v193 = vpack.c.b16 %v165, %v164
  %v194 = vpack.c.b16 %v167, %v166
  %v195 = vpack.c.b16 %v169, %v168
  %v196 = vpack.c.b16 %v171, %v170
  %v197 = vpack.c.b16 %v172, %v172
  %v202 = vunpack.c.l.b16 %v15
  %v203 = vunpack.c.l.b16 %v16
  %v204 = vunpack.c.l.b16 %v17
  %v205 = vunpack.c.l.b16 %v18
  %v206 = vpack.c.b16 %v203, %v202
  %v207 = vpack.c.b16 %v205, %v204
  %vm209 = vcmask 203776
  %v211 = vsel %vm209, %v173, 0
  %v214 = vsel %vm209, %v174, 0
  %v217 = vsel %vm209, %v175, 0
  %v220 = vsel %vm209, %v176, 0
  %v223 = vsel %vm209, %v177, 0
  %v226 = vsel %vm209, %v178, 0
  %v229 = vsel %vm209, %v179, 0
  %v232 = vsel %vm209, %v180, 0
  %v235 = vsel %vm209, %v181, 0
  %v238 = vsel %vm209, %v182, 0
  %v241 = vsel %vm209, %v183, 0
  %v244 = vsel %vm209, %v184, 0
  %v247 = vsel %vm209, %v185, 0
  %v250 = vsel %vm209, %v186, 0
  %v253 = vsel %vm209, %v187, 0
  %v256 = vsel %vm209, %v188, 0
  %v259 = vsel %vm209, %v189, 0
  %v262 = vsel %vm209, %v190, 0
  %v265 = vsel %vm209, %v191, 0
  %v268 = vsel %vm209, %v192, 0
  %v271 = vsel %vm209, %v193, 0
  %v274 = vsel %vm209, %v194, 0
  %v277 = vsel %vm209, %v195, 0
  %v280 = vsel %vm209, %v196, 0
  %v283 = vsel %vm209, %v197, 0
  %vm285 = vcmask 1043456
  %vm286 = vcmask 1044480
  %v287 = vsel %vm285, 4294967295, 65535
  %v288 = vsel %vm286, %v287, 0
  %v290 = vand.u32 %v207, %v288
  %292 = vmatprep.subr.bf16.mxu0 0
  %293 = vmatpush1.bf16.msra.mxu0 0
  %294 = vmatprep.subr.bf16.mxu0 0
  %295 = vmatpush1.bf16.msra.mxu0 0
  %296 = vmatprep.subr.bf16.mxu0 0
  %297 = vmatpush1.bf16.msra.mxu0 0
  %298 = vmatprep.subr.bf16.mxu0 0
  %299 = vmatpush1.bf16.msra.mxu0 0
  %300 = vmatprep.subr.bf16.mxu0 0
  %301 = vmatpush1.bf16.msra.mxu0 0
  %302 = vmatprep.subr.bf16.mxu0 0
  %303 = vmatpush1.bf16.msra.mxu0 0
  %304 = vmatprep.subr.bf16.mxu0 0
  %305 = vmatpush1.bf16.msra.mxu0 %v290
  %306 = vmatprep.subr.bf16.mxu0 0
  %307 = vmatpush1.bf16.msra.mxu0 %v206
  %308 = vmatprep.subr.bf16.mxu0 0
  %309 = vmatpush2.bf16.msra.mxu0 0
  %310 = vmatprep.subr.bf16.mxu0 0
  %311 = vmatpush2.bf16.msra.mxu0 0
  %312 = vmatprep.subr.bf16.mxu0 0
  %313 = vmatpush2.bf16.msra.mxu0 0
  %314 = vmatprep.subr.bf16.mxu0 0
  %315 = vmatpush2.bf16.msra.mxu0 0
  %316 = vmatprep.subr.bf16.mxu0 0
  %317 = vmatpush2.bf16.msra.mxu0 0
  %318 = vmatprep.subr.bf16.mxu0 0
  %319 = vmatpush2.bf16.msra.mxu0 0
  %320 = vmatprep.subr.bf16.mxu0 0
  %321 = vmatpush2.bf16.msra.mxu0 0
  %322 = vmatprep.subr.bf16.mxu0 0
  %323 = vmatpush2.bf16.msra.mxu0 0
  %324 = vmatprep.mubr.bf16.mxu0 0
  %325 = vmatmul.mubr.bf16.gmra.mxu0 %v211
  %v326 = vpop.f32.mrf.mxu0
  %v327 = vadd.f32 %v73, %v326
  %v328 = vpop.f32.mrf.mxu0
  %v329 = vpop.f32.mrf.mxu0
  %v330 = vadd.f32 %v73, %v329
  %v331 = vpop.f32.mrf.mxu0
  %332 = vmatprep.mubr.bf16.mxu0 0
  %333 = vmatmul.mubr.bf16.gmra.mxu0 %v214
  %v334 = vpop.f32.mrf.mxu0
  %v335 = vadd.f32 %v73, %v334
  %v336 = vpop.f32.mrf.mxu0
  %v337 = vpop.f32.mrf.mxu0
  %v338 = vadd.f32 %v73, %v337
  %v339 = vpop.f32.mrf.mxu0
  %340 = vmatprep.mubr.bf16.mxu0 0
  %341 = vmatmul.mubr.bf16.gmra.mxu0 %v217
  %v342 = vpop.f32.mrf.mxu0
  %v343 = vadd.f32 %v73, %v342
  %v344 = vpop.f32.mrf.mxu0
  %v345 = vpop.f32.mrf.mxu0
  %v346 = vadd.f32 %v73, %v345
  %v347 = vpop.f32.mrf.mxu0
  %348 = vmatprep.mubr.bf16.mxu0 0
  %349 = vmatmul.mubr.bf16.gmra.mxu0 %v220
  %v350 = vpop.f32.mrf.mxu0
  %v351 = vadd.f32 %v73, %v350
  %v352 = vpop.f32.mrf.mxu0
  %v353 = vpop.f32.mrf.mxu0
  %v354 = vadd.f32 %v73, %v353
  %v355 = vpop.f32.mrf.mxu0
  %356 = vmatprep.mubr.bf16.mxu0 0
  %357 = vmatmul.mubr.bf16.gmra.mxu0 %v223
  %v358 = vpop.f32.mrf.mxu0
  %v359 = vadd.f32 %v73, %v358
  %v360 = vpop.f32.mrf.mxu0
  %v361 = vpop.f32.mrf.mxu0
  %v362 = vadd.f32 %v73, %v361
  %v363 = vpop.f32.mrf.mxu0
  %364 = vmatprep.mubr.bf16.mxu0 0
  %365 = vmatmul.mubr.bf16.gmra.mxu0 %v226
  %v366 = vpop.f32.mrf.mxu0
  %v367 = vadd.f32 %v73, %v366
  %v368 = vpop.f32.mrf.mxu0
  %v369 = vpop.f32.mrf.mxu0
  %v370 = vadd.f32 %v73, %v369
  %v371 = vpop.f32.mrf.mxu0
  %372 = vmatprep.mubr.bf16.mxu0 0
  %373 = vmatmul.mubr.bf16.gmra.mxu0 %v229
  %v374 = vpop.f32.mrf.mxu0
  %v375 = vadd.f32 %v73, %v374
  %v376 = vpop.f32.mrf.mxu0
  %v377 = vpop.f32.mrf.mxu0
  %v378 = vadd.f32 %v73, %v377
  %v379 = vpop.f32.mrf.mxu0
  %380 = vmatprep.mubr.bf16.mxu0 0
  %381 = vmatmul.mubr.bf16.gmra.mxu0 %v232
  %v382 = vpop.f32.mrf.mxu0
  %v383 = vadd.f32 %v73, %v382
  %v384 = vpop.f32.mrf.mxu0
  %v385 = vpop.f32.mrf.mxu0
  %v386 = vadd.f32 %v73, %v385
  %v387 = vpop.f32.mrf.mxu0
  %388 = vmatprep.mubr.bf16.mxu0 0
  %389 = vmatmul.mubr.bf16.gmra.mxu0 %v235
  %v390 = vpop.f32.mrf.mxu0
  %v391 = vadd.f32 %v73, %v390
  %v392 = vpop.f32.mrf.mxu0
  %v393 = vpop.f32.mrf.mxu0
  %v394 = vadd.f32 %v73, %v393
  %v395 = vpop.f32.mrf.mxu0
  %396 = vmatprep.mubr.bf16.mxu0 0
  %397 = vmatmul.mubr.bf16.gmra.mxu0 %v238
  %v398 = vpop.f32.mrf.mxu0
  %v399 = vadd.f32 %v73, %v398
  %v400 = vpop.f32.mrf.mxu0
  %v401 = vpop.f32.mrf.mxu0
  %v402 = vadd.f32 %v73, %v401
  %v403 = vpop.f32.mrf.mxu0
  %404 = vmatprep.mubr.bf16.mxu0 0
  %405 = vmatmul.mubr.bf16.gmra.mxu0 %v241
  %v406 = vpop.f32.mrf.mxu0
  %v407 = vadd.f32 %v73, %v406
  %v408 = vpop.f32.mrf.mxu0
  %v409 = vpop.f32.mrf.mxu0
  %v410 = vadd.f32 %v73, %v409
  %v411 = vpop.f32.mrf.mxu0
  %412 = vmatprep.mubr.bf16.mxu0 0
  %413 = vmatmul.mubr.bf16.gmra.mxu0 %v244
  %v414 = vpop.f32.mrf.mxu0
  %v415 = vadd.f32 %v73, %v414
  %v416 = vpop.f32.mrf.mxu0
  %v417 = vpop.f32.mrf.mxu0
  %v418 = vadd.f32 %v73, %v417
  %v419 = vpop.f32.mrf.mxu0
  %420 = vmatprep.mubr.bf16.mxu0 0
  %421 = vmatmul.mubr.bf16.gmra.mxu0 %v247
  %v422 = vpop.f32.mrf.mxu0
  %v423 = vadd.f32 %v73, %v422
  %v424 = vpop.f32.mrf.mxu0
  %v425 = vpop.f32.mrf.mxu0
  %v426 = vadd.f32 %v73, %v425
  %v427 = vpop.f32.mrf.mxu0
  %428 = vmatprep.mubr.bf16.mxu0 0
  %429 = vmatmul.mubr.bf16.gmra.mxu0 %v250
  %v430 = vpop.f32.mrf.mxu0
  %v431 = vadd.f32 %v73, %v430
  %v432 = vpop.f32.mrf.mxu0
  %v433 = vpop.f32.mrf.mxu0
  %v434 = vadd.f32 %v73, %v433
  %v435 = vpop.f32.mrf.mxu0
  %436 = vmatprep.mubr.bf16.mxu0 0
  %437 = vmatmul.mubr.bf16.gmra.mxu0 %v253
  %v438 = vpop.f32.mrf.mxu0
  %v439 = vadd.f32 %v73, %v438
  %v440 = vpop.f32.mrf.mxu0
  %v441 = vpop.f32.mrf.mxu0
  %v442 = vadd.f32 %v73, %v441
  %v443 = vpop.f32.mrf.mxu0
  %444 = vmatprep.mubr.bf16.mxu0 0
  %445 = vmatmul.mubr.bf16.gmra.mxu0 %v256
  %v446 = vpop.f32.mrf.mxu0
  %v447 = vadd.f32 %v73, %v446
  %v448 = vpop.f32.mrf.mxu0
  %v449 = vpop.f32.mrf.mxu0
  %v450 = vadd.f32 %v73, %v449
  %v451 = vpop.f32.mrf.mxu0
  %452 = vmatprep.mubr.bf16.mxu0 0
  %453 = vmatmul.mubr.bf16.gmra.mxu0 %v259
  %v454 = vpop.f32.mrf.mxu0
  %v455 = vadd.f32 %v73, %v454
  %v456 = vpop.f32.mrf.mxu0
  %v457 = vpop.f32.mrf.mxu0
  %v458 = vadd.f32 %v73, %v457
  %v459 = vpop.f32.mrf.mxu0
  %460 = vmatprep.mubr.bf16.mxu0 0
  %461 = vmatmul.mubr.bf16.gmra.mxu0 %v262
  %v462 = vpop.f32.mrf.mxu0
  %v463 = vadd.f32 %v73, %v462
  %v464 = vpop.f32.mrf.mxu0
  %v465 = vpop.f32.mrf.mxu0
  %v466 = vadd.f32 %v73, %v465
  %v467 = vpop.f32.mrf.mxu0
  %468 = vmatprep.mubr.bf16.mxu0 0
  %469 = vmatmul.mubr.bf16.gmra.mxu0 %v265
  %v470 = vpop.f32.mrf.mxu0
  %v471 = vadd.f32 %v73, %v470
  %v472 = vpop.f32.mrf.mxu0
  %v473 = vpop.f32.mrf.mxu0
  %v474 = vadd.f32 %v73, %v473
  %v475 = vpop.f32.mrf.mxu0
  %476 = vmatprep.mubr.bf16.mxu0 0
  %477 = vmatmul.mubr.bf16.gmra.mxu0 %v268
  %v478 = vpop.f32.mrf.mxu0
  %v479 = vadd.f32 %v73, %v478
  %v480 = vpop.f32.mrf.mxu0
  %v481 = vpop.f32.mrf.mxu0
  %v482 = vadd.f32 %v73, %v481
  %v483 = vpop.f32.mrf.mxu0
  %484 = vmatprep.mubr.bf16.mxu0 0
  %485 = vmatmul.mubr.bf16.gmra.mxu0 %v271
  %v486 = vpop.f32.mrf.mxu0
  %v487 = vadd.f32 %v73, %v486
  %v488 = vpop.f32.mrf.mxu0
  %v489 = vpop.f32.mrf.mxu0
  %v490 = vadd.f32 %v73, %v489
  %v491 = vpop.f32.mrf.mxu0
  %492 = vmatprep.mubr.bf16.mxu0 0
  %493 = vmatmul.mubr.bf16.gmra.mxu0 %v274
  %v494 = vpop.f32.mrf.mxu0
  %v495 = vadd.f32 %v73, %v494
  %v496 = vpop.f32.mrf.mxu0
  %v497 = vpop.f32.mrf.mxu0
  %v498 = vadd.f32 %v73, %v497
  %v499 = vpop.f32.mrf.mxu0
  %500 = vmatprep.mubr.bf16.mxu0 0
  %501 = vmatmul.mubr.bf16.gmra.mxu0 %v277
  %v502 = vpop.f32.mrf.mxu0
  %v503 = vadd.f32 %v73, %v502
  %v504 = vpop.f32.mrf.mxu0
  %v505 = vpop.f32.mrf.mxu0
  %v506 = vadd.f32 %v73, %v505
  %v507 = vpop.f32.mrf.mxu0
  %508 = vmatprep.mubr.bf16.mxu0 0
  %509 = vmatmul.mubr.bf16.gmra.mxu0 %v280
  %v510 = vpop.f32.mrf.mxu0
  %v511 = vadd.f32 %v73, %v510
  %v512 = vpop.f32.mrf.mxu0
  %v513 = vpop.f32.mrf.mxu0
  %v514 = vadd.f32 %v73, %v513
  %v515 = vpop.f32.mrf.mxu0
  %516 = vmatprep.mubr.bf16.mxu0 0
  %517 = vmatmul.mubr.bf16.gmra.mxu0 %v283
  %v518 = vpop.f32.mrf.mxu0
  %v519 = vadd.f32 %v73, %v518
  %v520 = vpop.f32.mrf.mxu0
  %v521 = vpop.f32.mrf.mxu0
  %v522 = vpop.f32.mrf.mxu0
  %523 = vdwg.mxu0
  %v524 = vmax.f32 %v327, 0.0
  %v525 = vmax.f32 %v330, 0.0
  %v526 = vmax.f32 %v335, 0.0
  %v527 = vmax.f32 %v338, 0.0
  %v528 = vmax.f32 %v343, 0.0
  %v529 = vmax.f32 %v346, 0.0
  %v530 = vmax.f32 %v351, 0.0
  %v531 = vmax.f32 %v354, 0.0
  %v532 = vmax.f32 %v359, 0.0
  %v533 = vmax.f32 %v362, 0.0
  %v534 = vmax.f32 %v367, 0.0
  %v535 = vmax.f32 %v370, 0.0
  %v536 = vmax.f32 %v375, 0.0
  %v537 = vmax.f32 %v378, 0.0
  %v538 = vmax.f32 %v383, 0.0
  %v539 = vmax.f32 %v386, 0.0
  %v540 = vmax.f32 %v391, 0.0
  %v541 = vmax.f32 %v394, 0.0
  %v542 = vmax.f32 %v399, 0.0
  %v543 = vmax.f32 %v402, 0.0
  %v544 = vmax.f32 %v407, 0.0
  %v545 = vmax.f32 %v410, 0.0
  %v546 = vmax.f32 %v415, 0.0
  %v547 = vmax.f32 %v418, 0.0
  %v548 = vmax.f32 %v423, 0.0
  %v549 = vmax.f32 %v426, 0.0
  %v550 = vmax.f32 %v431, 0.0
  %v551 = vmax.f32 %v434, 0.0
  %v552 = vmax.f32 %v439, 0.0
  %v553 = vmax.f32 %v442, 0.0
  %v554 = vmax.f32 %v447, 0.0
  %v555 = vmax.f32 %v450, 0.0
  %v556 = vmax.f32 %v455, 0.0
  %v557 = vmax.f32 %v458, 0.0
  %v558 = vmax.f32 %v463, 0.0
  %v559 = vmax.f32 %v466, 0.0
  %v560 = vmax.f32 %v471, 0.0
  %v561 = vmax.f32 %v474, 0.0
  %v562 = vmax.f32 %v479, 0.0
  %v563 = vmax.f32 %v482, 0.0
  %v564 = vmax.f32 %v487, 0.0
  %v565 = vmax.f32 %v490, 0.0
  %v566 = vmax.f32 %v495, 0.0
  %v567 = vmax.f32 %v498, 0.0
  %v568 = vmax.f32 %v503, 0.0
  %v569 = vmax.f32 %v506, 0.0
  %v570 = vmax.f32 %v511, 0.0
  %v571 = vmax.f32 %v514, 0.0
  %v572 = vmax.f32 %v519, 0.0
  %s573 = scalar_lea.vmem %s0, 196
  %v574 = vld [vmem:[%s573] sm:$0xf]
  %v575 = vld [vmem:[%s573 + $0x4] sm:$0xf]
  %v576 = vld [vmem:[%s573 + $0x8] sm:$0xf]
  %v577 = vld [vmem:[%s573 + $0xc] sm:$0xf]
  %v578 = vld [vmem:[%s573 + $0x10] sm:$0xf]
  %v579 = vld [vmem:[%s573 + $0x14] sm:$0xf]
  %v580 = vld [vmem:[%s573 + $0x18] sm:$0xf]
  %v581 = vld [vmem:[%s573 + $0x1c] sm:$0xf]
  %v582 = vld [vmem:[%s573 + $0x20] sm:$0xf]
  %v583 = vld [vmem:[%s573 + $0x24] sm:$0xf]
  %v584 = vld [vmem:[%s573 + $0x28] sm:$0xf]
  %v585 = vld [vmem:[%s573 + $0x2c] sm:$0xf]
  %v586 = vld [vmem:[%s573 + $0x30] sm:$0xf]
  %v587 = vld [vmem:[%s573 + $0x34] sm:$0xf]
  %v588 = vld [vmem:[%s573 + $0x38] sm:$0xf]
  %v589 = vld [vmem:[%s573 + $0x3c] sm:$0xf]
  %v590 = vld [vmem:[%s573 + $0x40] sm:$0xf]
  %v591 = vld [vmem:[%s573 + $0x44] sm:$0xf]
  %v592 = vld [vmem:[%s573 + $0x48] sm:$0xf]
  %v593 = vld [vmem:[%s573 + $0x4c] sm:$0xf]
  %v594 = vld [vmem:[%s573 + $0x50] sm:$0xf]
  %v595 = vld [vmem:[%s573 + $0x54] sm:$0xf]
  %v596 = vld [vmem:[%s573 + $0x58] sm:$0xf]
  %v597 = vld [vmem:[%s573 + $0x5c] sm:$0xf]
  %v598 = vld [vmem:[%s573 + $0x60] sm:$0xf]
  %v599 = vld [vmem:[%s573 + $0x64] sm:$0xf]
  %v600 = vld [vmem:[%s573 + $0x68] sm:$0xf]
  %v601 = vld [vmem:[%s573 + $0x6c] sm:$0xf]
  %v602 = vld [vmem:[%s573 + $0x70] sm:$0xf]
  %v603 = vld [vmem:[%s573 + $0x74] sm:$0xf]
  %v604 = vld [vmem:[%s573 + $0x78] sm:$0xf]
  %v605 = vld [vmem:[%s573 + $0x7c] sm:$0xf]
  %v606 = vld [vmem:[%s573 + $0x80] sm:$0xf]
  %v607 = vld [vmem:[%s573 + $0x84] sm:$0xf]
  %v608 = vld [vmem:[%s573 + $0x88] sm:$0xf]
  %v609 = vld [vmem:[%s573 + $0x8c] sm:$0xf]
  %v610 = vld [vmem:[%s573 + $0x90] sm:$0xf]
  %v611 = vld [vmem:[%s573 + $0x94] sm:$0xf]
  %v612 = vld [vmem:[%s573 + $0x98] sm:$0xf]
  %v613 = vld [vmem:[%s573 + $0x9c] sm:$0xf]
  %v614 = vld [vmem:[%s573 + $0xa0] sm:$0xf]
  %v615 = vld [vmem:[%s573 + $0xa4] sm:$0xf]
  %v616 = vld [vmem:[%s573 + $0xa8] sm:$0xf]
  %v617 = vld [vmem:[%s573 + $0xac] sm:$0xf]
  %v618 = vld [vmem:[%s573 + $0xb0] sm:$0xf]
  %v619 = vld [vmem:[%s573 + $0xb4] sm:$0xf]
  %v620 = vld [vmem:[%s573 + $0xb8] sm:$0xf]
  %v621 = vld [vmem:[%s573 + $0xbc] sm:$0xf]
  %v622 = vld [vmem:[%s573 + $0xc0] sm:$0xf]
  %v672 = vunpack.c.l.b16 %v574
  %v673 = vunpack.c.l.b16 %v575
  %v674 = vunpack.c.l.b16 %v576
  %v675 = vunpack.c.l.b16 %v577
  %v676 = vunpack.c.l.b16 %v578
  %v677 = vunpack.c.l.b16 %v579
  %v678 = vunpack.c.l.b16 %v580
  %v679 = vunpack.c.l.b16 %v581
  %v680 = vunpack.c.l.b16 %v582
  %v681 = vunpack.c.l.b16 %v583
  %v682 = vunpack.c.l.b16 %v584
  %v683 = vunpack.c.l.b16 %v585
  %v684 = vunpack.c.l.b16 %v586
  %v685 = vunpack.c.l.b16 %v587
  %v686 = vunpack.c.l.b16 %v588
  %v687 = vunpack.c.l.b16 %v589
  %v688 = vunpack.c.l.b16 %v590
  %v689 = vunpack.c.l.b16 %v591
  %v690 = vunpack.c.l.b16 %v592
  %v691 = vunpack.c.l.b16 %v593
  %v692 = vunpack.c.l.b16 %v594
  %v693 = vunpack.c.l.b16 %v595
  %v694 = vunpack.c.l.b16 %v596
  %v695 = vunpack.c.l.b16 %v597
  %v696 = vunpack.c.l.b16 %v598
  %v697 = vunpack.c.l.b16 %v599
  %v698 = vunpack.c.l.b16 %v600
  %v699 = vunpack.c.l.b16 %v601
  %v700 = vunpack.c.l.b16 %v602
  %v701 = vunpack.c.l.b16 %v603
  %v702 = vunpack.c.l.b16 %v604
  %v703 = vunpack.c.l.b16 %v605
  %v704 = vunpack.c.l.b16 %v606
  %v705 = vunpack.c.l.b16 %v607
  %v706 = vunpack.c.l.b16 %v608
  %v707 = vunpack.c.l.b16 %v609
  %v708 = vunpack.c.l.b16 %v610
  %v709 = vunpack.c.l.b16 %v611
  %v710 = vunpack.c.l.b16 %v612
  %v711 = vunpack.c.l.b16 %v613
  %v712 = vunpack.c.l.b16 %v614
  %v713 = vunpack.c.l.b16 %v615
  %v714 = vunpack.c.l.b16 %v616
  %v715 = vunpack.c.l.b16 %v617
  %v716 = vunpack.c.l.b16 %v618
  %v717 = vunpack.c.l.b16 %v619
  %v718 = vunpack.c.l.b16 %v620
  %v719 = vunpack.c.l.b16 %v621
  %v720 = vunpack.c.l.b16 %v622
  %v721 = vpack.c.b16 %v673, %v672
  %v722 = vpack.c.b16 %v675, %v674
  %v723 = vpack.c.b16 %v677, %v676
  %v724 = vpack.c.b16 %v679, %v678
  %v725 = vpack.c.b16 %v681, %v680
  %v726 = vpack.c.b16 %v683, %v682
  %v727 = vpack.c.b16 %v685, %v684
  %v728 = vpack.c.b16 %v687, %v686
  %v729 = vpack.c.b16 %v689, %v688
  %v730 = vpack.c.b16 %v691, %v690
  %v731 = vpack.c.b16 %v693, %v692
  %v732 = vpack.c.b16 %v695, %v694
  %v733 = vpack.c.b16 %v697, %v696
  %v734 = vpack.c.b16 %v699, %v698
  %v735 = vpack.c.b16 %v701, %v700
  %v736 = vpack.c.b16 %v703, %v702
  %v737 = vpack.c.b16 %v705, %v704
  %v738 = vpack.c.b16 %v707, %v706
  %v739 = vpack.c.b16 %v709, %v708
  %v740 = vpack.c.b16 %v711, %v710
  %v741 = vpack.c.b16 %v713, %v712
  %v742 = vpack.c.b16 %v715, %v714
  %v743 = vpack.c.b16 %v717, %v716
  %v744 = vpack.c.b16 %v719, %v718
  %v745 = vpack.c.b16 %v720, %v720
  %v747 = vsel %vm209, %v721, 0
  %v750 = vsel %vm209, %v722, 0
  %v753 = vsel %vm209, %v723, 0
  %v756 = vsel %vm209, %v724, 0
  %v759 = vsel %vm209, %v725, 0
  %v762 = vsel %vm209, %v726, 0
  %v765 = vsel %vm209, %v727, 0
  %v768 = vsel %vm209, %v728, 0
  %v771 = vsel %vm209, %v729, 0
  %v774 = vsel %vm209, %v730, 0
  %v777 = vsel %vm209, %v731, 0
  %v780 = vsel %vm209, %v732, 0
  %v783 = vsel %vm209, %v733, 0
  %v786 = vsel %vm209, %v734, 0
  %v789 = vsel %vm209, %v735, 0
  %v792 = vsel %vm209, %v736, 0
  %v795 = vsel %vm209, %v737, 0
  %v798 = vsel %vm209, %v738, 0
  %v801 = vsel %vm209, %v739, 0
  %v804 = vsel %vm209, %v740, 0
  %v807 = vsel %vm209, %v741, 0
  %v810 = vsel %vm209, %v742, 0
  %v813 = vsel %vm209, %v743, 0
  %v816 = vsel %vm209, %v744, 0
  %v819 = vsel %vm209, %v745, 0
  %821 = vmatprep.subr.bf16.mxu0 0
  %822 = vmatpush1.bf16.msra.mxu0 0
  %823 = vmatprep.subr.bf16.mxu0 0
  %824 = vmatpush1.bf16.msra.mxu0 0
  %825 = vmatprep.subr.bf16.mxu0 0
  %826 = vmatpush1.bf16.msra.mxu0 0
  %827 = vmatprep.subr.bf16.mxu0 0
  %828 = vmatpush1.bf16.msra.mxu0 0
  %829 = vmatprep.subr.bf16.mxu0 0
  %830 = vmatpush1.bf16.msra.mxu0 0
  %831 = vmatprep.subr.bf16.mxu0 0
  %832 = vmatpush1.bf16.msra.mxu0 0
  %833 = vmatprep.subr.bf16.mxu0 0
  %834 = vmatpush1.bf16.msra.mxu0 %v290
  %835 = vmatprep.subr.bf16.mxu0 0
  %836 = vmatpush1.bf16.msra.mxu0 %v206
  %837 = vmatprep.subr.bf16.mxu0 0
  %838 = vmatpush2.bf16.msra.mxu0 0
  %839 = vmatprep.subr.bf16.mxu0 0
  %840 = vmatpush2.bf16.msra.mxu0 0
  %841 = vmatprep.subr.bf16.mxu0 0
  %842 = vmatpush2.bf16.msra.mxu0 0
  %843 = vmatprep.subr.bf16.mxu0 0
  %844 = vmatpush2.bf16.msra.mxu0 0
  %845 = vmatprep.subr.bf16.mxu0 0
  %846 = vmatpush2.bf16.msra.mxu0 0
  %847 = vmatprep.subr.bf16.mxu0 0
  %848 = vmatpush2.bf16.msra.mxu0 0
  %849 = vmatprep.subr.bf16.mxu0 0
  %850 = vmatpush2.bf16.msra.mxu0 0
  %851 = vmatprep.subr.bf16.mxu0 0
  %852 = vmatpush2.bf16.msra.mxu0 0
  %853 = vmatprep.mubr.bf16.mxu0 0
  %854 = vmatmul.mubr.bf16.gmra.mxu0 %v747
  %v855 = vpop.f32.mrf.mxu0
  %v856 = vadd.f32 %v73, %v855
  %v857 = vpop.f32.mrf.mxu0
  %v858 = vpop.f32.mrf.mxu0
  %v859 = vadd.f32 %v73, %v858
  %v860 = vpop.f32.mrf.mxu0
  %861 = vmatprep.mubr.bf16.mxu0 0
  %862 = vmatmul.mubr.bf16.gmra.mxu0 %v750
  %v863 = vpop.f32.mrf.mxu0
  %v864 = vadd.f32 %v73, %v863
  %v865 = vpop.f32.mrf.mxu0
  %v866 = vpop.f32.mrf.mxu0
  %v867 = vadd.f32 %v73, %v866
  %v868 = vpop.f32.mrf.mxu0
  %869 = vmatprep.mubr.bf16.mxu0 0
  %870 = vmatmul.mubr.bf16.gmra.mxu0 %v753
  %v871 = vpop.f32.mrf.mxu0
  %v872 = vadd.f32 %v73, %v871
  %v873 = vpop.f32.mrf.mxu0
  %v874 = vpop.f32.mrf.mxu0
  %v875 = vadd.f32 %v73, %v874
  %v876 = vpop.f32.mrf.mxu0
  %877 = vmatprep.mubr.bf16.mxu0 0
  %878 = vmatmul.mubr.bf16.gmra.mxu0 %v756
  %v879 = vpop.f32.mrf.mxu0
  %v880 = vadd.f32 %v73, %v879
  %v881 = vpop.f32.mrf.mxu0
  %v882 = vpop.f32.mrf.mxu0
  %v883 = vadd.f32 %v73, %v882
  %v884 = vpop.f32.mrf.mxu0
  %885 = vmatprep.mubr.bf16.mxu0 0
  %886 = vmatmul.mubr.bf16.gmra.mxu0 %v759
  %v887 = vpop.f32.mrf.mxu0
  %v888 = vadd.f32 %v73, %v887
  %v889 = vpop.f32.mrf.mxu0
  %v890 = vpop.f32.mrf.mxu0
  %v891 = vadd.f32 %v73, %v890
  %v892 = vpop.f32.mrf.mxu0
  %893 = vmatprep.mubr.bf16.mxu0 0
  %894 = vmatmul.mubr.bf16.gmra.mxu0 %v762
  %v895 = vpop.f32.mrf.mxu0
  %v896 = vadd.f32 %v73, %v895
  %v897 = vpop.f32.mrf.mxu0
  %v898 = vpop.f32.mrf.mxu0
  %v899 = vadd.f32 %v73, %v898
  %v900 = vpop.f32.mrf.mxu0
  %901 = vmatprep.mubr.bf16.mxu0 0
  %902 = vmatmul.mubr.bf16.gmra.mxu0 %v765
  %v903 = vpop.f32.mrf.mxu0
  %v904 = vadd.f32 %v73, %v903
  %v905 = vpop.f32.mrf.mxu0
  %v906 = vpop.f32.mrf.mxu0
  %v907 = vadd.f32 %v73, %v906
  %v908 = vpop.f32.mrf.mxu0
  %909 = vmatprep.mubr.bf16.mxu0 0
  %910 = vmatmul.mubr.bf16.gmra.mxu0 %v768
  %v911 = vpop.f32.mrf.mxu0
  %v912 = vadd.f32 %v73, %v911
  %v913 = vpop.f32.mrf.mxu0
  %v914 = vpop.f32.mrf.mxu0
  %v915 = vadd.f32 %v73, %v914
  %v916 = vpop.f32.mrf.mxu0
  %917 = vmatprep.mubr.bf16.mxu0 0
  %918 = vmatmul.mubr.bf16.gmra.mxu0 %v771
  %v919 = vpop.f32.mrf.mxu0
  %v920 = vadd.f32 %v73, %v919
  %v921 = vpop.f32.mrf.mxu0
  %v922 = vpop.f32.mrf.mxu0
  %v923 = vadd.f32 %v73, %v922
  %v924 = vpop.f32.mrf.mxu0
  %925 = vmatprep.mubr.bf16.mxu0 0
  %926 = vmatmul.mubr.bf16.gmra.mxu0 %v774
  %v927 = vpop.f32.mrf.mxu0
  %v928 = vadd.f32 %v73, %v927
  %v929 = vpop.f32.mrf.mxu0
  %v930 = vpop.f32.mrf.mxu0
  %v931 = vadd.f32 %v73, %v930
  %v932 = vpop.f32.mrf.mxu0
  %933 = vmatprep.mubr.bf16.mxu0 0
  %934 = vmatmul.mubr.bf16.gmra.mxu0 %v777
  %v935 = vpop.f32.mrf.mxu0
  %v936 = vadd.f32 %v73, %v935
  %v937 = vpop.f32.mrf.mxu0
  %v938 = vpop.f32.mrf.mxu0
  %v939 = vadd.f32 %v73, %v938
  %v940 = vpop.f32.mrf.mxu0
  %941 = vmatprep.mubr.bf16.mxu0 0
  %942 = vmatmul.mubr.bf16.gmra.mxu0 %v780
  %v943 = vpop.f32.mrf.mxu0
  %v944 = vadd.f32 %v73, %v943
  %v945 = vpop.f32.mrf.mxu0
  %v946 = vpop.f32.mrf.mxu0
  %v947 = vadd.f32 %v73, %v946
  %v948 = vpop.f32.mrf.mxu0
  %949 = vmatprep.mubr.bf16.mxu0 0
  %950 = vmatmul.mubr.bf16.gmra.mxu0 %v783
  %v951 = vpop.f32.mrf.mxu0
  %v952 = vadd.f32 %v73, %v951
  %v953 = vpop.f32.mrf.mxu0
  %v954 = vpop.f32.mrf.mxu0
  %v955 = vadd.f32 %v73, %v954
  %v956 = vpop.f32.mrf.mxu0
  %957 = vmatprep.mubr.bf16.mxu0 0
  %958 = vmatmul.mubr.bf16.gmra.mxu0 %v786
  %v959 = vpop.f32.mrf.mxu0
  %v960 = vadd.f32 %v73, %v959
  %v961 = vpop.f32.mrf.mxu0
  %v962 = vpop.f32.mrf.mxu0
  %v963 = vadd.f32 %v73, %v962
  %v964 = vpop.f32.mrf.mxu0
  %965 = vmatprep.mubr.bf16.mxu0 0
  %966 = vmatmul.mubr.bf16.gmra.mxu0 %v789
  %v967 = vpop.f32.mrf.mxu0
  %v968 = vadd.f32 %v73, %v967
  %v969 = vpop.f32.mrf.mxu0
  %v970 = vpop.f32.mrf.mxu0
  %v971 = vadd.f32 %v73, %v970
  %v972 = vpop.f32.mrf.mxu0
  %973 = vmatprep.mubr.bf16.mxu0 0
  %974 = vmatmul.mubr.bf16.gmra.mxu0 %v792
  %v975 = vpop.f32.mrf.mxu0
  %v976 = vadd.f32 %v73, %v975
  %v977 = vpop.f32.mrf.mxu0
  %v978 = vpop.f32.mrf.mxu0
  %v979 = vadd.f32 %v73, %v978
  %v980 = vpop.f32.mrf.mxu0
  %981 = vmatprep.mubr.bf16.mxu0 0
  %982 = vmatmul.mubr.bf16.gmra.mxu0 %v795
  %v983 = vpop.f32.mrf.mxu0
  %v984 = vadd.f32 %v73, %v983
  %v985 = vpop.f32.mrf.mxu0
  %v986 = vpop.f32.mrf.mxu0
  %v987 = vadd.f32 %v73, %v986
  %v988 = vpop.f32.mrf.mxu0
  %989 = vmatprep.mubr.bf16.mxu0 0
  %990 = vmatmul.mubr.bf16.gmra.mxu0 %v798
  %v991 = vpop.f32.mrf.mxu0
  %v992 = vadd.f32 %v73, %v991
  %v993 = vpop.f32.mrf.mxu0
  %v994 = vpop.f32.mrf.mxu0
  %v995 = vadd.f32 %v73, %v994
  %v996 = vpop.f32.mrf.mxu0
  %997 = vmatprep.mubr.bf16.mxu0 0
  %998 = vmatmul.mubr.bf16.gmra.mxu0 %v801
  %v999 = vpop.f32.mrf.mxu0
  %v1000 = vadd.f32 %v73, %v999
  %v1001 = vpop.f32.mrf.mxu0
  %v1002 = vpop.f32.mrf.mxu0
  %v1003 = vadd.f32 %v73, %v1002
  %v1004 = vpop.f32.mrf.mxu0
  %1005 = vmatprep.mubr.bf16.mxu0 0
  %1006 = vmatmul.mubr.bf16.gmra.mxu0 %v804
  %v1007 = vpop.f32.mrf.mxu0
  %v1008 = vadd.f32 %v73, %v1007
  %v1009 = vpop.f32.mrf.mxu0
  %v1010 = vpop.f32.mrf.mxu0
  %v1011 = vadd.f32 %v73, %v1010
  %v1012 = vpop.f32.mrf.mxu0
  %1013 = vmatprep.mubr.bf16.mxu0 0
  %1014 = vmatmul.mubr.bf16.gmra.mxu0 %v807
  %v1015 = vpop.f32.mrf.mxu0
  %v1016 = vadd.f32 %v73, %v1015
  %v1017 = vpop.f32.mrf.mxu0
  %v1018 = vpop.f32.mrf.mxu0
  %v1019 = vadd.f32 %v73, %v1018
  %v1020 = vpop.f32.mrf.mxu0
  %1021 = vmatprep.mubr.bf16.mxu0 0
  %1022 = vmatmul.mubr.bf16.gmra.mxu0 %v810
  %v1023 = vpop.f32.mrf.mxu0
  %v1024 = vadd.f32 %v73, %v1023
  %v1025 = vpop.f32.mrf.mxu0
  %v1026 = vpop.f32.mrf.mxu0
  %v1027 = vadd.f32 %v73, %v1026
  %v1028 = vpop.f32.mrf.mxu0
  %1029 = vmatprep.mubr.bf16.mxu0 0
  %1030 = vmatmul.mubr.bf16.gmra.mxu0 %v813
  %v1031 = vpop.f32.mrf.mxu0
  %v1032 = vadd.f32 %v73, %v1031
  %v1033 = vpop.f32.mrf.mxu0
  %v1034 = vpop.f32.mrf.mxu0
  %v1035 = vadd.f32 %v73, %v1034
  %v1036 = vpop.f32.mrf.mxu0
  %1037 = vmatprep.mubr.bf16.mxu0 0
  %1038 = vmatmul.mubr.bf16.gmra.mxu0 %v816
  %v1039 = vpop.f32.mrf.mxu0
  %v1040 = vadd.f32 %v73, %v1039
  %v1041 = vpop.f32.mrf.mxu0
  %v1042 = vpop.f32.mrf.mxu0
  %v1043 = vadd.f32 %v73, %v1042
  %v1044 = vpop.f32.mrf.mxu0
  %1045 = vmatprep.mubr.bf16.mxu0 0
  %1046 = vmatmul.mubr.bf16.gmra.mxu0 %v819
  %v1047 = vpop.f32.mrf.mxu0
  %v1048 = vadd.f32 %v73, %v1047
  %v1049 = vpop.f32.mrf.mxu0
  %v1050 = vpop.f32.mrf.mxu0
  %v1051 = vpop.f32.mrf.mxu0
  %1052 = vdwg.mxu0
  %v1053 = vmax.f32 %v856, 0.0
  %v1054 = vmax.f32 %v859, 0.0
  %v1055 = vmax.f32 %v864, 0.0
  %v1056 = vmax.f32 %v867, 0.0
  %v1057 = vmax.f32 %v872, 0.0
  %v1058 = vmax.f32 %v875, 0.0
  %v1059 = vmax.f32 %v880, 0.0
  %v1060 = vmax.f32 %v883, 0.0
  %v1061 = vmax.f32 %v888, 0.0
  %v1062 = vmax.f32 %v891, 0.0
  %v1063 = vmax.f32 %v896, 0.0
  %v1064 = vmax.f32 %v899, 0.0
  %v1065 = vmax.f32 %v904, 0.0
  %v1066 = vmax.f32 %v907, 0.0
  %v1067 = vmax.f32 %v912, 0.0
  %v1068 = vmax.f32 %v915, 0.0
  %v1069 = vmax.f32 %v920, 0.0
  %v1070 = vmax.f32 %v923, 0.0
  %v1071 = vmax.f32 %v928, 0.0
  %v1072 = vmax.f32 %v931, 0.0
  %v1073 = vmax.f32 %v936, 0.0
  %v1074 = vmax.f32 %v939, 0.0
  %v1075 = vmax.f32 %v944, 0.0
  %v1076 = vmax.f32 %v947, 0.0
  %v1077 = vmax.f32 %v952, 0.0
  %v1078 = vmax.f32 %v955, 0.0
  %v1079 = vmax.f32 %v960, 0.0
  %v1080 = vmax.f32 %v963, 0.0
  %v1081 = vmax.f32 %v968, 0.0
  %v1082 = vmax.f32 %v971, 0.0
  %v1083 = vmax.f32 %v976, 0.0
  %v1084 = vmax.f32 %v979, 0.0
  %v1085 = vmax.f32 %v984, 0.0
  %v1086 = vmax.f32 %v987, 0.0
  %v1087 = vmax.f32 %v992, 0.0
  %v1088 = vmax.f32 %v995, 0.0
  %v1089 = vmax.f32 %v1000, 0.0
  %v1090 = vmax.f32 %v1003, 0.0
  %v1091 = vmax.f32 %v1008, 0.0
  %v1092 = vmax.f32 %v1011, 0.0
  %v1093 = vmax.f32 %v1016, 0.0
  %v1094 = vmax.f32 %v1019, 0.0
  %v1095 = vmax.f32 %v1024, 0.0
  %v1096 = vmax.f32 %v1027, 0.0
  %v1097 = vmax.f32 %v1032, 0.0
  %v1098 = vmax.f32 %v1035, 0.0
  %v1099 = vmax.f32 %v1040, 0.0
  %v1100 = vmax.f32 %v1043, 0.0
  %v1101 = vmax.f32 %v1048, 0.0
  %v1102 = vadd.f32 %v524, %v1053
  %v1103 = vadd.f32 %v525, %v1054
  %v1104 = vadd.f32 %v526, %v1055
  %v1105 = vadd.f32 %v527, %v1056
  %v1106 = vadd.f32 %v528, %v1057
  %v1107 = vadd.f32 %v529, %v1058
  %v1108 = vadd.f32 %v530, %v1059
  %v1109 = vadd.f32 %v531, %v1060
  %v1110 = vadd.f32 %v532, %v1061
  %v1111 = vadd.f32 %v533, %v1062
  %v1112 = vadd.f32 %v534, %v1063
  %v1113 = vadd.f32 %v535, %v1064
  %v1114 = vadd.f32 %v536, %v1065
  %v1115 = vadd.f32 %v537, %v1066
  %v1116 = vadd.f32 %v538, %v1067
  %v1117 = vadd.f32 %v539, %v1068
  %v1118 = vadd.f32 %v540, %v1069
  %v1119 = vadd.f32 %v541, %v1070
  %v1120 = vadd.f32 %v542, %v1071
  %v1121 = vadd.f32 %v543, %v1072
  %v1122 = vadd.f32 %v544, %v1073
  %v1123 = vadd.f32 %v545, %v1074
  %v1124 = vadd.f32 %v546, %v1075
  %v1125 = vadd.f32 %v547, %v1076
  %v1126 = vadd.f32 %v548, %v1077
  %v1127 = vadd.f32 %v549, %v1078
  %v1128 = vadd.f32 %v550, %v1079
  %v1129 = vadd.f32 %v551, %v1080
  %v1130 = vadd.f32 %v552, %v1081
  %v1131 = vadd.f32 %v553, %v1082
  %v1132 = vadd.f32 %v554, %v1083
  %v1133 = vadd.f32 %v555, %v1084
  %v1134 = vadd.f32 %v556, %v1085
  %v1135 = vadd.f32 %v557, %v1086
  %v1136 = vadd.f32 %v558, %v1087
  %v1137 = vadd.f32 %v559, %v1088
  %v1138 = vadd.f32 %v560, %v1089
  %v1139 = vadd.f32 %v561, %v1090
  %v1140 = vadd.f32 %v562, %v1091
  %v1141 = vadd.f32 %v563, %v1092
  %v1142 = vadd.f32 %v564, %v1093
  %v1143 = vadd.f32 %v565, %v1094
  %v1144 = vadd.f32 %v566, %v1095
  %v1145 = vadd.f32 %v567, %v1096
  %v1146 = vadd.f32 %v568, %v1097
  %v1147 = vadd.f32 %v569, %v1098
  %v1148 = vadd.f32 %v570, %v1099
  %v1149 = vadd.f32 %v571, %v1100
  %v1150 = vadd.f32 %v572, %v1101
  %s1151 = scalar_lea.vmem %s0, 392
  %v1152 = vld [vmem:[%s1151] sm:$0xf]
  %v1153 = vld [vmem:[%s1151 + $0x4] sm:$0xf]
  %v1154 = vld [vmem:[%s1151 + $0x8] sm:$0xf]
  %v1155 = vld [vmem:[%s1151 + $0xc] sm:$0xf]
  %v1156 = vld [vmem:[%s1151 + $0x10] sm:$0xf]
  %v1157 = vld [vmem:[%s1151 + $0x14] sm:$0xf]
  %v1158 = vld [vmem:[%s1151 + $0x18] sm:$0xf]
  %v1159 = vld [vmem:[%s1151 + $0x1c] sm:$0xf]
  %v1160 = vld [vmem:[%s1151 + $0x20] sm:$0xf]
  %v1161 = vld [vmem:[%s1151 + $0x24] sm:$0xf]
  %v1162 = vld [vmem:[%s1151 + $0x28] sm:$0xf]
  %v1163 = vld [vmem:[%s1151 + $0x2c] sm:$0xf]
  %v1164 = vld [vmem:[%s1151 + $0x30] sm:$0xf]
  %v1165 = vld [vmem:[%s1151 + $0x34] sm:$0xf]
  %v1166 = vld [vmem:[%s1151 + $0x38] sm:$0xf]
  %v1167 = vld [vmem:[%s1151 + $0x3c] sm:$0xf]
  %v1168 = vld [vmem:[%s1151 + $0x40] sm:$0xf]
  %v1169 = vld [vmem:[%s1151 + $0x44] sm:$0xf]
  %v1170 = vld [vmem:[%s1151 + $0x48] sm:$0xf]
  %v1171 = vld [vmem:[%s1151 + $0x4c] sm:$0xf]
  %v1172 = vld [vmem:[%s1151 + $0x50] sm:$0xf]
  %v1173 = vld [vmem:[%s1151 + $0x54] sm:$0xf]
  %v1174 = vld [vmem:[%s1151 + $0x58] sm:$0xf]
  %v1175 = vld [vmem:[%s1151 + $0x5c] sm:$0xf]
  %v1176 = vld [vmem:[%s1151 + $0x60] sm:$0xf]
  %v1177 = vld [vmem:[%s1151 + $0x64] sm:$0xf]
  %v1178 = vld [vmem:[%s1151 + $0x68] sm:$0xf]
  %v1179 = vld [vmem:[%s1151 + $0x6c] sm:$0xf]
  %v1180 = vld [vmem:[%s1151 + $0x70] sm:$0xf]
  %v1181 = vld [vmem:[%s1151 + $0x74] sm:$0xf]
  %v1182 = vld [vmem:[%s1151 + $0x78] sm:$0xf]
  %v1183 = vld [vmem:[%s1151 + $0x7c] sm:$0xf]
  %v1184 = vld [vmem:[%s1151 + $0x80] sm:$0xf]
  %v1185 = vld [vmem:[%s1151 + $0x84] sm:$0xf]
  %v1186 = vld [vmem:[%s1151 + $0x88] sm:$0xf]
  %v1187 = vld [vmem:[%s1151 + $0x8c] sm:$0xf]
  %v1188 = vld [vmem:[%s1151 + $0x90] sm:$0xf]
  %v1189 = vld [vmem:[%s1151 + $0x94] sm:$0xf]
  %v1190 = vld [vmem:[%s1151 + $0x98] sm:$0xf]
  %v1191 = vld [vmem:[%s1151 + $0x9c] sm:$0xf]
  %v1192 = vld [vmem:[%s1151 + $0xa0] sm:$0xf]
  %v1193 = vld [vmem:[%s1151 + $0xa4] sm:$0xf]
  %v1194 = vld [vmem:[%s1151 + $0xa8] sm:$0xf]
  %v1195 = vld [vmem:[%s1151 + $0xac] sm:$0xf]
  %v1196 = vld [vmem:[%s1151 + $0xb0] sm:$0xf]
  %v1197 = vld [vmem:[%s1151 + $0xb4] sm:$0xf]
  %v1198 = vld [vmem:[%s1151 + $0xb8] sm:$0xf]
  %v1199 = vld [vmem:[%s1151 + $0xbc] sm:$0xf]
  %v1200 = vld [vmem:[%s1151 + $0xc0] sm:$0xf]
  %v1250 = vunpack.c.l.b16 %v1152
  %v1251 = vunpack.c.l.b16 %v1153
  %v1252 = vunpack.c.l.b16 %v1154
  %v1253 = vunpack.c.l.b16 %v1155
  %v1254 = vunpack.c.l.b16 %v1156
  %v1255 = vunpack.c.l.b16 %v1157
  %v1256 = vunpack.c.l.b16 %v1158
  %v1257 = vunpack.c.l.b16 %v1159
  %v1258 = vunpack.c.l.b16 %v1160
  %v1259 = vunpack.c.l.b16 %v1161
  %v1260 = vunpack.c.l.b16 %v1162
  %v1261 = vunpack.c.l.b16 %v1163
  %v1262 = vunpack.c.l.b16 %v1164
  %v1263 = vunpack.c.l.b16 %v1165
  %v1264 = vunpack.c.l.b16 %v1166
  %v1265 = vunpack.c.l.b16 %v1167
  %v1266 = vunpack.c.l.b16 %v1168
  %v1267 = vunpack.c.l.b16 %v1169
  %v1268 = vunpack.c.l.b16 %v1170
  %v1269 = vunpack.c.l.b16 %v1171
  %v1270 = vunpack.c.l.b16 %v1172
  %v1271 = vunpack.c.l.b16 %v1173
  %v1272 = vunpack.c.l.b16 %v1174
  %v1273 = vunpack.c.l.b16 %v1175
  %v1274 = vunpack.c.l.b16 %v1176
  %v1275 = vunpack.c.l.b16 %v1177
  %v1276 = vunpack.c.l.b16 %v1178
  %v1277 = vunpack.c.l.b16 %v1179
  %v1278 = vunpack.c.l.b16 %v1180
  %v1279 = vunpack.c.l.b16 %v1181
  %v1280 = vunpack.c.l.b16 %v1182
  %v1281 = vunpack.c.l.b16 %v1183
  %v1282 = vunpack.c.l.b16 %v1184
  %v1283 = vunpack.c.l.b16 %v1185
  %v1284 = vunpack.c.l.b16 %v1186
  %v1285 = vunpack.c.l.b16 %v1187
  %v1286 = vunpack.c.l.b16 %v1188
  %v1287 = vunpack.c.l.b16 %v1189
  %v1288 = vunpack.c.l.b16 %v1190
  %v1289 = vunpack.c.l.b16 %v1191
  %v1290 = vunpack.c.l.b16 %v1192
  %v1291 = vunpack.c.l.b16 %v1193
  %v1292 = vunpack.c.l.b16 %v1194
  %v1293 = vunpack.c.l.b16 %v1195
  %v1294 = vunpack.c.l.b16 %v1196
  %v1295 = vunpack.c.l.b16 %v1197
  %v1296 = vunpack.c.l.b16 %v1198
  %v1297 = vunpack.c.l.b16 %v1199
  %v1298 = vunpack.c.l.b16 %v1200
  %v1299 = vpack.c.b16 %v1251, %v1250
  %v1300 = vpack.c.b16 %v1253, %v1252
  %v1301 = vpack.c.b16 %v1255, %v1254
  %v1302 = vpack.c.b16 %v1257, %v1256
  %v1303 = vpack.c.b16 %v1259, %v1258
  %v1304 = vpack.c.b16 %v1261, %v1260
  %v1305 = vpack.c.b16 %v1263, %v1262
  %v1306 = vpack.c.b16 %v1265, %v1264
  %v1307 = vpack.c.b16 %v1267, %v1266
  %v1308 = vpack.c.b16 %v1269, %v1268
  %v1309 = vpack.c.b16 %v1271, %v1270
  %v1310 = vpack.c.b16 %v1273, %v1272
  %v1311 = vpack.c.b16 %v1275, %v1274
  %v1312 = vpack.c.b16 %v1277, %v1276
  %v1313 = vpack.c.b16 %v1279, %v1278
  %v1314 = vpack.c.b16 %v1281, %v1280
  %v1315 = vpack.c.b16 %v1283, %v1282
  %v1316 = vpack.c.b16 %v1285, %v1284
  %v1317 = vpack.c.b16 %v1287, %v1286
  %v1318 = vpack.c.b16 %v1289, %v1288
  %v1319 = vpack.c.b16 %v1291, %v1290
  %v1320 = vpack.c.b16 %v1293, %v1292
  %v1321 = vpack.c.b16 %v1295, %v1294
  %v1322 = vpack.c.b16 %v1297, %v1296
  %v1323 = vpack.c.b16 %v1298, %v1298
  %v1325 = vsel %vm209, %v1299, 0
  %v1328 = vsel %vm209, %v1300, 0
  %v1331 = vsel %vm209, %v1301, 0
  %v1334 = vsel %vm209, %v1302, 0
  %v1337 = vsel %vm209, %v1303, 0
  %v1340 = vsel %vm209, %v1304, 0
  %v1343 = vsel %vm209, %v1305, 0
  %v1346 = vsel %vm209, %v1306, 0
  %v1349 = vsel %vm209, %v1307, 0
  %v1352 = vsel %vm209, %v1308, 0
  %v1355 = vsel %vm209, %v1309, 0
  %v1358 = vsel %vm209, %v1310, 0
  %v1361 = vsel %vm209, %v1311, 0
  %v1364 = vsel %vm209, %v1312, 0
  %v1367 = vsel %vm209, %v1313, 0
  %v1370 = vsel %vm209, %v1314, 0
  %v1373 = vsel %vm209, %v1315, 0
  %v1376 = vsel %vm209, %v1316, 0
  %v1379 = vsel %vm209, %v1317, 0
  %v1382 = vsel %vm209, %v1318, 0
  %v1385 = vsel %vm209, %v1319, 0
  %v1388 = vsel %vm209, %v1320, 0
  %v1391 = vsel %vm209, %v1321, 0
  %v1394 = vsel %vm209, %v1322, 0
  %v1397 = vsel %vm209, %v1323, 0
  %1399 = vmatprep.subr.bf16.mxu0 0
  %1400 = vmatpush1.bf16.msra.mxu0 0
  %1401 = vmatprep.subr.bf16.mxu0 0
  %1402 = vmatpush1.bf16.msra.mxu0 0
  %1403 = vmatprep.subr.bf16.mxu0 0
  %1404 = vmatpush1.bf16.msra.mxu0 0
  %1405 = vmatprep.subr.bf16.mxu0 0
  %1406 = vmatpush1.bf16.msra.mxu0 0
  %1407 = vmatprep.subr.bf16.mxu0 0
  %1408 = vmatpush1.bf16.msra.mxu0 0
  %1409 = vmatprep.subr.bf16.mxu0 0
  %1410 = vmatpush1.bf16.msra.mxu0 0
  %1411 = vmatprep.subr.bf16.mxu0 0
  %1412 = vmatpush1.bf16.msra.mxu0 %v290
  %1413 = vmatprep.subr.bf16.mxu0 0
  %1414 = vmatpush1.bf16.msra.mxu0 %v206
  %1415 = vmatprep.subr.bf16.mxu0 0
  %1416 = vmatpush2.bf16.msra.mxu0 0
  %1417 = vmatprep.subr.bf16.mxu0 0
  %1418 = vmatpush2.bf16.msra.mxu0 0
  %1419 = vmatprep.subr.bf16.mxu0 0
  %1420 = vmatpush2.bf16.msra.mxu0 0
  %1421 = vmatprep.subr.bf16.mxu0 0
  %1422 = vmatpush2.bf16.msra.mxu0 0
  %1423 = vmatprep.subr.bf16.mxu0 0
  %1424 = vmatpush2.bf16.msra.mxu0 0
  %1425 = vmatprep.subr.bf16.mxu0 0
  %1426 = vmatpush2.bf16.msra.mxu0 0
  %1427 = vmatprep.subr.bf16.mxu0 0
  %1428 = vmatpush2.bf16.msra.mxu0 0
  %1429 = vmatprep.subr.bf16.mxu0 0
  %1430 = vmatpush2.bf16.msra.mxu0 0
  %1431 = vmatprep.mubr.bf16.mxu0 0
  %1432 = vmatmul.mubr.bf16.gmra.mxu0 %v1325
  %v1433 = vpop.f32.mrf.mxu0
  %v1434 = vadd.f32 %v73, %v1433
  %v1435 = vpop.f32.mrf.mxu0
  %v1436 = vpop.f32.mrf.mxu0
  %v1437 = vadd.f32 %v73, %v1436
  %v1438 = vpop.f32.mrf.mxu0
  %1439 = vmatprep.mubr.bf16.mxu0 0
  %1440 = vmatmul.mubr.bf16.gmra.mxu0 %v1328
  %v1441 = vpop.f32.mrf.mxu0
  %v1442 = vadd.f32 %v73, %v1441
  %v1443 = vpop.f32.mrf.mxu0
  %v1444 = vpop.f32.mrf.mxu0
  %v1445 = vadd.f32 %v73, %v1444
  %v1446 = vpop.f32.mrf.mxu0
  %1447 = vmatprep.mubr.bf16.mxu0 0
  %1448 = vmatmul.mubr.bf16.gmra.mxu0 %v1331
  %v1449 = vpop.f32.mrf.mxu0
  %v1450 = vadd.f32 %v73, %v1449
  %v1451 = vpop.f32.mrf.mxu0
  %v1452 = vpop.f32.mrf.mxu0
  %v1453 = vadd.f32 %v73, %v1452
  %v1454 = vpop.f32.mrf.mxu0
  %1455 = vmatprep.mubr.bf16.mxu0 0
  %1456 = vmatmul.mubr.bf16.gmra.mxu0 %v1334
  %v1457 = vpop.f32.mrf.mxu0
  %v1458 = vadd.f32 %v73, %v1457
  %v1459 = vpop.f32.mrf.mxu0
  %v1460 = vpop.f32.mrf.mxu0
  %v1461 = vadd.f32 %v73, %v1460
  %v1462 = vpop.f32.mrf.mxu0
  %1463 = vmatprep.mubr.bf16.mxu0 0
  %1464 = vmatmul.mubr.bf16.gmra.mxu0 %v1337
  %v1465 = vpop.f32.mrf.mxu0
  %v1466 = vadd.f32 %v73, %v1465
  %v1467 = vpop.f32.mrf.mxu0
  %v1468 = vpop.f32.mrf.mxu0
  %v1469 = vadd.f32 %v73, %v1468
  %v1470 = vpop.f32.mrf.mxu0
  %1471 = vmatprep.mubr.bf16.mxu0 0
  %1472 = vmatmul.mubr.bf16.gmra.mxu0 %v1340
  %v1473 = vpop.f32.mrf.mxu0
  %v1474 = vadd.f32 %v73, %v1473
  %v1475 = vpop.f32.mrf.mxu0
  %v1476 = vpop.f32.mrf.mxu0
  %v1477 = vadd.f32 %v73, %v1476
  %v1478 = vpop.f32.mrf.mxu0
  %1479 = vmatprep.mubr.bf16.mxu0 0
  %1480 = vmatmul.mubr.bf16.gmra.mxu0 %v1343
  %v1481 = vpop.f32.mrf.mxu0
  %v1482 = vadd.f32 %v73, %v1481
  %v1483 = vpop.f32.mrf.mxu0
  %v1484 = vpop.f32.mrf.mxu0
  %v1485 = vadd.f32 %v73, %v1484
  %v1486 = vpop.f32.mrf.mxu0
  %1487 = vmatprep.mubr.bf16.mxu0 0
  %1488 = vmatmul.mubr.bf16.gmra.mxu0 %v1346
  %v1489 = vpop.f32.mrf.mxu0
  %v1490 = vadd.f32 %v73, %v1489
  %v1491 = vpop.f32.mrf.mxu0
  %v1492 = vpop.f32.mrf.mxu0
  %v1493 = vadd.f32 %v73, %v1492
  %v1494 = vpop.f32.mrf.mxu0
  %1495 = vmatprep.mubr.bf16.mxu0 0
  %1496 = vmatmul.mubr.bf16.gmra.mxu0 %v1349
  %v1497 = vpop.f32.mrf.mxu0
  %v1498 = vadd.f32 %v73, %v1497
  %v1499 = vpop.f32.mrf.mxu0
  %v1500 = vpop.f32.mrf.mxu0
  %v1501 = vadd.f32 %v73, %v1500
  %v1502 = vpop.f32.mrf.mxu0
  %1503 = vmatprep.mubr.bf16.mxu0 0
  %1504 = vmatmul.mubr.bf16.gmra.mxu0 %v1352
  %v1505 = vpop.f32.mrf.mxu0
  %v1506 = vadd.f32 %v73, %v1505
  %v1507 = vpop.f32.mrf.mxu0
  %v1508 = vpop.f32.mrf.mxu0
  %v1509 = vadd.f32 %v73, %v1508
  %v1510 = vpop.f32.mrf.mxu0
  %1511 = vmatprep.mubr.bf16.mxu0 0
  %1512 = vmatmul.mubr.bf16.gmra.mxu0 %v1355
  %v1513 = vpop.f32.mrf.mxu0
  %v1514 = vadd.f32 %v73, %v1513
  %v1515 = vpop.f32.mrf.mxu0
  %v1516 = vpop.f32.mrf.mxu0
  %v1517 = vadd.f32 %v73, %v1516
  %v1518 = vpop.f32.mrf.mxu0
  %1519 = vmatprep.mubr.bf16.mxu0 0
  %1520 = vmatmul.mubr.bf16.gmra.mxu0 %v1358
  %v1521 = vpop.f32.mrf.mxu0
  %v1522 = vadd.f32 %v73, %v1521
  %v1523 = vpop.f32.mrf.mxu0
  %v1524 = vpop.f32.mrf.mxu0
  %v1525 = vadd.f32 %v73, %v1524
  %v1526 = vpop.f32.mrf.mxu0
  %1527 = vmatprep.mubr.bf16.mxu0 0
  %1528 = vmatmul.mubr.bf16.gmra.mxu0 %v1361
  %v1529 = vpop.f32.mrf.mxu0
  %v1530 = vadd.f32 %v73, %v1529
  %v1531 = vpop.f32.mrf.mxu0
  %v1532 = vpop.f32.mrf.mxu0
  %v1533 = vadd.f32 %v73, %v1532
  %v1534 = vpop.f32.mrf.mxu0
  %1535 = vmatprep.mubr.bf16.mxu0 0
  %1536 = vmatmul.mubr.bf16.gmra.mxu0 %v1364
  %v1537 = vpop.f32.mrf.mxu0
  %v1538 = vadd.f32 %v73, %v1537
  %v1539 = vpop.f32.mrf.mxu0
  %v1540 = vpop.f32.mrf.mxu0
  %v1541 = vadd.f32 %v73, %v1540
  %v1542 = vpop.f32.mrf.mxu0
  %1543 = vmatprep.mubr.bf16.mxu0 0
  %1544 = vmatmul.mubr.bf16.gmra.mxu0 %v1367
  %v1545 = vpop.f32.mrf.mxu0
  %v1546 = vadd.f32 %v73, %v1545
  %v1547 = vpop.f32.mrf.mxu0
  %v1548 = vpop.f32.mrf.mxu0
  %v1549 = vadd.f32 %v73, %v1548
  %v1550 = vpop.f32.mrf.mxu0
  %1551 = vmatprep.mubr.bf16.mxu0 0
  %1552 = vmatmul.mubr.bf16.gmra.mxu0 %v1370
  %v1553 = vpop.f32.mrf.mxu0
  %v1554 = vadd.f32 %v73, %v1553
  %v1555 = vpop.f32.mrf.mxu0
  %v1556 = vpop.f32.mrf.mxu0
  %v1557 = vadd.f32 %v73, %v1556
  %v1558 = vpop.f32.mrf.mxu0
  %1559 = vmatprep.mubr.bf16.mxu0 0
  %1560 = vmatmul.mubr.bf16.gmra.mxu0 %v1373
  %v1561 = vpop.f32.mrf.mxu0
  %v1562 = vadd.f32 %v73, %v1561
  %v1563 = vpop.f32.mrf.mxu0
  %v1564 = vpop.f32.mrf.mxu0
  %v1565 = vadd.f32 %v73, %v1564
  %v1566 = vpop.f32.mrf.mxu0
  %1567 = vmatprep.mubr.bf16.mxu0 0
  %1568 = vmatmul.mubr.bf16.gmra.mxu0 %v1376
  %v1569 = vpop.f32.mrf.mxu0
  %v1570 = vadd.f32 %v73, %v1569
  %v1571 = vpop.f32.mrf.mxu0
  %v1572 = vpop.f32.mrf.mxu0
  %v1573 = vadd.f32 %v73, %v1572
  %v1574 = vpop.f32.mrf.mxu0
  %1575 = vmatprep.mubr.bf16.mxu0 0
  %1576 = vmatmul.mubr.bf16.gmra.mxu0 %v1379
  %v1577 = vpop.f32.mrf.mxu0
  %v1578 = vadd.f32 %v73, %v1577
  %v1579 = vpop.f32.mrf.mxu0
  %v1580 = vpop.f32.mrf.mxu0
  %v1581 = vadd.f32 %v73, %v1580
  %v1582 = vpop.f32.mrf.mxu0
  %1583 = vmatprep.mubr.bf16.mxu0 0
  %1584 = vmatmul.mubr.bf16.gmra.mxu0 %v1382
  %v1585 = vpop.f32.mrf.mxu0
  %v1586 = vadd.f32 %v73, %v1585
  %v1587 = vpop.f32.mrf.mxu0
  %v1588 = vpop.f32.mrf.mxu0
  %v1589 = vadd.f32 %v73, %v1588
  %v1590 = vpop.f32.mrf.mxu0
  %1591 = vmatprep.mubr.bf16.mxu0 0
  %1592 = vmatmul.mubr.bf16.gmra.mxu0 %v1385
  %v1593 = vpop.f32.mrf.mxu0
  %v1594 = vadd.f32 %v73, %v1593
  %v1595 = vpop.f32.mrf.mxu0
  %v1596 = vpop.f32.mrf.mxu0
  %v1597 = vadd.f32 %v73, %v1596
  %v1598 = vpop.f32.mrf.mxu0
  %1599 = vmatprep.mubr.bf16.mxu0 0
  %1600 = vmatmul.mubr.bf16.gmra.mxu0 %v1388
  %v1601 = vpop.f32.mrf.mxu0
  %v1602 = vadd.f32 %v73, %v1601
  %v1603 = vpop.f32.mrf.mxu0
  %v1604 = vpop.f32.mrf.mxu0
  %v1605 = vadd.f32 %v73, %v1604
  %v1606 = vpop.f32.mrf.mxu0
  %1607 = vmatprep.mubr.bf16.mxu0 0
  %1608 = vmatmul.mubr.bf16.gmra.mxu0 %v1391
  %v1609 = vpop.f32.mrf.mxu0
  %v1610 = vadd.f32 %v73, %v1609
  %v1611 = vpop.f32.mrf.mxu0
  %v1612 = vpop.f32.mrf.mxu0
  %v1613 = vadd.f32 %v73, %v1612
  %v1614 = vpop.f32.mrf.mxu0
  %1615 = vmatprep.mubr.bf16.mxu0 0
  %1616 = vmatmul.mubr.bf16.gmra.mxu0 %v1394
  %v1617 = vpop.f32.mrf.mxu0
  %v1618 = vadd.f32 %v73, %v1617
  %v1619 = vpop.f32.mrf.mxu0
  %v1620 = vpop.f32.mrf.mxu0
  %v1621 = vadd.f32 %v73, %v1620
  %v1622 = vpop.f32.mrf.mxu0
  %1623 = vmatprep.mubr.bf16.mxu0 0
  %1624 = vmatmul.mubr.bf16.gmra.mxu0 %v1397
  %v1625 = vpop.f32.mrf.mxu0
  %v1626 = vadd.f32 %v73, %v1625
  %v1627 = vpop.f32.mrf.mxu0
  %v1628 = vpop.f32.mrf.mxu0
  %v1629 = vpop.f32.mrf.mxu0
  %1630 = vdwg.mxu0
  %v1631 = vmax.f32 %v1434, 0.0
  %v1632 = vmax.f32 %v1437, 0.0
  %v1633 = vmax.f32 %v1442, 0.0
  %v1634 = vmax.f32 %v1445, 0.0
  %v1635 = vmax.f32 %v1450, 0.0
  %v1636 = vmax.f32 %v1453, 0.0
  %v1637 = vmax.f32 %v1458, 0.0
  %v1638 = vmax.f32 %v1461, 0.0
  %v1639 = vmax.f32 %v1466, 0.0
  %v1640 = vmax.f32 %v1469, 0.0
  %v1641 = vmax.f32 %v1474, 0.0
  %v1642 = vmax.f32 %v1477, 0.0
  %v1643 = vmax.f32 %v1482, 0.0
  %v1644 = vmax.f32 %v1485, 0.0
  %v1645 = vmax.f32 %v1490, 0.0
  %v1646 = vmax.f32 %v1493, 0.0
  %v1647 = vmax.f32 %v1498, 0.0
  %v1648 = vmax.f32 %v1501, 0.0
  %v1649 = vmax.f32 %v1506, 0.0
  %v1650 = vmax.f32 %v1509, 0.0
  %v1651 = vmax.f32 %v1514, 0.0
  %v1652 = vmax.f32 %v1517, 0.0
  %v1653 = vmax.f32 %v1522, 0.0
  %v1654 = vmax.f32 %v1525, 0.0
  %v1655 = vmax.f32 %v1530, 0.0
  %v1656 = vmax.f32 %v1533, 0.0
  %v1657 = vmax.f32 %v1538, 0.0
  %v1658 = vmax.f32 %v1541, 0.0
  %v1659 = vmax.f32 %v1546, 0.0
  %v1660 = vmax.f32 %v1549, 0.0
  %v1661 = vmax.f32 %v1554, 0.0
  %v1662 = vmax.f32 %v1557, 0.0
  %v1663 = vmax.f32 %v1562, 0.0
  %v1664 = vmax.f32 %v1565, 0.0
  %v1665 = vmax.f32 %v1570, 0.0
  %v1666 = vmax.f32 %v1573, 0.0
  %v1667 = vmax.f32 %v1578, 0.0
  %v1668 = vmax.f32 %v1581, 0.0
  %v1669 = vmax.f32 %v1586, 0.0
  %v1670 = vmax.f32 %v1589, 0.0
  %v1671 = vmax.f32 %v1594, 0.0
  %v1672 = vmax.f32 %v1597, 0.0
  %v1673 = vmax.f32 %v1602, 0.0
  %v1674 = vmax.f32 %v1605, 0.0
  %v1675 = vmax.f32 %v1610, 0.0
  %v1676 = vmax.f32 %v1613, 0.0
  %v1677 = vmax.f32 %v1618, 0.0
  %v1678 = vmax.f32 %v1621, 0.0
  %v1679 = vmax.f32 %v1626, 0.0
  %v1680 = vadd.f32 %v1102, %v1631
  %v1681 = vadd.f32 %v1103, %v1632
  %v1682 = vadd.f32 %v1104, %v1633
  %v1683 = vadd.f32 %v1105, %v1634
  %v1684 = vadd.f32 %v1106, %v1635
  %v1685 = vadd.f32 %v1107, %v1636
  %v1686 = vadd.f32 %v1108, %v1637
  %v1687 = vadd.f32 %v1109, %v1638
  %v1688 = vadd.f32 %v1110, %v1639
  %v1689 = vadd.f32 %v1111, %v1640
  %v1690 = vadd.f32 %v1112, %v1641
  %v1691 = vadd.f32 %v1113, %v1642
  %v1692 = vadd.f32 %v1114, %v1643
  %v1693 = vadd.f32 %v1115, %v1644
  %v1694 = vadd.f32 %v1116, %v1645
  %v1695 = vadd.f32 %v1117, %v1646
  %v1696 = vadd.f32 %v1118, %v1647
  %v1697 = vadd.f32 %v1119, %v1648
  %v1698 = vadd.f32 %v1120, %v1649
  %v1699 = vadd.f32 %v1121, %v1650
  %v1700 = vadd.f32 %v1122, %v1651
  %v1701 = vadd.f32 %v1123, %v1652
  %v1702 = vadd.f32 %v1124, %v1653
  %v1703 = vadd.f32 %v1125, %v1654
  %v1704 = vadd.f32 %v1126, %v1655
  %v1705 = vadd.f32 %v1127, %v1656
  %v1706 = vadd.f32 %v1128, %v1657
  %v1707 = vadd.f32 %v1129, %v1658
  %v1708 = vadd.f32 %v1130, %v1659
  %v1709 = vadd.f32 %v1131, %v1660
  %v1710 = vadd.f32 %v1132, %v1661
  %v1711 = vadd.f32 %v1133, %v1662
  %v1712 = vadd.f32 %v1134, %v1663
  %v1713 = vadd.f32 %v1135, %v1664
  %v1714 = vadd.f32 %v1136, %v1665
  %v1715 = vadd.f32 %v1137, %v1666
  %v1716 = vadd.f32 %v1138, %v1667
  %v1717 = vadd.f32 %v1139, %v1668
  %v1718 = vadd.f32 %v1140, %v1669
  %v1719 = vadd.f32 %v1141, %v1670
  %v1720 = vadd.f32 %v1142, %v1671
  %v1721 = vadd.f32 %v1143, %v1672
  %v1722 = vadd.f32 %v1144, %v1673
  %v1723 = vadd.f32 %v1145, %v1674
  %v1724 = vadd.f32 %v1146, %v1675
  %v1725 = vadd.f32 %v1147, %v1676
  %v1726 = vadd.f32 %v1148, %v1677
  %v1727 = vadd.f32 %v1149, %v1678
  %v1728 = vadd.f32 %v1150, %v1679
  %s1729 = scalar_lea.vmem %s0, 588
  %v1730 = vld [vmem:[%s1729] sm:$0xf]
  %v1731 = vld [vmem:[%s1729 + $0x4] sm:$0xf]
  %v1732 = vld [vmem:[%s1729 + $0x8] sm:$0xf]
  %v1733 = vld [vmem:[%s1729 + $0xc] sm:$0xf]
  %v1734 = vld [vmem:[%s1729 + $0x10] sm:$0xf]
  %v1735 = vld [vmem:[%s1729 + $0x14] sm:$0xf]
  %v1736 = vld [vmem:[%s1729 + $0x18] sm:$0xf]
  %v1737 = vld [vmem:[%s1729 + $0x1c] sm:$0xf]
  %v1738 = vld [vmem:[%s1729 + $0x20] sm:$0xf]
  %v1739 = vld [vmem:[%s1729 + $0x24] sm:$0xf]
  %v1740 = vld [vmem:[%s1729 + $0x28] sm:$0xf]
  %v1741 = vld [vmem:[%s1729 + $0x2c] sm:$0xf]
  %v1742 = vld [vmem:[%s1729 + $0x30] sm:$0xf]
  %v1743 = vld [vmem:[%s1729 + $0x34] sm:$0xf]
  %v1744 = vld [vmem:[%s1729 + $0x38] sm:$0xf]
  %v1745 = vld [vmem:[%s1729 + $0x3c] sm:$0xf]
  %v1746 = vld [vmem:[%s1729 + $0x40] sm:$0xf]
  %v1747 = vld [vmem:[%s1729 + $0x44] sm:$0xf]
  %v1748 = vld [vmem:[%s1729 + $0x48] sm:$0xf]
  %v1749 = vld [vmem:[%s1729 + $0x4c] sm:$0xf]
  %v1750 = vld [vmem:[%s1729 + $0x50] sm:$0xf]
  %v1751 = vld [vmem:[%s1729 + $0x54] sm:$0xf]
  %v1752 = vld [vmem:[%s1729 + $0x58] sm:$0xf]
  %v1753 = vld [vmem:[%s1729 + $0x5c] sm:$0xf]
  %v1754 = vld [vmem:[%s1729 + $0x60] sm:$0xf]
  %v1755 = vld [vmem:[%s1729 + $0x64] sm:$0xf]
  %v1756 = vld [vmem:[%s1729 + $0x68] sm:$0xf]
  %v1757 = vld [vmem:[%s1729 + $0x6c] sm:$0xf]
  %v1758 = vld [vmem:[%s1729 + $0x70] sm:$0xf]
  %v1759 = vld [vmem:[%s1729 + $0x74] sm:$0xf]
  %v1760 = vld [vmem:[%s1729 + $0x78] sm:$0xf]
  %v1761 = vld [vmem:[%s1729 + $0x7c] sm:$0xf]
  %v1762 = vld [vmem:[%s1729 + $0x80] sm:$0xf]
  %v1763 = vld [vmem:[%s1729 + $0x84] sm:$0xf]
  %v1764 = vld [vmem:[%s1729 + $0x88] sm:$0xf]
  %v1765 = vld [vmem:[%s1729 + $0x8c] sm:$0xf]
  %v1766 = vld [vmem:[%s1729 + $0x90] sm:$0xf]
  %v1767 = vld [vmem:[%s1729 + $0x94] sm:$0xf]
  %v1768 = vld [vmem:[%s1729 + $0x98] sm:$0xf]
  %v1769 = vld [vmem:[%s1729 + $0x9c] sm:$0xf]
  %v1770 = vld [vmem:[%s1729 + $0xa0] sm:$0xf]
  %v1771 = vld [vmem:[%s1729 + $0xa4] sm:$0xf]
  %v1772 = vld [vmem:[%s1729 + $0xa8] sm:$0xf]
  %v1773 = vld [vmem:[%s1729 + $0xac] sm:$0xf]
  %v1774 = vld [vmem:[%s1729 + $0xb0] sm:$0xf]
  %v1775 = vld [vmem:[%s1729 + $0xb4] sm:$0xf]
  %v1776 = vld [vmem:[%s1729 + $0xb8] sm:$0xf]
  %v1777 = vld [vmem:[%s1729 + $0xbc] sm:$0xf]
  %v1778 = vld [vmem:[%s1729 + $0xc0] sm:$0xf]
  %v1828 = vunpack.c.l.b16 %v1730
  %v1829 = vunpack.c.l.b16 %v1731
  %v1830 = vunpack.c.l.b16 %v1732
  %v1831 = vunpack.c.l.b16 %v1733
  %v1832 = vunpack.c.l.b16 %v1734
  %v1833 = vunpack.c.l.b16 %v1735
  %v1834 = vunpack.c.l.b16 %v1736
  %v1835 = vunpack.c.l.b16 %v1737
  %v1836 = vunpack.c.l.b16 %v1738
  %v1837 = vunpack.c.l.b16 %v1739
  %v1838 = vunpack.c.l.b16 %v1740
  %v1839 = vunpack.c.l.b16 %v1741
  %v1840 = vunpack.c.l.b16 %v1742
  %v1841 = vunpack.c.l.b16 %v1743
  %v1842 = vunpack.c.l.b16 %v1744
  %v1843 = vunpack.c.l.b16 %v1745
  %v1844 = vunpack.c.l.b16 %v1746
  %v1845 = vunpack.c.l.b16 %v1747
  %v1846 = vunpack.c.l.b16 %v1748
  %v1847 = vunpack.c.l.b16 %v1749
  %v1848 = vunpack.c.l.b16 %v1750
  %v1849 = vunpack.c.l.b16 %v1751
  %v1850 = vunpack.c.l.b16 %v1752
  %v1851 = vunpack.c.l.b16 %v1753
  %v1852 = vunpack.c.l.b16 %v1754
  %v1853 = vunpack.c.l.b16 %v1755
  %v1854 = vunpack.c.l.b16 %v1756
  %v1855 = vunpack.c.l.b16 %v1757
  %v1856 = vunpack.c.l.b16 %v1758
  %v1857 = vunpack.c.l.b16 %v1759
  %v1858 = vunpack.c.l.b16 %v1760
  %v1859 = vunpack.c.l.b16 %v1761
  %v1860 = vunpack.c.l.b16 %v1762
  %v1861 = vunpack.c.l.b16 %v1763
  %v1862 = vunpack.c.l.b16 %v1764
  %v1863 = vunpack.c.l.b16 %v1765
  %v1864 = vunpack.c.l.b16 %v1766
  %v1865 = vunpack.c.l.b16 %v1767
  %v1866 = vunpack.c.l.b16 %v1768
  %v1867 = vunpack.c.l.b16 %v1769
  %v1868 = vunpack.c.l.b16 %v1770
  %v1869 = vunpack.c.l.b16 %v1771
  %v1870 = vunpack.c.l.b16 %v1772
  %v1871 = vunpack.c.l.b16 %v1773
  %v1872 = vunpack.c.l.b16 %v1774
  %v1873 = vunpack.c.l.b16 %v1775
  %v1874 = vunpack.c.l.b16 %v1776
  %v1875 = vunpack.c.l.b16 %v1777
  %v1876 = vunpack.c.l.b16 %v1778
  %v1877 = vpack.c.b16 %v1829, %v1828
  %v1878 = vpack.c.b16 %v1831, %v1830
  %v1879 = vpack.c.b16 %v1833, %v1832
  %v1880 = vpack.c.b16 %v1835, %v1834
  %v1881 = vpack.c.b16 %v1837, %v1836
  %v1882 = vpack.c.b16 %v1839, %v1838
  %v1883 = vpack.c.b16 %v1841, %v1840
  %v1884 = vpack.c.b16 %v1843, %v1842
  %v1885 = vpack.c.b16 %v1845, %v1844
  %v1886 = vpack.c.b16 %v1847, %v1846
  %v1887 = vpack.c.b16 %v1849, %v1848
  %v1888 = vpack.c.b16 %v1851, %v1850
  %v1889 = vpack.c.b16 %v1853, %v1852
  %v1890 = vpack.c.b16 %v1855, %v1854
  %v1891 = vpack.c.b16 %v1857, %v1856
  %v1892 = vpack.c.b16 %v1859, %v1858
  %v1893 = vpack.c.b16 %v1861, %v1860
  %v1894 = vpack.c.b16 %v1863, %v1862
  %v1895 = vpack.c.b16 %v1865, %v1864
  %v1896 = vpack.c.b16 %v1867, %v1866
  %v1897 = vpack.c.b16 %v1869, %v1868
  %v1898 = vpack.c.b16 %v1871, %v1870
  %v1899 = vpack.c.b16 %v1873, %v1872
  %v1900 = vpack.c.b16 %v1875, %v1874
  %v1901 = vpack.c.b16 %v1876, %v1876
  %v1903 = vsel %vm209, %v1877, 0
  %v1906 = vsel %vm209, %v1878, 0
  %v1909 = vsel %vm209, %v1879, 0
  %v1912 = vsel %vm209, %v1880, 0
  %v1915 = vsel %vm209, %v1881, 0
  %v1918 = vsel %vm209, %v1882, 0
  %v1921 = vsel %vm209, %v1883, 0
  %v1924 = vsel %vm209, %v1884, 0
  %v1927 = vsel %vm209, %v1885, 0
  %v1930 = vsel %vm209, %v1886, 0
  %v1933 = vsel %vm209, %v1887, 0
  %v1936 = vsel %vm209, %v1888, 0
  %v1939 = vsel %vm209, %v1889, 0
  %v1942 = vsel %vm209, %v1890, 0
  %v1945 = vsel %vm209, %v1891, 0
  %v1948 = vsel %vm209, %v1892, 0
  %v1951 = vsel %vm209, %v1893, 0
  %v1954 = vsel %vm209, %v1894, 0
  %v1957 = vsel %vm209, %v1895, 0
  %v1960 = vsel %vm209, %v1896, 0
  %v1963 = vsel %vm209, %v1897, 0
  %v1966 = vsel %vm209, %v1898, 0
  %v1969 = vsel %vm209, %v1899, 0
  %v1972 = vsel %vm209, %v1900, 0
  %v1975 = vsel %vm209, %v1901, 0
  %1977 = vmatprep.subr.bf16.mxu0 0
  %1978 = vmatpush1.bf16.msra.mxu0 0
  %1979 = vmatprep.subr.bf16.mxu0 0
  %1980 = vmatpush1.bf16.msra.mxu0 0
  %1981 = vmatprep.subr.bf16.mxu0 0
  %1982 = vmatpush1.bf16.msra.mxu0 0
  %1983 = vmatprep.subr.bf16.mxu0 0
  %1984 = vmatpush1.bf16.msra.mxu0 0
  %1985 = vmatprep.subr.bf16.mxu0 0
  %1986 = vmatpush1.bf16.msra.mxu0 0
  %1987 = vmatprep.subr.bf16.mxu0 0
  %1988 = vmatpush1.bf16.msra.mxu0 0
  %1989 = vmatprep.subr.bf16.mxu0 0
  %1990 = vmatpush1.bf16.msra.mxu0 %v290
  %1991 = vmatprep.subr.bf16.mxu0 0
  %1992 = vmatpush1.bf16.msra.mxu0 %v206
  %1993 = vmatprep.subr.bf16.mxu0 0
  %1994 = vmatpush2.bf16.msra.mxu0 0
  %1995 = vmatprep.subr.bf16.mxu0 0
  %1996 = vmatpush2.bf16.msra.mxu0 0
  %1997 = vmatprep.subr.bf16.mxu0 0
  %1998 = vmatpush2.bf16.msra.mxu0 0
  %1999 = vmatprep.subr.bf16.mxu0 0
  %2000 = vmatpush2.bf16.msra.mxu0 0
  %2001 = vmatprep.subr.bf16.mxu0 0
  %2002 = vmatpush2.bf16.msra.mxu0 0
  %2003 = vmatprep.subr.bf16.mxu0 0
  %2004 = vmatpush2.bf16.msra.mxu0 0
  %2005 = vmatprep.subr.bf16.mxu0 0
  %2006 = vmatpush2.bf16.msra.mxu0 0
  %2007 = vmatprep.subr.bf16.mxu0 0
  %2008 = vmatpush2.bf16.msra.mxu0 0
  %2009 = vmatprep.mubr.bf16.mxu0 0
  %2010 = vmatmul.mubr.bf16.gmra.mxu0 %v1903
  %v2011 = vpop.f32.mrf.mxu0
  %v2012 = vadd.f32 %v73, %v2011
  %v2013 = vpop.f32.mrf.mxu0
  %v2014 = vpop.f32.mrf.mxu0
  %v2015 = vadd.f32 %v73, %v2014
  %v2016 = vpop.f32.mrf.mxu0
  %2017 = vmatprep.mubr.bf16.mxu0 0
  %2018 = vmatmul.mubr.bf16.gmra.mxu0 %v1906
  %v2019 = vpop.f32.mrf.mxu0
  %v2020 = vadd.f32 %v73, %v2019
  %v2021 = vpop.f32.mrf.mxu0
  %v2022 = vpop.f32.mrf.mxu0
  %v2023 = vadd.f32 %v73, %v2022
  %v2024 = vpop.f32.mrf.mxu0
  %2025 = vmatprep.mubr.bf16.mxu0 0
  %2026 = vmatmul.mubr.bf16.gmra.mxu0 %v1909
  %v2027 = vpop.f32.mrf.mxu0
  %v2028 = vadd.f32 %v73, %v2027
  %v2029 = vpop.f32.mrf.mxu0
  %v2030 = vpop.f32.mrf.mxu0
  %v2031 = vadd.f32 %v73, %v2030
  %v2032 = vpop.f32.mrf.mxu0
  %2033 = vmatprep.mubr.bf16.mxu0 0
  %2034 = vmatmul.mubr.bf16.gmra.mxu0 %v1912
  %v2035 = vpop.f32.mrf.mxu0
  %v2036 = vadd.f32 %v73, %v2035
  %v2037 = vpop.f32.mrf.mxu0
  %v2038 = vpop.f32.mrf.mxu0
  %v2039 = vadd.f32 %v73, %v2038
  %v2040 = vpop.f32.mrf.mxu0
  %2041 = vmatprep.mubr.bf16.mxu0 0
  %2042 = vmatmul.mubr.bf16.gmra.mxu0 %v1915
  %v2043 = vpop.f32.mrf.mxu0
  %v2044 = vadd.f32 %v73, %v2043
  %v2045 = vpop.f32.mrf.mxu0
  %v2046 = vpop.f32.mrf.mxu0
  %v2047 = vadd.f32 %v73, %v2046
  %v2048 = vpop.f32.mrf.mxu0
  %2049 = vmatprep.mubr.bf16.mxu0 0
  %2050 = vmatmul.mubr.bf16.gmra.mxu0 %v1918
  %v2051 = vpop.f32.mrf.mxu0
  %v2052 = vadd.f32 %v73, %v2051
  %v2053 = vpop.f32.mrf.mxu0
  %v2054 = vpop.f32.mrf.mxu0
  %v2055 = vadd.f32 %v73, %v2054
  %v2056 = vpop.f32.mrf.mxu0
  %2057 = vmatprep.mubr.bf16.mxu0 0
  %2058 = vmatmul.mubr.bf16.gmra.mxu0 %v1921
  %v2059 = vpop.f32.mrf.mxu0
  %v2060 = vadd.f32 %v73, %v2059
  %v2061 = vpop.f32.mrf.mxu0
  %v2062 = vpop.f32.mrf.mxu0
  %v2063 = vadd.f32 %v73, %v2062
  %v2064 = vpop.f32.mrf.mxu0
  %2065 = vmatprep.mubr.bf16.mxu0 0
  %2066 = vmatmul.mubr.bf16.gmra.mxu0 %v1924
  %v2067 = vpop.f32.mrf.mxu0
  %v2068 = vadd.f32 %v73, %v2067
  %v2069 = vpop.f32.mrf.mxu0
  %v2070 = vpop.f32.mrf.mxu0
  %v2071 = vadd.f32 %v73, %v2070
  %v2072 = vpop.f32.mrf.mxu0
  %2073 = vmatprep.mubr.bf16.mxu0 0
  %2074 = vmatmul.mubr.bf16.gmra.mxu0 %v1927
  %v2075 = vpop.f32.mrf.mxu0
  %v2076 = vadd.f32 %v73, %v2075
  %v2077 = vpop.f32.mrf.mxu0
  %v2078 = vpop.f32.mrf.mxu0
  %v2079 = vadd.f32 %v73, %v2078
  %v2080 = vpop.f32.mrf.mxu0
  %2081 = vmatprep.mubr.bf16.mxu0 0
  %2082 = vmatmul.mubr.bf16.gmra.mxu0 %v1930
  %v2083 = vpop.f32.mrf.mxu0
  %v2084 = vadd.f32 %v73, %v2083
  %v2085 = vpop.f32.mrf.mxu0
  %v2086 = vpop.f32.mrf.mxu0
  %v2087 = vadd.f32 %v73, %v2086
  %v2088 = vpop.f32.mrf.mxu0
  %2089 = vmatprep.mubr.bf16.mxu0 0
  %2090 = vmatmul.mubr.bf16.gmra.mxu0 %v1933
  %v2091 = vpop.f32.mrf.mxu0
  %v2092 = vadd.f32 %v73, %v2091
  %v2093 = vpop.f32.mrf.mxu0
  %v2094 = vpop.f32.mrf.mxu0
  %v2095 = vadd.f32 %v73, %v2094
  %v2096 = vpop.f32.mrf.mxu0
  %2097 = vmatprep.mubr.bf16.mxu0 0
  %2098 = vmatmul.mubr.bf16.gmra.mxu0 %v1936
  %v2099 = vpop.f32.mrf.mxu0
  %v2100 = vadd.f32 %v73, %v2099
  %v2101 = vpop.f32.mrf.mxu0
  %v2102 = vpop.f32.mrf.mxu0
  %v2103 = vadd.f32 %v73, %v2102
  %v2104 = vpop.f32.mrf.mxu0
  %2105 = vmatprep.mubr.bf16.mxu0 0
  %2106 = vmatmul.mubr.bf16.gmra.mxu0 %v1939
  %v2107 = vpop.f32.mrf.mxu0
  %v2108 = vadd.f32 %v73, %v2107
  %v2109 = vpop.f32.mrf.mxu0
  %v2110 = vpop.f32.mrf.mxu0
  %v2111 = vadd.f32 %v73, %v2110
  %v2112 = vpop.f32.mrf.mxu0
  %2113 = vmatprep.mubr.bf16.mxu0 0
  %2114 = vmatmul.mubr.bf16.gmra.mxu0 %v1942
  %v2115 = vpop.f32.mrf.mxu0
  %v2116 = vadd.f32 %v73, %v2115
  %v2117 = vpop.f32.mrf.mxu0
  %v2118 = vpop.f32.mrf.mxu0
  %v2119 = vadd.f32 %v73, %v2118
  %v2120 = vpop.f32.mrf.mxu0
  %2121 = vmatprep.mubr.bf16.mxu0 0
  %2122 = vmatmul.mubr.bf16.gmra.mxu0 %v1945
  %v2123 = vpop.f32.mrf.mxu0
  %v2124 = vadd.f32 %v73, %v2123
  %v2125 = vpop.f32.mrf.mxu0
  %v2126 = vpop.f32.mrf.mxu0
  %v2127 = vadd.f32 %v73, %v2126
  %v2128 = vpop.f32.mrf.mxu0
  %2129 = vmatprep.mubr.bf16.mxu0 0
  %2130 = vmatmul.mubr.bf16.gmra.mxu0 %v1948
  %v2131 = vpop.f32.mrf.mxu0
  %v2132 = vadd.f32 %v73, %v2131
  %v2133 = vpop.f32.mrf.mxu0
  %v2134 = vpop.f32.mrf.mxu0
  %v2135 = vadd.f32 %v73, %v2134
  %v2136 = vpop.f32.mrf.mxu0
  %2137 = vmatprep.mubr.bf16.mxu0 0
  %2138 = vmatmul.mubr.bf16.gmra.mxu0 %v1951
  %v2139 = vpop.f32.mrf.mxu0
  %v2140 = vadd.f32 %v73, %v2139
  %v2141 = vpop.f32.mrf.mxu0
  %v2142 = vpop.f32.mrf.mxu0
  %v2143 = vadd.f32 %v73, %v2142
  %v2144 = vpop.f32.mrf.mxu0
  %2145 = vmatprep.mubr.bf16.mxu0 0
  %2146 = vmatmul.mubr.bf16.gmra.mxu0 %v1954
  %v2147 = vpop.f32.mrf.mxu0
  %v2148 = vadd.f32 %v73, %v2147
  %v2149 = vpop.f32.mrf.mxu0
  %v2150 = vpop.f32.mrf.mxu0
  %v2151 = vadd.f32 %v73, %v2150
  %v2152 = vpop.f32.mrf.mxu0
  %2153 = vmatprep.mubr.bf16.mxu0 0
  %2154 = vmatmul.mubr.bf16.gmra.mxu0 %v1957
  %v2155 = vpop.f32.mrf.mxu0
  %v2156 = vadd.f32 %v73, %v2155
  %v2157 = vpop.f32.mrf.mxu0
  %v2158 = vpop.f32.mrf.mxu0
  %v2159 = vadd.f32 %v73, %v2158
  %v2160 = vpop.f32.mrf.mxu0
  %2161 = vmatprep.mubr.bf16.mxu0 0
  %2162 = vmatmul.mubr.bf16.gmra.mxu0 %v1960
  %v2163 = vpop.f32.mrf.mxu0
  %v2164 = vadd.f32 %v73, %v2163
  %v2165 = vpop.f32.mrf.mxu0
  %v2166 = vpop.f32.mrf.mxu0
  %v2167 = vadd.f32 %v73, %v2166
  %v2168 = vpop.f32.mrf.mxu0
  %2169 = vmatprep.mubr.bf16.mxu0 0
  %2170 = vmatmul.mubr.bf16.gmra.mxu0 %v1963
  %v2171 = vpop.f32.mrf.mxu0
  %v2172 = vadd.f32 %v73, %v2171
  %v2173 = vpop.f32.mrf.mxu0
  %v2174 = vpop.f32.mrf.mxu0
  %v2175 = vadd.f32 %v73, %v2174
  %v2176 = vpop.f32.mrf.mxu0
  %2177 = vmatprep.mubr.bf16.mxu0 0
  %2178 = vmatmul.mubr.bf16.gmra.mxu0 %v1966
  %v2179 = vpop.f32.mrf.mxu0
  %v2180 = vadd.f32 %v73, %v2179
  %v2181 = vpop.f32.mrf.mxu0
  %v2182 = vpop.f32.mrf.mxu0
  %v2183 = vadd.f32 %v73, %v2182
  %v2184 = vpop.f32.mrf.mxu0
  %2185 = vmatprep.mubr.bf16.mxu0 0
  %2186 = vmatmul.mubr.bf16.gmra.mxu0 %v1969
  %v2187 = vpop.f32.mrf.mxu0
  %v2188 = vadd.f32 %v73, %v2187
  %v2189 = vpop.f32.mrf.mxu0
  %v2190 = vpop.f32.mrf.mxu0
  %v2191 = vadd.f32 %v73, %v2190
  %v2192 = vpop.f32.mrf.mxu0
  %2193 = vmatprep.mubr.bf16.mxu0 0
  %2194 = vmatmul.mubr.bf16.gmra.mxu0 %v1972
  %v2195 = vpop.f32.mrf.mxu0
  %v2196 = vadd.f32 %v73, %v2195
  %v2197 = vpop.f32.mrf.mxu0
  %v2198 = vpop.f32.mrf.mxu0
  %v2199 = vadd.f32 %v73, %v2198
  %v2200 = vpop.f32.mrf.mxu0
  %2201 = vmatprep.mubr.bf16.mxu0 0
  %2202 = vmatmul.mubr.bf16.gmra.mxu0 %v1975
  %v2203 = vpop.f32.mrf.mxu0
  %v2204 = vadd.f32 %v73, %v2203
  %v2205 = vpop.f32.mrf.mxu0
  %v2206 = vpop.f32.mrf.mxu0
  %v2207 = vpop.f32.mrf.mxu0
  %2208 = vdwg.mxu0
  %v2209 = vmax.f32 %v2012, 0.0
  %v2210 = vmax.f32 %v2015, 0.0
  %v2211 = vmax.f32 %v2020, 0.0
  %v2212 = vmax.f32 %v2023, 0.0
  %v2213 = vmax.f32 %v2028, 0.0
  %v2214 = vmax.f32 %v2031, 0.0
  %v2215 = vmax.f32 %v2036, 0.0
  %v2216 = vmax.f32 %v2039, 0.0
  %v2217 = vmax.f32 %v2044, 0.0
  %v2218 = vmax.f32 %v2047, 0.0
  %v2219 = vmax.f32 %v2052, 0.0
  %v2220 = vmax.f32 %v2055, 0.0
  %v2221 = vmax.f32 %v2060, 0.0
  %v2222 = vmax.f32 %v2063, 0.0
  %v2223 = vmax.f32 %v2068, 0.0
  %v2224 = vmax.f32 %v2071, 0.0
  %v2225 = vmax.f32 %v2076, 0.0
  %v2226 = vmax.f32 %v2079, 0.0
  %v2227 = vmax.f32 %v2084, 0.0
  %v2228 = vmax.f32 %v2087, 0.0
  %v2229 = vmax.f32 %v2092, 0.0
  %v2230 = vmax.f32 %v2095, 0.0
  %v2231 = vmax.f32 %v2100, 0.0
  %v2232 = vmax.f32 %v2103, 0.0
  %v2233 = vmax.f32 %v2108, 0.0
  %v2234 = vmax.f32 %v2111, 0.0
  %v2235 = vmax.f32 %v2116, 0.0
  %v2236 = vmax.f32 %v2119, 0.0
  %v2237 = vmax.f32 %v2124, 0.0
  %v2238 = vmax.f32 %v2127, 0.0
  %v2239 = vmax.f32 %v2132, 0.0
  %v2240 = vmax.f32 %v2135, 0.0
  %v2241 = vmax.f32 %v2140, 0.0
  %v2242 = vmax.f32 %v2143, 0.0
  %v2243 = vmax.f32 %v2148, 0.0
  %v2244 = vmax.f32 %v2151, 0.0
  %v2245 = vmax.f32 %v2156, 0.0
  %v2246 = vmax.f32 %v2159, 0.0
  %v2247 = vmax.f32 %v2164, 0.0
  %v2248 = vmax.f32 %v2167, 0.0
  %v2249 = vmax.f32 %v2172, 0.0
  %v2250 = vmax.f32 %v2175, 0.0
  %v2251 = vmax.f32 %v2180, 0.0
  %v2252 = vmax.f32 %v2183, 0.0
  %v2253 = vmax.f32 %v2188, 0.0
  %v2254 = vmax.f32 %v2191, 0.0
  %v2255 = vmax.f32 %v2196, 0.0
  %v2256 = vmax.f32 %v2199, 0.0
  %v2257 = vmax.f32 %v2204, 0.0
  %v2258 = vadd.f32 %v1680, %v2209
  %v2259 = vadd.f32 %v1681, %v2210
  %v2260 = vadd.f32 %v1682, %v2211
  %v2261 = vadd.f32 %v1683, %v2212
  %v2262 = vadd.f32 %v1684, %v2213
  %v2263 = vadd.f32 %v1685, %v2214
  %v2264 = vadd.f32 %v1686, %v2215
  %v2265 = vadd.f32 %v1687, %v2216
  %v2266 = vadd.f32 %v1688, %v2217
  %v2267 = vadd.f32 %v1689, %v2218
  %v2268 = vadd.f32 %v1690, %v2219
  %v2269 = vadd.f32 %v1691, %v2220
  %v2270 = vadd.f32 %v1692, %v2221
  %v2271 = vadd.f32 %v1693, %v2222
  %v2272 = vadd.f32 %v1694, %v2223
  %v2273 = vadd.f32 %v1695, %v2224
  %v2274 = vadd.f32 %v1696, %v2225
  %v2275 = vadd.f32 %v1697, %v2226
  %v2276 = vadd.f32 %v1698, %v2227
  %v2277 = vadd.f32 %v1699, %v2228
  %v2278 = vadd.f32 %v1700, %v2229
  %v2279 = vadd.f32 %v1701, %v2230
  %v2280 = vadd.f32 %v1702, %v2231
  %v2281 = vadd.f32 %v1703, %v2232
  %v2282 = vadd.f32 %v1704, %v2233
  %v2283 = vadd.f32 %v1705, %v2234
  %v2284 = vadd.f32 %v1706, %v2235
  %v2285 = vadd.f32 %v1707, %v2236
  %v2286 = vadd.f32 %v1708, %v2237
  %v2287 = vadd.f32 %v1709, %v2238
  %v2288 = vadd.f32 %v1710, %v2239
  %v2289 = vadd.f32 %v1711, %v2240
  %v2290 = vadd.f32 %v1712, %v2241
  %v2291 = vadd.f32 %v1713, %v2242
  %v2292 = vadd.f32 %v1714, %v2243
  %v2293 = vadd.f32 %v1715, %v2244
  %v2294 = vadd.f32 %v1716, %v2245
  %v2295 = vadd.f32 %v1717, %v2246
  %v2296 = vadd.f32 %v1718, %v2247
  %v2297 = vadd.f32 %v1719, %v2248
  %v2298 = vadd.f32 %v1720, %v2249
  %v2299 = vadd.f32 %v1721, %v2250
  %v2300 = vadd.f32 %v1722, %v2251
  %v2301 = vadd.f32 %v1723, %v2252
  %v2302 = vadd.f32 %v1724, %v2253
  %v2303 = vadd.f32 %v1725, %v2254
  %v2304 = vadd.f32 %v1726, %v2255
  %v2305 = vadd.f32 %v1727, %v2256
  %v2306 = vadd.f32 %v1728, %v2257
  %v2307 = vmul.f32 %v2258, 0.25
  %v2308 = vmul.f32 %v2259, 0.25
  %v2309 = vmul.f32 %v2260, 0.25
  %v2310 = vmul.f32 %v2261, 0.25
  %v2311 = vmul.f32 %v2262, 0.25
  %v2312 = vmul.f32 %v2263, 0.25
  %v2313 = vmul.f32 %v2264, 0.25
  %v2314 = vmul.f32 %v2265, 0.25
  %v2315 = vmul.f32 %v2266, 0.25
  %v2316 = vmul.f32 %v2267, 0.25
  %v2317 = vmul.f32 %v2268, 0.25
  %v2318 = vmul.f32 %v2269, 0.25
  %v2319 = vmul.f32 %v2270, 0.25
  %v2320 = vmul.f32 %v2271, 0.25
  %v2321 = vmul.f32 %v2272, 0.25
  %v2322 = vmul.f32 %v2273, 0.25
  %v2323 = vmul.f32 %v2274, 0.25
  %v2324 = vmul.f32 %v2275, 0.25
  %v2325 = vmul.f32 %v2276, 0.25
  %v2326 = vmul.f32 %v2277, 0.25
  %v2327 = vmul.f32 %v2278, 0.25
  %v2328 = vmul.f32 %v2279, 0.25
  %v2329 = vmul.f32 %v2280, 0.25
  %v2330 = vmul.f32 %v2281, 0.25
  %v2331 = vmul.f32 %v2282, 0.25
  %v2332 = vmul.f32 %v2283, 0.25
  %v2333 = vmul.f32 %v2284, 0.25
  %v2334 = vmul.f32 %v2285, 0.25
  %v2335 = vmul.f32 %v2286, 0.25
  %v2336 = vmul.f32 %v2287, 0.25
  %v2337 = vmul.f32 %v2288, 0.25
  %v2338 = vmul.f32 %v2289, 0.25
  %v2339 = vmul.f32 %v2290, 0.25
  %v2340 = vmul.f32 %v2291, 0.25
  %v2341 = vmul.f32 %v2292, 0.25
  %v2342 = vmul.f32 %v2293, 0.25
  %v2343 = vmul.f32 %v2294, 0.25
  %v2344 = vmul.f32 %v2295, 0.25
  %v2345 = vmul.f32 %v2296, 0.25
  %v2346 = vmul.f32 %v2297, 0.25
  %v2347 = vmul.f32 %v2298, 0.25
  %v2348 = vmul.f32 %v2299, 0.25
  %v2349 = vmul.f32 %v2300, 0.25
  %v2350 = vmul.f32 %v2301, 0.25
  %v2351 = vmul.f32 %v2302, 0.25
  %v2352 = vmul.f32 %v2303, 0.25
  %v2353 = vmul.f32 %v2304, 0.25
  %v2354 = vmul.f32 %v2305, 0.25
  %v2355 = vmul.f32 %v2306, 0.25
  %v2356 = vpack.c.bf16 %v2308, %v2307
  %v2357 = vpack.c.bf16 %v2310, %v2309
  %v2358 = vpack.c.bf16 %v2312, %v2311
  %v2359 = vpack.c.bf16 %v2314, %v2313
  %v2360 = vpack.c.bf16 %v2316, %v2315
  %v2361 = vpack.c.bf16 %v2318, %v2317
  %v2362 = vpack.c.bf16 %v2320, %v2319
  %v2363 = vpack.c.bf16 %v2322, %v2321
  %v2364 = vpack.c.bf16 %v2324, %v2323
  %v2365 = vpack.c.bf16 %v2326, %v2325
  %v2366 = vpack.c.bf16 %v2328, %v2327
  %v2367 = vpack.c.bf16 %v2330, %v2329
  %v2368 = vpack.c.bf16 %v2332, %v2331
  %v2369 = vpack.c.bf16 %v2334, %v2333
  %v2370 = vpack.c.bf16 %v2336, %v2335
  %v2371 = vpack.c.bf16 %v2338, %v2337
  %v2372 = vpack.c.bf16 %v2340, %v2339
  %v2373 = vpack.c.bf16 %v2342, %v2341
  %v2374 = vpack.c.bf16 %v2344, %v2343
  %v2375 = vpack.c.bf16 %v2346, %v2345
  %v2376 = vpack.c.bf16 %v2348, %v2347
  %v2377 = vpack.c.bf16 %v2350, %v2349
  %v2378 = vpack.c.bf16 %v2352, %v2351
  %v2379 = vpack.c.bf16 %v2354, %v2353
  %v2380 = vpack.c.bf16 %v2355, %v2355
  %v2406 = vunpack.c.l.b16 %v2356
  %v2407 = vunpack.c.h.b16 %v2356
  %v2408 = vunpack.c.l.b16 %v2357
  %v2409 = vunpack.c.h.b16 %v2357
  %v2410 = vunpack.c.l.b16 %v2358
  %v2411 = vunpack.c.h.b16 %v2358
  %v2412 = vunpack.c.l.b16 %v2359
  %v2413 = vunpack.c.h.b16 %v2359
  %v2414 = vunpack.c.l.b16 %v2360
  %v2415 = vunpack.c.h.b16 %v2360
  %v2416 = vunpack.c.l.b16 %v2361
  %v2417 = vunpack.c.h.b16 %v2361
  %v2418 = vunpack.c.l.b16 %v2362
  %v2419 = vunpack.c.h.b16 %v2362
  %v2420 = vunpack.c.l.b16 %v2363
  %v2421 = vunpack.c.h.b16 %v2363
  %v2422 = vunpack.c.l.b16 %v2364
  %v2423 = vunpack.c.h.b16 %v2364
  %v2424 = vunpack.c.l.b16 %v2365
  %v2425 = vunpack.c.h.b16 %v2365
  %v2426 = vunpack.c.l.b16 %v2366
  %v2427 = vunpack.c.h.b16 %v2366
  %v2428 = vunpack.c.l.b16 %v2367
  %v2429 = vunpack.c.h.b16 %v2367
  %v2430 = vunpack.c.l.b16 %v2368
  %v2431 = vunpack.c.h.b16 %v2368
  %v2432 = vunpack.c.l.b16 %v2369
  %v2433 = vunpack.c.h.b16 %v2369
  %v2434 = vunpack.c.l.b16 %v2370
  %v2435 = vunpack.c.h.b16 %v2370
  %v2436 = vunpack.c.l.b16 %v2371
  %v2437 = vunpack.c.h.b16 %v2371
  %v2438 = vunpack.c.l.b16 %v2372
  %v2439 = vunpack.c.h.b16 %v2372
  %v2440 = vunpack.c.l.b16 %v2373
  %v2441 = vunpack.c.h.b16 %v2373
  %v2442 = vunpack.c.l.b16 %v2374
  %v2443 = vunpack.c.h.b16 %v2374
  %v2444 = vunpack.c.l.b16 %v2375
  %v2445 = vunpack.c.h.b16 %v2375
  %v2446 = vunpack.c.l.b16 %v2376
  %v2447 = vunpack.c.h.b16 %v2376
  %v2448 = vunpack.c.l.b16 %v2377
  %v2449 = vunpack.c.h.b16 %v2377
  %v2450 = vunpack.c.l.b16 %v2378
  %v2451 = vunpack.c.h.b16 %v2378
  %v2452 = vunpack.c.l.b16 %v2379
  %v2453 = vunpack.c.h.b16 %v2379
  %v2454 = vunpack.c.l.b16 %v2380
  %v2455 = vpack.c.b16 %v2406, %v2406
  %v2456 = vpack.c.b16 %v2407, %v2407
  %v2457 = vpack.c.b16 %v2408, %v2408
  %v2458 = vpack.c.b16 %v2409, %v2409
  %v2459 = vpack.c.b16 %v2410, %v2410
  %v2460 = vpack.c.b16 %v2411, %v2411
  %v2461 = vpack.c.b16 %v2412, %v2412
  %v2462 = vpack.c.b16 %v2413, %v2413
  %v2463 = vpack.c.b16 %v2414, %v2414
  %v2464 = vpack.c.b16 %v2415, %v2415
  %v2465 = vpack.c.b16 %v2416, %v2416
  %v2466 = vpack.c.b16 %v2417, %v2417
  %v2467 = vpack.c.b16 %v2418, %v2418
  %v2468 = vpack.c.b16 %v2419, %v2419
  %v2469 = vpack.c.b16 %v2420, %v2420
  %v2470 = vpack.c.b16 %v2421, %v2421
  %v2471 = vpack.c.b16 %v2422, %v2422
  %v2472 = vpack.c.b16 %v2423, %v2423
  %v2473 = vpack.c.b16 %v2424, %v2424
  %v2474 = vpack.c.b16 %v2425, %v2425
  %v2475 = vpack.c.b16 %v2426, %v2426
  %v2476 = vpack.c.b16 %v2427, %v2427
  %v2477 = vpack.c.b16 %v2428, %v2428
  %v2478 = vpack.c.b16 %v2429, %v2429
  %v2479 = vpack.c.b16 %v2430, %v2430
  %v2480 = vpack.c.b16 %v2431, %v2431
  %v2481 = vpack.c.b16 %v2432, %v2432
  %v2482 = vpack.c.b16 %v2433, %v2433
  %v2483 = vpack.c.b16 %v2434, %v2434
  %v2484 = vpack.c.b16 %v2435, %v2435
  %v2485 = vpack.c.b16 %v2436, %v2436
  %v2486 = vpack.c.b16 %v2437, %v2437
  %v2487 = vpack.c.b16 %v2438, %v2438
  %v2488 = vpack.c.b16 %v2439, %v2439
  %v2489 = vpack.c.b16 %v2440, %v2440
  %v2490 = vpack.c.b16 %v2441, %v2441
  %v2491 = vpack.c.b16 %v2442, %v2442
  %v2492 = vpack.c.b16 %v2443, %v2443
  %v2493 = vpack.c.b16 %v2444, %v2444
  %v2494 = vpack.c.b16 %v2445, %v2445
  %v2495 = vpack.c.b16 %v2446, %v2446
  %v2496 = vpack.c.b16 %v2447, %v2447
  %v2497 = vpack.c.b16 %v2448, %v2448
  %v2498 = vpack.c.b16 %v2449, %v2449
  %v2499 = vpack.c.b16 %v2450, %v2450
  %v2500 = vpack.c.b16 %v2451, %v2451
  %v2501 = vpack.c.b16 %v2452, %v2452
  %v2502 = vpack.c.b16 %v2453, %v2453
  %v2503 = vpack.c.b16 %v2454, %v2454
  %2553 = vst [vmem:[%s3] sm:$0xf] %v2455
  %2554 = vst [vmem:[%s3 + $0x4] sm:$0xf] %v2456
  %2555 = vst [vmem:[%s3 + $0x8] sm:$0xf] %v2457
  %2556 = vst [vmem:[%s3 + $0xc] sm:$0xf] %v2458
  %2557 = vst [vmem:[%s3 + $0x10] sm:$0xf] %v2459
  %2558 = vst [vmem:[%s3 + $0x14] sm:$0xf] %v2460
  %2559 = vst [vmem:[%s3 + $0x18] sm:$0xf] %v2461
  %2560 = vst [vmem:[%s3 + $0x1c] sm:$0xf] %v2462
  %2561 = vst [vmem:[%s3 + $0x20] sm:$0xf] %v2463
  %2562 = vst [vmem:[%s3 + $0x24] sm:$0xf] %v2464
  %2563 = vst [vmem:[%s3 + $0x28] sm:$0xf] %v2465
  %2564 = vst [vmem:[%s3 + $0x2c] sm:$0xf] %v2466
  %2565 = vst [vmem:[%s3 + $0x30] sm:$0xf] %v2467
  %2566 = vst [vmem:[%s3 + $0x34] sm:$0xf] %v2468
  %2567 = vst [vmem:[%s3 + $0x38] sm:$0xf] %v2469
  %2568 = vst [vmem:[%s3 + $0x3c] sm:$0xf] %v2470
  %2569 = vst [vmem:[%s3 + $0x40] sm:$0xf] %v2471
  %2570 = vst [vmem:[%s3 + $0x44] sm:$0xf] %v2472
  %2571 = vst [vmem:[%s3 + $0x48] sm:$0xf] %v2473
  %2572 = vst [vmem:[%s3 + $0x4c] sm:$0xf] %v2474
  %2573 = vst [vmem:[%s3 + $0x50] sm:$0xf] %v2475
  %2574 = vst [vmem:[%s3 + $0x54] sm:$0xf] %v2476
  %2575 = vst [vmem:[%s3 + $0x58] sm:$0xf] %v2477
  %2576 = vst [vmem:[%s3 + $0x5c] sm:$0xf] %v2478
  %2577 = vst [vmem:[%s3 + $0x60] sm:$0xf] %v2479
  %2578 = vst [vmem:[%s3 + $0x64] sm:$0xf] %v2480
  %2579 = vst [vmem:[%s3 + $0x68] sm:$0xf] %v2481
  %2580 = vst [vmem:[%s3 + $0x6c] sm:$0xf] %v2482
  %2581 = vst [vmem:[%s3 + $0x70] sm:$0xf] %v2483
  %2582 = vst [vmem:[%s3 + $0x74] sm:$0xf] %v2484
  %2583 = vst [vmem:[%s3 + $0x78] sm:$0xf] %v2485
  %2584 = vst [vmem:[%s3 + $0x7c] sm:$0xf] %v2486
  %2585 = vst [vmem:[%s3 + $0x80] sm:$0xf] %v2487
  %2586 = vst [vmem:[%s3 + $0x84] sm:$0xf] %v2488
  %2587 = vst [vmem:[%s3 + $0x88] sm:$0xf] %v2489
  %2588 = vst [vmem:[%s3 + $0x8c] sm:$0xf] %v2490
  %2589 = vst [vmem:[%s3 + $0x90] sm:$0xf] %v2491
  %2590 = vst [vmem:[%s3 + $0x94] sm:$0xf] %v2492
  %2591 = vst [vmem:[%s3 + $0x98] sm:$0xf] %v2493
  %2592 = vst [vmem:[%s3 + $0x9c] sm:$0xf] %v2494
  %2593 = vst [vmem:[%s3 + $0xa0] sm:$0xf] %v2495
  %2594 = vst [vmem:[%s3 + $0xa4] sm:$0xf] %v2496
  %2595 = vst [vmem:[%s3 + $0xa8] sm:$0xf] %v2497
  %2596 = vst [vmem:[%s3 + $0xac] sm:$0xf] %v2498
  %2597 = vst [vmem:[%s3 + $0xb0] sm:$0xf] %v2499
  %2598 = vst [vmem:[%s3 + $0xb4] sm:$0xf] %v2500
  %2599 = vst [vmem:[%s3 + $0xb8] sm:$0xf] %v2501
  %2600 = vst [vmem:[%s3 + $0xbc] sm:$0xf] %v2502
  %2601 = vst [vmem:[%s3 + $0xc0] sm:$0xf] %v2503
  // Predicated region
  $region14: #{lenet5_forward.3} parent=0 // pred_check
    _
  $region15: #{lenet5_forward.3} parent=0 // pred_check_branch
    %2603 = sbr.rel (0) target = $region17
  $region16: #{lenet5_forward.3} parent=0 // pred_region
    _
  $region17: #{lenet5_forward.3} parent=0 // pred_fallthru
    _
  // Predicated region
  $region18: #{lenet5_forward.3} parent=0 // pred_check
    _
  $region19: #{lenet5_forward.3} parent=0 // pred_check_branch
    %2605 = sbr.rel (0) target = $region21
  $region20: #{lenet5_forward.3} parent=0 // pred_region
    _
  $region21: #{lenet5_forward.3} parent=0 // pred_fallthru
    _

// kernel: lenet5_forward.4
$region0: #{lenet5_forward.4}
  #allocation0 [shape = 'u32[]', space=smem, size = 0x4, offset = 0x4, fixed_abs, tag = 'smem constant byte address 0x4 - core index']
  #allocation1 [shape = 'u32[144,128]{1,0:T(1,128)}', space=vmem, size = 0x12000, scoped, tag = 'internal scratch']
  %s0 = inlined_call_operand.vmem [shape: bf16[4,50,150], index: 0, kind: input, shape index: {}]
  %s1 = inlined_call_operand.vmem [shape: bf16[150,128], index: 1, kind: input, shape index: {}]
  %s2 = inlined_call_operand.vmem [shape: f32[1,128], index: 2, kind: input, shape index: {}]
  %s3 = inlined_call_operand.vmem [shape: bf16[50,128], index: 3, kind: output, shape index: {}]
  %s4 = sld [smem:[#allocation0]]
  $region22: #{lenet5_forward.4} parent=0
    _
  %s6 = ssub.s32 1, %s4
  %s7 = scalar_select 0, %s6, %s4
  // Predicated region
  $region2: #{lenet5_forward.4} parent=0 // pred_check
    _
  $region3: #{lenet5_forward.4} parent=0 // pred_check_branch
    %9 = sbr.rel (0) target = $region5
  $region4: #{lenet5_forward.4} parent=0 // pred_region
    _
  $region5: #{lenet5_forward.4} parent=0 // pred_fallthru
    _
  // Predicated region
  $region6: #{lenet5_forward.4} parent=0 // pred_check
    _
  $region7: #{lenet5_forward.4} parent=0 // pred_check_branch
    %11 = sbr.rel (0) target = $region9
  $region8: #{lenet5_forward.4} parent=0 // pred_region
    _
  $region9: #{lenet5_forward.4} parent=0 // pred_fallthru
    _
  // Predicated region
  $region10: #{lenet5_forward.4} parent=0 // pred_check
    _
  $region11: #{lenet5_forward.4} parent=0 // pred_check_branch
    %13 = sbr.rel (0) target = $region13
  $region12: #{lenet5_forward.4} parent=0 // pred_region
    _
  $region13: #{lenet5_forward.4} parent=0 // pred_fallthru
    _
  %v15 = vld [vmem:[%s1] sm:$0xf]
  %v16 = vld [vmem:[%s1 + $0x4] sm:$0xf]
  %v17 = vld [vmem:[%s1 + $0x8] sm:$0xf]
  %v18 = vld [vmem:[%s1 + $0xc] sm:$0xf]
  %v19 = vld [vmem:[%s1 + $0x10] sm:$0xf]
  %v20 = vld [vmem:[%s1 + $0x14] sm:$0xf]
  %v21 = vld [vmem:[%s1 + $0x18] sm:$0xf]
  %v22 = vld [vmem:[%s1 + $0x1c] sm:$0xf]
  %v23 = vld [vmem:[%s1 + $0x20] sm:$0xf]
  %v24 = vld [vmem:[%s1 + $0x24] sm:$0xf]
  %v25 = vld [vmem:[%s1 + $0x28] sm:$0xf]
  %v26 = vld [vmem:[%s1 + $0x2c] sm:$0xf]
  %v27 = vld [vmem:[%s1 + $0x30] sm:$0xf]
  %v28 = vld [vmem:[%s1 + $0x34] sm:$0xf]
  %v29 = vld [vmem:[%s1 + $0x38] sm:$0xf]
  %v30 = vld [vmem:[%s1 + $0x3c] sm:$0xf]
  %v31 = vld [vmem:[%s1 + $0x40] sm:$0xf]
  %v32 = vld [vmem:[%s1 + $0x44] sm:$0xf]
  %v33 = vld [vmem:[%s1 + $0x48] sm:$0x7]
  %v34 = vld [vmem:[%s2] sm:$0x1]
  %v35 = vld [vmem:[%s0] sm:$0xff]
  %v36 = vld [vmem:[%s0 + $0x8] sm:$0xff]
  %v37 = vld [vmem:[%s0 + $0x10] sm:$0xff]
  %v38 = vld [vmem:[%s0 + $0x18] sm:$0xff]
  %v39 = vld [vmem:[%s0 + $0x20] sm:$0xff]
  %v40 = vld [vmem:[%s0 + $0x28] sm:$0xff]
  %v41 = vld [vmem:[%s0 + $0x30] sm:$0x11]
  %v43 = vlaneseq
  %v44 = vshrl.u32 %v43, 7
  %v45 = vsub.s32 0, %v44
  %v46 = vrot.slane %v34, %v45
  %v55 = vunpack.c.l.b16 %v35
  %v56 = vunpack.c.h.b16 %v35
  %v57 = vunpack.c.l.b16 %v36
  %v58 = vunpack.c.h.b16 %v36
  %v59 = vunpack.c.l.b16 %v37
  %v60 = vunpack.c.h.b16 %v37
  %v61 = vunpack.c.l.b16 %v38
  %v62 = vunpack.c.h.b16 %v38
  %v63 = vunpack.c.l.b16 %v39
  %v64 = vunpack.c.h.b16 %v39
  %v65 = vunpack.c.l.b16 %v40
  %v66 = vunpack.c.h.b16 %v40
  %v67 = vunpack.c.l.b16 %v41
  %v68 = vunpack.c.h.b16 %v41
  %v69 = vpack.c.b16 %v57, %v55
  %v70 = vpack.c.b16 %v58, %v56
  %v71 = vpack.c.b16 %v61, %v59
  %v72 = vpack.c.b16 %v62, %v60
  %v73 = vpack.c.b16 %v65, %v63
  %v74 = vpack.c.b16 %v66, %v64
  %v75 = vpack.c.b16 %v67, %v67
  %v76 = vpack.c.b16 %v68, %v68
  %v100 = vunpack.c.l.b16 %v15
  %v101 = vunpack.c.l.b16 %v16
  %v102 = vunpack.c.l.b16 %v17
  %v103 = vunpack.c.l.b16 %v18
  %v104 = vunpack.c.l.b16 %v19
  %v105 = vunpack.c.l.b16 %v20
  %v106 = vunpack.c.l.b16 %v21
  %v107 = vunpack.c.l.b16 %v22
  %v108 = vunpack.c.l.b16 %v23
  %v109 = vunpack.c.l.b16 %v24
  %v110 = vunpack.c.l.b16 %v25
  %v111 = vunpack.c.l.b16 %v26
  %v112 = vunpack.c.l.b16 %v27
  %v113 = vunpack.c.l.b16 %v28
  %v114 = vunpack.c.l.b16 %v29
  %v115 = vunpack.c.l.b16 %v30
  %v116 = vunpack.c.l.b16 %v31
  %v117 = vunpack.c.l.b16 %v32
  %v118 = vunpack.c.l.b16 %v33
  %v119 = vpack.c.b16 %v101, %v100
  %v120 = vpack.c.b16 %v103, %v102
  %v121 = vpack.c.b16 %v105, %v104
  %v122 = vpack.c.b16 %v107, %v106
  %v123 = vpack.c.b16 %v109, %v108
  %v124 = vpack.c.b16 %v111, %v110
  %v125 = vpack.c.b16 %v113, %v112
  %v126 = vpack.c.b16 %v115, %v114
  %v127 = vpack.c.b16 %v117, %v116
  %v128 = vpack.c.b16 %v118, %v118
  %vm138 = vcmask 179200
  %v140 = vsel %vm138, %v70, 0
  %v143 = vsel %vm138, %v72, 0
  %v146 = vsel %vm138, %v74, 0
  %v149 = vsel %vm138, %v76, 0
  %vm151 = vcmask 1042432
  %v153 = vsel %vm151, %v128, 0
  %155 = vmatprep.subr.bf16.mxu0 0
  %156 = vmatpush1.bf16.msra.mxu0 %v126
  %157 = vmatprep.subr.bf16.mxu0 0
  %158 = vmatpush1.bf16.msra.mxu0 %v125
  %159 = vmatprep.subr.bf16.mxu0 0
  %160 = vmatpush1.bf16.msra.mxu0 %v124
  %161 = vmatprep.subr.bf16.mxu0 0
  %162 = vmatpush1.bf16.msra.mxu0 %v123
  %163 = vmatprep.subr.bf16.mxu0 0
  %164 = vmatpush1.bf16.msra.mxu0 %v122
  %165 = vmatprep.subr.bf16.mxu0 0
  %166 = vmatpush1.bf16.msra.mxu0 %v121
  %167 = vmatprep.subr.bf16.mxu0 0
  %168 = vmatpush1.bf16.msra.mxu0 %v120
  %169 = vmatprep.subr.bf16.mxu0 0
  %170 = vmatpush1.bf16.msra.mxu0 %v119
  %171 = vmatprep.subr.bf16.mxu0 0
  %172 = vmatpush2.bf16.msra.mxu0 0
  %173 = vmatprep.subr.bf16.mxu0 0
  %174 = vmatpush2.bf16.msra.mxu0 0
  %175 = vmatprep.subr.bf16.mxu0 0
  %176 = vmatpush2.bf16.msra.mxu0 0
  %177 = vmatprep.subr.bf16.mxu0 0
  %178 = vmatpush2.bf16.msra.mxu0 0
  %179 = vmatprep.subr.bf16.mxu0 0
  %180 = vmatpush2.bf16.msra.mxu0 0
  %181 = vmatprep.subr.bf16.mxu0 0
  %182 = vmatpush2.bf16.msra.mxu0 0
  %183 = vmatprep.subr.bf16.mxu0 0
  %184 = vmatpush2.bf16.msra.mxu0 %v153
  %185 = vmatprep.subr.bf16.mxu0 0
  %186 = vmatpush2.bf16.msra.mxu0 %v127
  %187 = vmatprep.mubr.bf16.mxu0 %v140
  %188 = vmatmul.mubr.bf16.gmra.mxu0 %v69
  %v189 = vpop.f32.mrf.mxu0
  %v190 = vadd.f32 %v46, %v189
  %v191 = vpop.f32.mrf.mxu0
  %v192 = vpop.f32.mrf.mxu0
  %v193 = vadd.f32 %v46, %v192
  %v194 = vpop.f32.mrf.mxu0
  %195 = vmatprep.mubr.bf16.mxu0 %v143
  %196 = vmatmul.mubr.bf16.gmra.mxu0 %v71
  %v197 = vpop.f32.mrf.mxu0
  %v198 = vadd.f32 %v46, %v197
  %v199 = vpop.f32.mrf.mxu0
  %v200 = vpop.f32.mrf.mxu0
  %v201 = vadd.f32 %v46, %v200
  %v202 = vpop.f32.mrf.mxu0
  %203 = vmatprep.mubr.bf16.mxu0 %v146
  %204 = vmatmul.mubr.bf16.gmra.mxu0 %v73
  %v205 = vpop.f32.mrf.mxu0
  %v206 = vadd.f32 %v46, %v205
  %v207 = vpop.f32.mrf.mxu0
  %v208 = vpop.f32.mrf.mxu0
  %v209 = vadd.f32 %v46, %v208
  %v210 = vpop.f32.mrf.mxu0
  %211 = vmatprep.mubr.bf16.mxu0 %v149
  %212 = vmatmul.mubr.bf16.gmra.mxu0 %v75
  %v213 = vpop.f32.mrf.mxu0
  %v214 = vadd.f32 %v46, %v213
  %v215 = vpop.f32.mrf.mxu0
  %v216 = vpop.f32.mrf.mxu0
  %v217 = vpop.f32.mrf.mxu0
  %218 = vdwg.mxu0
  %v219 = vmax.f32 %v190, 0.0
  %v220 = vmax.f32 %v193, 0.0
  %v221 = vmax.f32 %v198, 0.0
  %v222 = vmax.f32 %v201, 0.0
  %v223 = vmax.f32 %v206, 0.0
  %v224 = vmax.f32 %v209, 0.0
  %v225 = vmax.f32 %v214, 0.0
  %s226 = scalar_lea.vmem %s0, 56
  %v227 = vld [vmem:[%s226] sm:$0xff]
  %v228 = vld [vmem:[%s226 + $0x8] sm:$0xff]
  %v229 = vld [vmem:[%s226 + $0x10] sm:$0xff]
  %v230 = vld [vmem:[%s226 + $0x18] sm:$0xff]
  %v231 = vld [vmem:[%s226 + $0x20] sm:$0xff]
  %v232 = vld [vmem:[%s226 + $0x28] sm:$0xff]
  %v233 = vld [vmem:[%s226 + $0x30] sm:$0x11]
  %v241 = vunpack.c.l.b16 %v227
  %v242 = vunpack.c.h.b16 %v227
  %v243 = vunpack.c.l.b16 %v228
  %v244 = vunpack.c.h.b16 %v228
  %v245 = vunpack.c.l.b16 %v229
  %v246 = vunpack.c.h.b16 %v229
  %v247 = vunpack.c.l.b16 %v230
  %v248 = vunpack.c.h.b16 %v230
  %v249 = vunpack.c.l.b16 %v231
  %v250 = vunpack.c.h.b16 %v231
  %v251 = vunpack.c.l.b16 %v232
  %v252 = vunpack.c.h.b16 %v232
  %v253 = vunpack.c.l.b16 %v233
  %v254 = vunpack.c.h.b16 %v233
  %v255 = vpack.c.b16 %v243, %v241
  %v256 = vpack.c.b16 %v244, %v242
  %v257 = vpack.c.b16 %v247, %v245
  %v258 = vpack.c.b16 %v248, %v246
  %v259 = vpack.c.b16 %v251, %v249
  %v260 = vpack.c.b16 %v252, %v250
  %v261 = vpack.c.b16 %v253, %v253
  %v262 = vpack.c.b16 %v254, %v254
  %v268 = vsel %vm138, %v256, 0
  %v271 = vsel %vm138, %v258, 0
  %v274 = vsel %vm138, %v260, 0
  %v277 = vsel %vm138, %v262, 0
  %279 = vmatprep.subr.bf16.mxu0 0
  %280 = vmatpush1.bf16.msra.mxu0 %v126
  %281 = vmatprep.subr.bf16.mxu0 0
  %282 = vmatpush1.bf16.msra.mxu0 %v125
  %283 = vmatprep.subr.bf16.mxu0 0
  %284 = vmatpush1.bf16.msra.mxu0 %v124
  %285 = vmatprep.subr.bf16.mxu0 0
  %286 = vmatpush1.bf16.msra.mxu0 %v123
  %287 = vmatprep.subr.bf16.mxu0 0
  %288 = vmatpush1.bf16.msra.mxu0 %v122
  %289 = vmatprep.subr.bf16.mxu0 0
  %290 = vmatpush1.bf16.msra.mxu0 %v121
  %291 = vmatprep.subr.bf16.mxu0 0
  %292 = vmatpush1.bf16.msra.mxu0 %v120
  %293 = vmatprep.subr.bf16.mxu0 0
  %294 = vmatpush1.bf16.msra.mxu0 %v119
  %295 = vmatprep.subr.bf16.mxu0 0
  %296 = vmatpush2.bf16.msra.mxu0 0
  %297 = vmatprep.subr.bf16.mxu0 0
  %298 = vmatpush2.bf16.msra.mxu0 0
  %299 = vmatprep.subr.bf16.mxu0 0
  %300 = vmatpush2.bf16.msra.mxu0 0
  %301 = vmatprep.subr.bf16.mxu0 0
  %302 = vmatpush2.bf16.msra.mxu0 0
  %303 = vmatprep.subr.bf16.mxu0 0
  %304 = vmatpush2.bf16.msra.mxu0 0
  %305 = vmatprep.subr.bf16.mxu0 0
  %306 = vmatpush2.bf16.msra.mxu0 0
  %307 = vmatprep.subr.bf16.mxu0 0
  %308 = vmatpush2.bf16.msra.mxu0 %v153
  %309 = vmatprep.subr.bf16.mxu0 0
  %310 = vmatpush2.bf16.msra.mxu0 %v127
  %311 = vmatprep.mubr.bf16.mxu0 %v268
  %312 = vmatmul.mubr.bf16.gmra.mxu0 %v255
  %v313 = vpop.f32.mrf.mxu0
  %v314 = vadd.f32 %v46, %v313
  %v315 = vpop.f32.mrf.mxu0
  %v316 = vpop.f32.mrf.mxu0
  %v317 = vadd.f32 %v46, %v316
  %v318 = vpop.f32.mrf.mxu0
  %319 = vmatprep.mubr.bf16.mxu0 %v271
  %320 = vmatmul.mubr.bf16.gmra.mxu0 %v257
  %v321 = vpop.f32.mrf.mxu0
  %v322 = vadd.f32 %v46, %v321
  %v323 = vpop.f32.mrf.mxu0
  %v324 = vpop.f32.mrf.mxu0
  %v325 = vadd.f32 %v46, %v324
  %v326 = vpop.f32.mrf.mxu0
  %327 = vmatprep.mubr.bf16.mxu0 %v274
  %328 = vmatmul.mubr.bf16.gmra.mxu0 %v259
  %v329 = vpop.f32.mrf.mxu0
  %v330 = vadd.f32 %v46, %v329
  %v331 = vpop.f32.mrf.mxu0
  %v332 = vpop.f32.mrf.mxu0
  %v333 = vadd.f32 %v46, %v332
  %v334 = vpop.f32.mrf.mxu0
  %335 = vmatprep.mubr.bf16.mxu0 %v277
  %336 = vmatmul.mubr.bf16.gmra.mxu0 %v261
  %v337 = vpop.f32.mrf.mxu0
  %v338 = vadd.f32 %v46, %v337
  %v339 = vpop.f32.mrf.mxu0
  %v340 = vpop.f32.mrf.mxu0
  %v341 = vpop.f32.mrf.mxu0
  %342 = vdwg.mxu0
  %v343 = vmax.f32 %v314, 0.0
  %v344 = vmax.f32 %v317, 0.0
  %v345 = vmax.f32 %v322, 0.0
  %v346 = vmax.f32 %v325, 0.0
  %v347 = vmax.f32 %v330, 0.0
  %v348 = vmax.f32 %v333, 0.0
  %v349 = vmax.f32 %v338, 0.0
  %v350 = vadd.f32 %v219, %v343
  %v351 = vadd.f32 %v220, %v344
  %v352 = vadd.f32 %v221, %v345
  %v353 = vadd.f32 %v222, %v346
  %v354 = vadd.f32 %v223, %v347
  %v355 = vadd.f32 %v224, %v348
  %v356 = vadd.f32 %v225, %v349
  %s357 = scalar_lea.vmem %s0, 112
  %v358 = vld [vmem:[%s357] sm:$0xff]
  %v359 = vld [vmem:[%s357 + $0x8] sm:$0xff]
  %v360 = vld [vmem:[%s357 + $0x10] sm:$0xff]
  %v361 = vld [vmem:[%s357 + $0x18] sm:$0xff]
  %v362 = vld [vmem:[%s357 + $0x20] sm:$0xff]
  %v363 = vld [vmem:[%s357 + $0x28] sm:$0xff]
  %v364 = vld [vmem:[%s357 + $0x30] sm:$0x11]
  %v372 = vunpack.c.l.b16 %v358
  %v373 = vunpack.c.h.b16 %v358
  %v374 = vunpack.c.l.b16 %v359
  %v375 = vunpack.c.h.b16 %v359
  %v376 = vunpack.c.l.b16 %v360
  %v377 = vunpack.c.h.b16 %v360
  %v378 = vunpack.c.l.b16 %v361
  %v379 = vunpack.c.h.b16 %v361
  %v380 = vunpack.c.l.b16 %v362
  %v381 = vunpack.c.h.b16 %v362
  %v382 = vunpack.c.l.b16 %v363
  %v383 = vunpack.c.h.b16 %v363
  %v384 = vunpack.c.l.b16 %v364
  %v385 = vunpack.c.h.b16 %v364
  %v386 = vpack.c.b16 %v374, %v372
  %v387 = vpack.c.b16 %v375, %v373
  %v388 = vpack.c.b16 %v378, %v376
  %v389 = vpack.c.b16 %v379, %v377
  %v390 = vpack.c.b16 %v382, %v380
  %v391 = vpack.c.b16 %v383, %v381
  %v392 = vpack.c.b16 %v384, %v384
  %v393 = vpack.c.b16 %v385, %v385
  %v399 = vsel %vm138, %v387, 0
  %v402 = vsel %vm138, %v389, 0
  %v405 = vsel %vm138, %v391, 0
  %v408 = vsel %vm138, %v393, 0
  %410 = vmatprep.subr.bf16.mxu0 0
  %411 = vmatpush1.bf16.msra.mxu0 %v126
  %412 = vmatprep.subr.bf16.mxu0 0
  %413 = vmatpush1.bf16.msra.mxu0 %v125
  %414 = vmatprep.subr.bf16.mxu0 0
  %415 = vmatpush1.bf16.msra.mxu0 %v124
  %416 = vmatprep.subr.bf16.mxu0 0
  %417 = vmatpush1.bf16.msra.mxu0 %v123
  %418 = vmatprep.subr.bf16.mxu0 0
  %419 = vmatpush1.bf16.msra.mxu0 %v122
  %420 = vmatprep.subr.bf16.mxu0 0
  %421 = vmatpush1.bf16.msra.mxu0 %v121
  %422 = vmatprep.subr.bf16.mxu0 0
  %423 = vmatpush1.bf16.msra.mxu0 %v120
  %424 = vmatprep.subr.bf16.mxu0 0
  %425 = vmatpush1.bf16.msra.mxu0 %v119
  %426 = vmatprep.subr.bf16.mxu0 0
  %427 = vmatpush2.bf16.msra.mxu0 0
  %428 = vmatprep.subr.bf16.mxu0 0
  %429 = vmatpush2.bf16.msra.mxu0 0
  %430 = vmatprep.subr.bf16.mxu0 0
  %431 = vmatpush2.bf16.msra.mxu0 0
  %432 = vmatprep.subr.bf16.mxu0 0
  %433 = vmatpush2.bf16.msra.mxu0 0
  %434 = vmatprep.subr.bf16.mxu0 0
  %435 = vmatpush2.bf16.msra.mxu0 0
  %436 = vmatprep.subr.bf16.mxu0 0
  %437 = vmatpush2.bf16.msra.mxu0 0
  %438 = vmatprep.subr.bf16.mxu0 0
  %439 = vmatpush2.bf16.msra.mxu0 %v153
  %440 = vmatprep.subr.bf16.mxu0 0
  %441 = vmatpush2.bf16.msra.mxu0 %v127
  %442 = vmatprep.mubr.bf16.mxu0 %v399
  %443 = vmatmul.mubr.bf16.gmra.mxu0 %v386
  %v444 = vpop.f32.mrf.mxu0
  %v445 = vadd.f32 %v46, %v444
  %v446 = vpop.f32.mrf.mxu0
  %v447 = vpop.f32.mrf.mxu0
  %v448 = vadd.f32 %v46, %v447
  %v449 = vpop.f32.mrf.mxu0
  %450 = vmatprep.mubr.bf16.mxu0 %v402
  %451 = vmatmul.mubr.bf16.gmra.mxu0 %v388
  %v452 = vpop.f32.mrf.mxu0
  %v453 = vadd.f32 %v46, %v452
  %v454 = vpop.f32.mrf.mxu0
  %v455 = vpop.f32.mrf.mxu0
  %v456 = vadd.f32 %v46, %v455
  %v457 = vpop.f32.mrf.mxu0
  %458 = vmatprep.mubr.bf16.mxu0 %v405
  %459 = vmatmul.mubr.bf16.gmra.mxu0 %v390
  %v460 = vpop.f32.mrf.mxu0
  %v461 = vadd.f32 %v46, %v460
  %v462 = vpop.f32.mrf.mxu0
  %v463 = vpop.f32.mrf.mxu0
  %v464 = vadd.f32 %v46, %v463
  %v465 = vpop.f32.mrf.mxu0
  %466 = vmatprep.mubr.bf16.mxu0 %v408
  %467 = vmatmul.mubr.bf16.gmra.mxu0 %v392
  %v468 = vpop.f32.mrf.mxu0
  %v469 = vadd.f32 %v46, %v468
  %v470 = vpop.f32.mrf.mxu0
  %v471 = vpop.f32.mrf.mxu0
  %v472 = vpop.f32.mrf.mxu0
  %473 = vdwg.mxu0
  %v474 = vmax.f32 %v445, 0.0
  %v475 = vmax.f32 %v448, 0.0
  %v476 = vmax.f32 %v453, 0.0
  %v477 = vmax.f32 %v456, 0.0
  %v478 = vmax.f32 %v461, 0.0
  %v479 = vmax.f32 %v464, 0.0
  %v480 = vmax.f32 %v469, 0.0
  %v481 = vadd.f32 %v350, %v474
  %v482 = vadd.f32 %v351, %v475
  %v483 = vadd.f32 %v352, %v476
  %v484 = vadd.f32 %v353, %v477
  %v485 = vadd.f32 %v354, %v478
  %v486 = vadd.f32 %v355, %v479
  %v487 = vadd.f32 %v356, %v480
  %s488 = scalar_lea.vmem %s0, 168
  %v489 = vld [vmem:[%s488] sm:$0xff]
  %v490 = vld [vmem:[%s488 + $0x8] sm:$0xff]
  %v491 = vld [vmem:[%s488 + $0x10] sm:$0xff]
  %v492 = vld [vmem:[%s488 + $0x18] sm:$0xff]
  %v493 = vld [vmem:[%s488 + $0x20] sm:$0xff]
  %v494 = vld [vmem:[%s488 + $0x28] sm:$0xff]
  %v495 = vld [vmem:[%s488 + $0x30] sm:$0x11]
  %v503 = vunpack.c.l.b16 %v489
  %v504 = vunpack.c.h.b16 %v489
  %v505 = vunpack.c.l.b16 %v490
  %v506 = vunpack.c.h.b16 %v490
  %v507 = vunpack.c.l.b16 %v491
  %v508 = vunpack.c.h.b16 %v491
  %v509 = vunpack.c.l.b16 %v492
  %v510 = vunpack.c.h.b16 %v492
  %v511 = vunpack.c.l.b16 %v493
  %v512 = vunpack.c.h.b16 %v493
  %v513 = vunpack.c.l.b16 %v494
  %v514 = vunpack.c.h.b16 %v494
  %v515 = vunpack.c.l.b16 %v495
  %v516 = vunpack.c.h.b16 %v495
  %v517 = vpack.c.b16 %v505, %v503
  %v518 = vpack.c.b16 %v506, %v504
  %v519 = vpack.c.b16 %v509, %v507
  %v520 = vpack.c.b16 %v510, %v508
  %v521 = vpack.c.b16 %v513, %v511
  %v522 = vpack.c.b16 %v514, %v512
  %v523 = vpack.c.b16 %v515, %v515
  %v524 = vpack.c.b16 %v516, %v516
  %v530 = vsel %vm138, %v518, 0
  %v533 = vsel %vm138, %v520, 0
  %v536 = vsel %vm138, %v522, 0
  %v539 = vsel %vm138, %v524, 0
  %541 = vmatprep.subr.bf16.mxu0 0
  %542 = vmatpush1.bf16.msra.mxu0 %v126
  %543 = vmatprep.subr.bf16.mxu0 0
  %544 = vmatpush1.bf16.msra.mxu0 %v125
  %545 = vmatprep.subr.bf16.mxu0 0
  %546 = vmatpush1.bf16.msra.mxu0 %v124
  %547 = vmatprep.subr.bf16.mxu0 0
  %548 = vmatpush1.bf16.msra.mxu0 %v123
  %549 = vmatprep.subr.bf16.mxu0 0
  %550 = vmatpush1.bf16.msra.mxu0 %v122
  %551 = vmatprep.subr.bf16.mxu0 0
  %552 = vmatpush1.bf16.msra.mxu0 %v121
  %553 = vmatprep.subr.bf16.mxu0 0
  %554 = vmatpush1.bf16.msra.mxu0 %v120
  %555 = vmatprep.subr.bf16.mxu0 0
  %556 = vmatpush1.bf16.msra.mxu0 %v119
  %557 = vmatprep.subr.bf16.mxu0 0
  %558 = vmatpush2.bf16.msra.mxu0 0
  %559 = vmatprep.subr.bf16.mxu0 0
  %560 = vmatpush2.bf16.msra.mxu0 0
  %561 = vmatprep.subr.bf16.mxu0 0
  %562 = vmatpush2.bf16.msra.mxu0 0
  %563 = vmatprep.subr.bf16.mxu0 0
  %564 = vmatpush2.bf16.msra.mxu0 0
  %565 = vmatprep.subr.bf16.mxu0 0
  %566 = vmatpush2.bf16.msra.mxu0 0
  %567 = vmatprep.subr.bf16.mxu0 0
  %568 = vmatpush2.bf16.msra.mxu0 0
  %569 = vmatprep.subr.bf16.mxu0 0
  %570 = vmatpush2.bf16.msra.mxu0 %v153
  %571 = vmatprep.subr.bf16.mxu0 0
  %572 = vmatpush2.bf16.msra.mxu0 %v127
  %573 = vmatprep.mubr.bf16.mxu0 %v530
  %574 = vmatmul.mubr.bf16.gmra.mxu0 %v517
  %v575 = vpop.f32.mrf.mxu0
  %v576 = vadd.f32 %v46, %v575
  %v577 = vpop.f32.mrf.mxu0
  %v578 = vpop.f32.mrf.mxu0
  %v579 = vadd.f32 %v46, %v578
  %v580 = vpop.f32.mrf.mxu0
  %581 = vmatprep.mubr.bf16.mxu0 %v533
  %582 = vmatmul.mubr.bf16.gmra.mxu0 %v519
  %v583 = vpop.f32.mrf.mxu0
  %v584 = vadd.f32 %v46, %v583
  %v585 = vpop.f32.mrf.mxu0
  %v586 = vpop.f32.mrf.mxu0
  %v587 = vadd.f32 %v46, %v586
  %v588 = vpop.f32.mrf.mxu0
  %589 = vmatprep.mubr.bf16.mxu0 %v536
  %590 = vmatmul.mubr.bf16.gmra.mxu0 %v521
  %v591 = vpop.f32.mrf.mxu0
  %v592 = vadd.f32 %v46, %v591
  %v593 = vpop.f32.mrf.mxu0
  %v594 = vpop.f32.mrf.mxu0
  %v595 = vadd.f32 %v46, %v594
  %v596 = vpop.f32.mrf.mxu0
  %597 = vmatprep.mubr.bf16.mxu0 %v539
  %598 = vmatmul.mubr.bf16.gmra.mxu0 %v523
  %v599 = vpop.f32.mrf.mxu0
  %v600 = vadd.f32 %v46, %v599
  %v601 = vpop.f32.mrf.mxu0
  %v602 = vpop.f32.mrf.mxu0
  %v603 = vpop.f32.mrf.mxu0
  %604 = vdwg.mxu0
  %v605 = vmax.f32 %v576, 0.0
  %v606 = vmax.f32 %v579, 0.0
  %v607 = vmax.f32 %v584, 0.0
  %v608 = vmax.f32 %v587, 0.0
  %v609 = vmax.f32 %v592, 0.0
  %v610 = vmax.f32 %v595, 0.0
  %v611 = vmax.f32 %v600, 0.0
  %v612 = vadd.f32 %v481, %v605
  %v613 = vadd.f32 %v482, %v606
  %v614 = vadd.f32 %v483, %v607
  %v615 = vadd.f32 %v484, %v608
  %v616 = vadd.f32 %v485, %v609
  %v617 = vadd.f32 %v486, %v610
  %v618 = vadd.f32 %v487, %v611
  %v619 = vmul.f32 %v612, 0.25
  %v620 = vmul.f32 %v613, 0.25
  %v621 = vmul.f32 %v614, 0.25
  %v622 = vmul.f32 %v615, 0.25
  %v623 = vmul.f32 %v616, 0.25
  %v624 = vmul.f32 %v617, 0.25
  %v625 = vmul.f32 %v618, 0.25
  %v626 = vpack.c.bf16 %v620, %v619
  %v627 = vpack.c.bf16 %v622, %v621
  %v628 = vpack.c.bf16 %v624, %v623
  %v629 = vpack.c.bf16 %v625, %v625
  %v634 = vunpack.c.l.b16 %v626
  %v635 = vunpack.c.h.b16 %v626
  %v636 = vunpack.c.l.b16 %v627
  %v637 = vunpack.c.h.b16 %v627
  %v638 = vunpack.c.l.b16 %v628
  %v639 = vunpack.c.h.b16 %v628
  %v640 = vunpack.c.l.b16 %v629
  %v641 = vpack.c.b16 %v634, %v634
  %v642 = vpack.c.b16 %v635, %v635
  %v643 = vpack.c.b16 %v636, %v636
  %v644 = vpack.c.b16 %v637, %v637
  %v645 = vpack.c.b16 %v638, %v638
  %v646 = vpack.c.b16 %v639, %v639
  %v647 = vpack.c.b16 %v640, %v640
  %655 = vst [vmem:[%s3] sm:$0xf] %v641
  %656 = vst [vmem:[%s3 + $0x4] sm:$0xf] %v642
  %657 = vst [vmem:[%s3 + $0x8] sm:$0xf] %v643
  %658 = vst [vmem:[%s3 + $0xc] sm:$0xf] %v644
  %659 = vst [vmem:[%s3 + $0x10] sm:$0xf] %v645
  %660 = vst [vmem:[%s3 + $0x14] sm:$0xf] %v646
  %661 = vst [vmem:[%s3 + $0x18] sm:$0x1] %v647
  // Predicated region
  $region14: #{lenet5_forward.4} parent=0 // pred_check
    _
  $region15: #{lenet5_forward.4} parent=0 // pred_check_branch
    %663 = sbr.rel (0) target = $region17
  $region16: #{lenet5_forward.4} parent=0 // pred_region
    _
  $region17: #{lenet5_forward.4} parent=0 // pred_fallthru
    _
  // Predicated region
  $region18: #{lenet5_forward.4} parent=0 // pred_check
    _
  $region19: #{lenet5_forward.4} parent=0 // pred_check_branch
    %665 = sbr.rel (0) target = $region21
  $region20: #{lenet5_forward.4} parent=0 // pred_region
    _
  $region21: #{lenet5_forward.4} parent=0 // pred_fallthru
    _

// kernel: lenet5_forward.5
$region0: #{lenet5_forward.5}
  #allocation0 [shape = 'u32[]', space=smem, size = 0x4, offset = 0x4, fixed_abs, tag = 'smem constant byte address 0x4 - core index']
  #allocation1 [shape = 'u32[144,128]{1,0:T(1,128)}', space=vmem, size = 0x12000, scoped, tag = 'internal scratch']
  %s0 = inlined_call_operand.vmem [shape: bf16[2,3200], index: 0, kind: input, shape index: {}]
  %s1 = inlined_call_operand.vmem [shape: bf16[3200,128], index: 1, kind: input, shape index: {}]
  %s2 = inlined_call_operand.vmem [shape: f32[1,128], index: 2, kind: input, shape index: {}]
  %s3 = inlined_call_operand.vmem [shape: bf16[128,128], index: 3, kind: input, shape index: {}]
  %s4 = inlined_call_operand.vmem [shape: f32[1,128], index: 4, kind: input, shape index: {}]
  %s5 = inlined_call_operand.vmem [shape: bf16[128,128], index: 5, kind: input, shape index: {}]
  %s6 = inlined_call_operand.vmem [shape: f32[1,128], index: 6, kind: input, shape index: {}]
  %s7 = inlined_call_operand.hbm [shape: f32[2,128], index: 7, kind: output, shape index: {}]
  %s8 = sld [smem:[#allocation0]]
  $region38: #{lenet5_forward.5} parent=0
    _
  %s10 = ssub.s32 1, %s8
  %s11 = scalar_select 0, %s10, %s8
  $region1: #{lenet5_forward.5} parent=0
    #allocation2 [shape = 'u8[1024]{0}', space=vmem, size = 0x400, scoped, tag = 'output window, operand 0, single buffered']
    #allocation3 [shape = 's32[1]{0}', space=sflag, size = 0x4, scoped, tag = 'scoped memory for lenet5_forward.5']
    %12 = vsyncpa [#allocation3], 0
    // Predicated region
    $region2: #{lenet5_forward.5} parent=1 // pred_check
      _
    $region3: #{lenet5_forward.5} parent=1 // pred_check_branch
      %14 = sbr.rel (0) target = $region5
    $region4: #{lenet5_forward.5} parent=1 // pred_region
      _
    $region5: #{lenet5_forward.5} parent=1 // pred_fallthru
      _
    // Predicated region
    $region6: #{lenet5_forward.5} parent=1 // pred_check
      _
    $region7: #{lenet5_forward.5} parent=1 // pred_check_branch
      %16 = sbr.rel (0) target = $region9
    $region8: #{lenet5_forward.5} parent=1 // pred_region
      _
    $region9: #{lenet5_forward.5} parent=1 // pred_fallthru
      _
    // Predicated region
    $region10: #{lenet5_forward.5} parent=1 // pred_check
      _
    $region11: #{lenet5_forward.5} parent=1 // pred_check_branch
      %18 = sbr.rel (0) target = $region13
    $region12: #{lenet5_forward.5} parent=1 // pred_region
      _
    $region13: #{lenet5_forward.5} parent=1 // pred_fallthru
      _
    // Predicated region
    $region14: #{lenet5_forward.5} parent=1 // pred_check
      _
    $region15: #{lenet5_forward.5} parent=1 // pred_check_branch
      %20 = sbr.rel (0) target = $region17
    $region16: #{lenet5_forward.5} parent=1 // pred_region
      _
    $region17: #{lenet5_forward.5} parent=1 // pred_fallthru
      _
    // Predicated region
    $region18: #{lenet5_forward.5} parent=1 // pred_check
      _
    $region19: #{lenet5_forward.5} parent=1 // pred_check_branch
      %22 = sbr.rel (0) target = $region21
    $region20: #{lenet5_forward.5} parent=1 // pred_region
      _
    $region21: #{lenet5_forward.5} parent=1 // pred_fallthru
      _
    // Predicated region
    $region22: #{lenet5_forward.5} parent=1 // pred_check
      _
    $region23: #{lenet5_forward.5} parent=1 // pred_check_branch
      %24 = sbr.rel (0) target = $region25
    $region24: #{lenet5_forward.5} parent=1 // pred_region
      _
    $region25: #{lenet5_forward.5} parent=1 // pred_fallthru
      _
    // Predicated region
    $region26: #{lenet5_forward.5} parent=1 // pred_check
      _
    $region27: #{lenet5_forward.5} parent=1 // pred_check_branch
      %26 = sbr.rel (0) target = $region29
    $region28: #{lenet5_forward.5} parent=1 // pred_region
      _
    $region29: #{lenet5_forward.5} parent=1 // pred_fallthru
      _
    %v28 = vld [vmem:[%s0] sm:$0xff]
    %v29 = vld [vmem:[%s0 + $0x8] sm:$0xff]
    %v30 = vld [vmem:[%s0 + $0x10] sm:$0xff]
    %v31 = vld [vmem:[%s0 + $0x18] sm:$0x1]
    %v32 = vld [vmem:[%s1] sm:$0xf]
    %v33 = vld [vmem:[%s1 + $0x4] sm:$0xf]
    %v34 = vld [vmem:[%s1 + $0x8] sm:$0xf]
    %v35 = vld [vmem:[%s1 + $0xc] sm:$0xf]
    %v36 = vld [vmem:[%s1 + $0x10] sm:$0xf]
    %v37 = vld [vmem:[%s1 + $0x14] sm:$0xf]
    %v38 = vld [vmem:[%s1 + $0x18] sm:$0xf]
    %v39 = vld [vmem:[%s1 + $0x1c] sm:$0xf]
    %v40 = vld [vmem:[%s1 + $0x20] sm:$0xf]
    %v41 = vld [vmem:[%s1 + $0x24] sm:$0xf]
    %v42 = vld [vmem:[%s1 + $0x28] sm:$0xf]
    %v43 = vld [vmem:[%s1 + $0x2c] sm:$0xf]
    %v44 = vld [vmem:[%s1 + $0x30] sm:$0xf]
    %v45 = vld [vmem:[%s1 + $0x34] sm:$0xf]
    %v46 = vld [vmem:[%s1 + $0x38] sm:$0xf]
    %v47 = vld [vmem:[%s1 + $0x3c] sm:$0xf]
    %v48 = vld [vmem:[%s1 + $0x40] sm:$0xf]
    %v49 = vld [vmem:[%s1 + $0x44] sm:$0xf]
    %v50 = vld [vmem:[%s1 + $0x48] sm:$0xf]
    %v51 = vld [vmem:[%s1 + $0x4c] sm:$0xf]
    %v52 = vld [vmem:[%s1 + $0x50] sm:$0xf]
    %v53 = vld [vmem:[%s1 + $0x54] sm:$0xf]
    %v54 = vld [vmem:[%s1 + $0x58] sm:$0xf]
    %v55 = vld [vmem:[%s1 + $0x5c] sm:$0xf]
    %v56 = vld [vmem:[%s1 + $0x60] sm:$0xf]
    %v57 = vld [vmem:[%s1 + $0x64] sm:$0xf]
    %v58 = vld [vmem:[%s1 + $0x68] sm:$0xf]
    %v59 = vld [vmem:[%s1 + $0x6c] sm:$0xf]
    %v60 = vld [vmem:[%s1 + $0x70] sm:$0xf]
    %v61 = vld [vmem:[%s1 + $0x74] sm:$0xf]
    %v62 = vld [vmem:[%s1 + $0x78] sm:$0xf]
    %v63 = vld [vmem:[%s1 + $0x7c] sm:$0xf]
    %v64 = vld [vmem:[%s1 + $0x80] sm:$0xf]
    %v65 = vld [vmem:[%s1 + $0x84] sm:$0xf]
    %v66 = vld [vmem:[%s1 + $0x88] sm:$0xf]
    %v67 = vld [vmem:[%s1 + $0x8c] sm:$0xf]
    %v68 = vld [vmem:[%s1 + $0x90] sm:$0xf]
    %v69 = vld [vmem:[%s1 + $0x94] sm:$0xf]
    %v70 = vld [vmem:[%s1 + $0x98] sm:$0xf]
    %v71 = vld [vmem:[%s1 + $0x9c] sm:$0xf]
    %v72 = vld [vmem:[%s1 + $0xa0] sm:$0xf]
    %v73 = vld [vmem:[%s1 + $0xa4] sm:$0xf]
    %v74 = vld [vmem:[%s1 + $0xa8] sm:$0xf]
    %v75 = vld [vmem:[%s1 + $0xac] sm:$0xf]
    %v76 = vld [vmem:[%s1 + $0xb0] sm:$0xf]
    %v77 = vld [vmem:[%s1 + $0xb4] sm:$0xf]
    %v78 = vld [vmem:[%s1 + $0xb8] sm:$0xf]
    %v79 = vld [vmem:[%s1 + $0xbc] sm:$0xf]
    %v80 = vld [vmem:[%s1 + $0xc0] sm:$0xf]
    %v81 = vld [vmem:[%s1 + $0xc4] sm:$0xf]
    %v82 = vld [vmem:[%s1 + $0xc8] sm:$0xf]
    %v83 = vld [vmem:[%s1 + $0xcc] sm:$0xf]
    %v84 = vld [vmem:[%s1 + $0xd0] sm:$0xf]
    %v85 = vld [vmem:[%s1 + $0xd4] sm:$0xf]
    %v86 = vld [vmem:[%s1 + $0xd8] sm:$0xf]
    %v87 = vld [vmem:[%s1 + $0xdc] sm:$0xf]
    %v88 = vld [vmem:[%s1 + $0xe0] sm:$0xf]
    %v89 = vld [vmem:[%s1 + $0xe4] sm:$0xf]
    %v90 = vld [vmem:[%s1 + $0xe8] sm:$0xf]
    %v91 = vld [vmem:[%s1 + $0xec] sm:$0xf]
    %v92 = vld [vmem:[%s1 + $0xf0] sm:$0xf]
    %v93 = vld [vmem:[%s1 + $0xf4] sm:$0xf]
    %v94 = vld [vmem:[%s1 + $0xf8] sm:$0xf]
    %v95 = vld [vmem:[%s1 + $0xfc] sm:$0xf]
    %v96 = vld [vmem:[%s1 + $0x100] sm:$0xf]
    %v97 = vld [vmem:[%s1 + $0x104] sm:$0xf]
    %v98 = vld [vmem:[%s1 + $0x108] sm:$0xf]
    %v99 = vld [vmem:[%s1 + $0x10c] sm:$0xf]
    %v100 = vld [vmem:[%s1 + $0x110] sm:$0xf]
    %v101 = vld [vmem:[%s1 + $0x114] sm:$0xf]
    %v102 = vld [vmem:[%s1 + $0x118] sm:$0xf]
    %v103 = vld [vmem:[%s1 + $0x11c] sm:$0xf]
    %v104 = vld [vmem:[%s1 + $0x120] sm:$0xf]
    %v105 = vld [vmem:[%s1 + $0x124] sm:$0xf]
    %v106 = vld [vmem:[%s1 + $0x128] sm:$0xf]
    %v107 = vld [vmem:[%s1 + $0x12c] sm:$0xf]
    %v108 = vld [vmem:[%s1 + $0x130] sm:$0xf]
    %v109 = vld [vmem:[%s1 + $0x134] sm:$0xf]
    %v110 = vld [vmem:[%s1 + $0x138] sm:$0xf]
    %v111 = vld [vmem:[%s1 + $0x13c] sm:$0xf]
    %v112 = vld [vmem:[%s1 + $0x140] sm:$0xf]
    %v113 = vld [vmem:[%s1 + $0x144] sm:$0xf]
    %v114 = vld [vmem:[%s1 + $0x148] sm:$0xf]
    %v115 = vld [vmem:[%s1 + $0x14c] sm:$0xf]
    %v116 = vld [vmem:[%s1 + $0x150] sm:$0xf]
    %v117 = vld [vmem:[%s1 + $0x154] sm:$0xf]
    %v118 = vld [vmem:[%s1 + $0x158] sm:$0xf]
    %v119 = vld [vmem:[%s1 + $0x15c] sm:$0xf]
    %v120 = vld [vmem:[%s1 + $0x160] sm:$0xf]
    %v121 = vld [vmem:[%s1 + $0x164] sm:$0xf]
    %v122 = vld [vmem:[%s1 + $0x168] sm:$0xf]
    %v123 = vld [vmem:[%s1 + $0x16c] sm:$0xf]
    %v124 = vld [vmem:[%s1 + $0x170] sm:$0xf]
    %v125 = vld [vmem:[%s1 + $0x174] sm:$0xf]
    %v126 = vld [vmem:[%s1 + $0x178] sm:$0xf]
    %v127 = vld [vmem:[%s1 + $0x17c] sm:$0xf]
    %v128 = vld [vmem:[%s1 + $0x180] sm:$0xf]
    %v129 = vld [vmem:[%s1 + $0x184] sm:$0xf]
    %v130 = vld [vmem:[%s1 + $0x188] sm:$0xf]
    %v131 = vld [vmem:[%s1 + $0x18c] sm:$0xf]
    %v132 = vld [vmem:[%s1 + $0x190] sm:$0xf]
    %v133 = vld [vmem:[%s1 + $0x194] sm:$0xf]
    %v134 = vld [vmem:[%s1 + $0x198] sm:$0xf]
    %v135 = vld [vmem:[%s1 + $0x19c] sm:$0xf]
    %v136 = vld [vmem:[%s1 + $0x1a0] sm:$0xf]
    %v137 = vld [vmem:[%s1 + $0x1a4] sm:$0xf]
    %v138 = vld [vmem:[%s1 + $0x1a8] sm:$0xf]
    %v139 = vld [vmem:[%s1 + $0x1ac] sm:$0xf]
    %v140 = vld [vmem:[%s1 + $0x1b0] sm:$0xf]
    %v141 = vld [vmem:[%s1 + $0x1b4] sm:$0xf]
    %v142 = vld [vmem:[%s1 + $0x1b8] sm:$0xf]
    %v143 = vld [vmem:[%s1 + $0x1bc] sm:$0xf]
    %v144 = vld [vmem:[%s1 + $0x1c0] sm:$0xf]
    %v145 = vld [vmem:[%s1 + $0x1c4] sm:$0xf]
    %v146 = vld [vmem:[%s1 + $0x1c8] sm:$0xf]
    %v147 = vld [vmem:[%s1 + $0x1cc] sm:$0xf]
    %v148 = vld [vmem:[%s1 + $0x1d0] sm:$0xf]
    %v149 = vld [vmem:[%s1 + $0x1d4] sm:$0xf]
    %v150 = vld [vmem:[%s1 + $0x1d8] sm:$0xf]
    %v151 = vld [vmem:[%s1 + $0x1dc] sm:$0xf]
    %v152 = vld [vmem:[%s1 + $0x1e0] sm:$0xf]
    %v153 = vld [vmem:[%s1 + $0x1e4] sm:$0xf]
    %v154 = vld [vmem:[%s1 + $0x1e8] sm:$0xf]
    %v155 = vld [vmem:[%s1 + $0x1ec] sm:$0xf]
    %v156 = vld [vmem:[%s1 + $0x1f0] sm:$0xf]
    %v157 = vld [vmem:[%s1 + $0x1f4] sm:$0xf]
    %v158 = vld [vmem:[%s1 + $0x1f8] sm:$0xf]
    %v159 = vld [vmem:[%s1 + $0x1fc] sm:$0xf]
    %v160 = vld [vmem:[%s1 + $0x200] sm:$0xf]
    %v161 = vld [vmem:[%s1 + $0x204] sm:$0xf]
    %v162 = vld [vmem:[%s1 + $0x208] sm:$0xf]
    %v163 = vld [vmem:[%s1 + $0x20c] sm:$0xf]
    %v164 = vld [vmem:[%s1 + $0x210] sm:$0xf]
    %v165 = vld [vmem:[%s1 + $0x214] sm:$0xf]
    %v166 = vld [vmem:[%s1 + $0x218] sm:$0xf]
    %v167 = vld [vmem:[%s1 + $0x21c] sm:$0xf]
    %v168 = vld [vmem:[%s1 + $0x220] sm:$0xf]
    %v169 = vld [vmem:[%s1 + $0x224] sm:$0xf]
    %v170 = vld [vmem:[%s1 + $0x228] sm:$0xf]
    %v171 = vld [vmem:[%s1 + $0x22c] sm:$0xf]
    %v172 = vld [vmem:[%s1 + $0x230] sm:$0xf]
    %v173 = vld [vmem:[%s1 + $0x234] sm:$0xf]
    %v174 = vld [vmem:[%s1 + $0x238] sm:$0xf]
    %v175 = vld [vmem:[%s1 + $0x23c] sm:$0xf]
    %v176 = vld [vmem:[%s1 + $0x240] sm:$0xf]
    %v177 = vld [vmem:[%s1 + $0x244] sm:$0xf]
    %v178 = vld [vmem:[%s1 + $0x248] sm:$0xf]
    %v179 = vld [vmem:[%s1 + $0x24c] sm:$0xf]
    %v180 = vld [vmem:[%s1 + $0x250] sm:$0xf]
    %v181 = vld [vmem:[%s1 + $0x254] sm:$0xf]
    %v182 = vld [vmem:[%s1 + $0x258] sm:$0xf]
    %v183 = vld [vmem:[%s1 + $0x25c] sm:$0xf]
    %v184 = vld [vmem:[%s1 + $0x260] sm:$0xf]
    %v185 = vld [vmem:[%s1 + $0x264] sm:$0xf]
    %v186 = vld [vmem:[%s1 + $0x268] sm:$0xf]
    %v187 = vld [vmem:[%s1 + $0x26c] sm:$0xf]
    %v188 = vld [vmem:[%s1 + $0x270] sm:$0xf]
    %v189 = vld [vmem:[%s1 + $0x274] sm:$0xf]
    %v190 = vld [vmem:[%s1 + $0x278] sm:$0xf]
    %v191 = vld [vmem:[%s1 + $0x27c] sm:$0xf]
    %v192 = vld [vmem:[%s1 + $0x280] sm:$0xf]
    %v193 = vld [vmem:[%s1 + $0x284] sm:$0xf]
    %v194 = vld [vmem:[%s1 + $0x288] sm:$0xf]
    %v195 = vld [vmem:[%s1 + $0x28c] sm:$0xf]
    %v196 = vld [vmem:[%s1 + $0x290] sm:$0xf]
    %v197 = vld [vmem:[%s1 + $0x294] sm:$0xf]
    %v198 = vld [vmem:[%s1 + $0x298] sm:$0xf]
    %v199 = vld [vmem:[%s1 + $0x29c] sm:$0xf]
    %v200 = vld [vmem:[%s1 + $0x2a0] sm:$0xf]
    %v201 = vld [vmem:[%s1 + $0x2a4] sm:$0xf]
    %v202 = vld [vmem:[%s1 + $0x2a8] sm:$0xf]
    %v203 = vld [vmem:[%s1 + $0x2ac] sm:$0xf]
    %v204 = vld [vmem:[%s1 + $0x2b0] sm:$0xf]
    %v205 = vld [vmem:[%s1 + $0x2b4] sm:$0xf]
    %v206 = vld [vmem:[%s1 + $0x2b8] sm:$0xf]
    %v207 = vld [vmem:[%s1 + $0x2bc] sm:$0xf]
    %v208 = vld [vmem:[%s1 + $0x2c0] sm:$0xf]
    %v209 = vld [vmem:[%s1 + $0x2c4] sm:$0xf]
    %v210 = vld [vmem:[%s1 + $0x2c8] sm:$0xf]
    %v211 = vld [vmem:[%s1 + $0x2cc] sm:$0xf]
    %v212 = vld [vmem:[%s1 + $0x2d0] sm:$0xf]
    %v213 = vld [vmem:[%s1 + $0x2d4] sm:$0xf]
    %v214 = vld [vmem:[%s1 + $0x2d8] sm:$0xf]
    %v215 = vld [vmem:[%s1 + $0x2dc] sm:$0xf]
    %v216 = vld [vmem:[%s1 + $0x2e0] sm:$0xf]
    %v217 = vld [vmem:[%s1 + $0x2e4] sm:$0xf]
    %v218 = vld [vmem:[%s1 + $0x2e8] sm:$0xf]
    %v219 = vld [vmem:[%s1 + $0x2ec] sm:$0xf]
    %v220 = vld [vmem:[%s1 + $0x2f0] sm:$0xf]
    %v221 = vld [vmem:[%s1 + $0x2f4] sm:$0xf]
    %v222 = vld [vmem:[%s1 + $0x2f8] sm:$0xf]
    %v223 = vld [vmem:[%s1 + $0x2fc] sm:$0xf]
    %v224 = vld [vmem:[%s1 + $0x300] sm:$0xf]
    %v225 = vld [vmem:[%s1 + $0x304] sm:$0xf]
    %v226 = vld [vmem:[%s1 + $0x308] sm:$0xf]
    %v227 = vld [vmem:[%s1 + $0x30c] sm:$0xf]
    %v228 = vld [vmem:[%s1 + $0x310] sm:$0xf]
    %v229 = vld [vmem:[%s1 + $0x314] sm:$0xf]
    %v230 = vld [vmem:[%s1 + $0x318] sm:$0xf]
    %v231 = vld [vmem:[%s1 + $0x31c] sm:$0xf]
    %v232 = vld [vmem:[%s1 + $0x320] sm:$0xf]
    %v233 = vld [vmem:[%s1 + $0x324] sm:$0xf]
    %v234 = vld [vmem:[%s1 + $0x328] sm:$0xf]
    %v235 = vld [vmem:[%s1 + $0x32c] sm:$0xf]
    %v236 = vld [vmem:[%s1 + $0x330] sm:$0xf]
    %v237 = vld [vmem:[%s1 + $0x334] sm:$0xf]
    %v238 = vld [vmem:[%s1 + $0x338] sm:$0xf]
    %v239 = vld [vmem:[%s1 + $0x33c] sm:$0xf]
    %v240 = vld [vmem:[%s1 + $0x340] sm:$0xf]
    %v241 = vld [vmem:[%s1 + $0x344] sm:$0xf]
    %v242 = vld [vmem:[%s1 + $0x348] sm:$0xf]
    %v243 = vld [vmem:[%s1 + $0x34c] sm:$0xf]
    %v244 = vld [vmem:[%s1 + $0x350] sm:$0xf]
    %v245 = vld [vmem:[%s1 + $0x354] sm:$0xf]
    %v246 = vld [vmem:[%s1 + $0x358] sm:$0xf]
    %v247 = vld [vmem:[%s1 + $0x35c] sm:$0xf]
    %v248 = vld [vmem:[%s1 + $0x360] sm:$0xf]
    %v249 = vld [vmem:[%s1 + $0x364] sm:$0xf]
    %v250 = vld [vmem:[%s1 + $0x368] sm:$0xf]
    %v251 = vld [vmem:[%s1 + $0x36c] sm:$0xf]
    %v252 = vld [vmem:[%s1 + $0x370] sm:$0xf]
    %v253 = vld [vmem:[%s1 + $0x374] sm:$0xf]
    %v254 = vld [vmem:[%s1 + $0x378] sm:$0xf]
    %v255 = vld [vmem:[%s1 + $0x37c] sm:$0xf]
    %v256 = vld [vmem:[%s1 + $0x380] sm:$0xf]
    %v257 = vld [vmem:[%s1 + $0x384] sm:$0xf]
    %v258 = vld [vmem:[%s1 + $0x388] sm:$0xf]
    %v259 = vld [vmem:[%s1 + $0x38c] sm:$0xf]
    %v260 = vld [vmem:[%s1 + $0x390] sm:$0xf]
    %v261 = vld [vmem:[%s1 + $0x394] sm:$0xf]
    %v262 = vld [vmem:[%s1 + $0x398] sm:$0xf]
    %v263 = vld [vmem:[%s1 + $0x39c] sm:$0xf]
    %v264 = vld [vmem:[%s1 + $0x3a0] sm:$0xf]
    %v265 = vld [vmem:[%s1 + $0x3a4] sm:$0xf]
    %v266 = vld [vmem:[%s1 + $0x3a8] sm:$0xf]
    %v267 = vld [vmem:[%s1 + $0x3ac] sm:$0xf]
    %v268 = vld [vmem:[%s1 + $0x3b0] sm:$0xf]
    %v269 = vld [vmem:[%s1 + $0x3b4] sm:$0xf]
    %v270 = vld [vmem:[%s1 + $0x3b8] sm:$0xf]
    %v271 = vld [vmem:[%s1 + $0x3bc] sm:$0xf]
    %v272 = vld [vmem:[%s1 + $0x3c0] sm:$0xf]
    %v273 = vld [vmem:[%s1 + $0x3c4] sm:$0xf]
    %v274 = vld [vmem:[%s1 + $0x3c8] sm:$0xf]
    %v275 = vld [vmem:[%s1 + $0x3cc] sm:$0xf]
    %v276 = vld [vmem:[%s1 + $0x3d0] sm:$0xf]
    %v277 = vld [vmem:[%s1 + $0x3d4] sm:$0xf]
    %v278 = vld [vmem:[%s1 + $0x3d8] sm:$0xf]
    %v279 = vld [vmem:[%s1 + $0x3dc] sm:$0xf]
    %v280 = vld [vmem:[%s1 + $0x3e0] sm:$0xf]
    %v281 = vld [vmem:[%s1 + $0x3e4] sm:$0xf]
    %v282 = vld [vmem:[%s1 + $0x3e8] sm:$0xf]
    %v283 = vld [vmem:[%s1 + $0x3ec] sm:$0xf]
    %v284 = vld [vmem:[%s1 + $0x3f0] sm:$0xf]
    %v285 = vld [vmem:[%s1 + $0x3f4] sm:$0xf]
    %v286 = vld [vmem:[%s1 + $0x3f8] sm:$0xf]
    %v287 = vld [vmem:[%s1 + $0x3fc] sm:$0xf]
    %v288 = vld [vmem:[%s1 + $0x400] sm:$0xf]
    %v289 = vld [vmem:[%s1 + $0x404] sm:$0xf]
    %v290 = vld [vmem:[%s1 + $0x408] sm:$0xf]
    %v291 = vld [vmem:[%s1 + $0x40c] sm:$0xf]
    %v292 = vld [vmem:[%s1 + $0x410] sm:$0xf]
    %v293 = vld [vmem:[%s1 + $0x414] sm:$0xf]
    %v294 = vld [vmem:[%s1 + $0x418] sm:$0xf]
    %v295 = vld [vmem:[%s1 + $0x41c] sm:$0xf]
    %v296 = vld [vmem:[%s1 + $0x420] sm:$0xf]
    %v297 = vld [vmem:[%s1 + $0x424] sm:$0xf]
    %v298 = vld [vmem:[%s1 + $0x428] sm:$0xf]
    %v299 = vld [vmem:[%s1 + $0x42c] sm:$0xf]
    %v300 = vld [vmem:[%s1 + $0x430] sm:$0xf]
    %v301 = vld [vmem:[%s1 + $0x434] sm:$0xf]
    %v302 = vld [vmem:[%s1 + $0x438] sm:$0xf]
    %v303 = vld [vmem:[%s1 + $0x43c] sm:$0xf]
    %v304 = vld [vmem:[%s1 + $0x440] sm:$0xf]
    %v305 = vld [vmem:[%s1 + $0x444] sm:$0xf]
    %v306 = vld [vmem:[%s1 + $0x448] sm:$0xf]
    %v307 = vld [vmem:[%s1 + $0x44c] sm:$0xf]
    %v308 = vld [vmem:[%s1 + $0x450] sm:$0xf]
    %v309 = vld [vmem:[%s1 + $0x454] sm:$0xf]
    %v310 = vld [vmem:[%s1 + $0x458] sm:$0xf]
    %v311 = vld [vmem:[%s1 + $0x45c] sm:$0xf]
    %v312 = vld [vmem:[%s1 + $0x460] sm:$0xf]
    %v313 = vld [vmem:[%s1 + $0x464] sm:$0xf]
    %v314 = vld [vmem:[%s1 + $0x468] sm:$0xf]
    %v315 = vld [vmem:[%s1 + $0x46c] sm:$0xf]
    %v316 = vld [vmem:[%s1 + $0x470] sm:$0xf]
    %v317 = vld [vmem:[%s1 + $0x474] sm:$0xf]
    %v318 = vld [vmem:[%s1 + $0x478] sm:$0xf]
    %v319 = vld [vmem:[%s1 + $0x47c] sm:$0xf]
    %v320 = vld [vmem:[%s1 + $0x480] sm:$0xf]
    %v321 = vld [vmem:[%s1 + $0x484] sm:$0xf]
    %v322 = vld [vmem:[%s1 + $0x488] sm:$0xf]
    %v323 = vld [vmem:[%s1 + $0x48c] sm:$0xf]
    %v324 = vld [vmem:[%s1 + $0x490] sm:$0xf]
    %v325 = vld [vmem:[%s1 + $0x494] sm:$0xf]
    %v326 = vld [vmem:[%s1 + $0x498] sm:$0xf]
    %v327 = vld [vmem:[%s1 + $0x49c] sm:$0xf]
    %v328 = vld [vmem:[%s1 + $0x4a0] sm:$0xf]
    %v329 = vld [vmem:[%s1 + $0x4a4] sm:$0xf]
    %v330 = vld [vmem:[%s1 + $0x4a8] sm:$0xf]
    %v331 = vld [vmem:[%s1 + $0x4ac] sm:$0xf]
    %v332 = vld [vmem:[%s1 + $0x4b0] sm:$0xf]
    %v333 = vld [vmem:[%s1 + $0x4b4] sm:$0xf]
    %v334 = vld [vmem:[%s1 + $0x4b8] sm:$0xf]
    %v335 = vld [vmem:[%s1 + $0x4bc] sm:$0xf]
    %v336 = vld [vmem:[%s1 + $0x4c0] sm:$0xf]
    %v337 = vld [vmem:[%s1 + $0x4c4] sm:$0xf]
    %v338 = vld [vmem:[%s1 + $0x4c8] sm:$0xf]
    %v339 = vld [vmem:[%s1 + $0x4cc] sm:$0xf]
    %v340 = vld [vmem:[%s1 + $0x4d0] sm:$0xf]
    %v341 = vld [vmem:[%s1 + $0x4d4] sm:$0xf]
    %v342 = vld [vmem:[%s1 + $0x4d8] sm:$0xf]
    %v343 = vld [vmem:[%s1 + $0x4dc] sm:$0xf]
    %v344 = vld [vmem:[%s1 + $0x4e0] sm:$0xf]
    %v345 = vld [vmem:[%s1 + $0x4e4] sm:$0xf]
    %v346 = vld [vmem:[%s1 + $0x4e8] sm:$0xf]
    %v347 = vld [vmem:[%s1 + $0x4ec] sm:$0xf]
    %v348 = vld [vmem:[%s1 + $0x4f0] sm:$0xf]
    %v349 = vld [vmem:[%s1 + $0x4f4] sm:$0xf]
    %v350 = vld [vmem:[%s1 + $0x4f8] sm:$0xf]
    %v351 = vld [vmem:[%s1 + $0x4fc] sm:$0xf]
    %v352 = vld [vmem:[%s1 + $0x500] sm:$0xf]
    %v353 = vld [vmem:[%s1 + $0x504] sm:$0xf]
    %v354 = vld [vmem:[%s1 + $0x508] sm:$0xf]
    %v355 = vld [vmem:[%s1 + $0x50c] sm:$0xf]
    %v356 = vld [vmem:[%s1 + $0x510] sm:$0xf]
    %v357 = vld [vmem:[%s1 + $0x514] sm:$0xf]
    %v358 = vld [vmem:[%s1 + $0x518] sm:$0xf]
    %v359 = vld [vmem:[%s1 + $0x51c] sm:$0xf]
    %v360 = vld [vmem:[%s1 + $0x520] sm:$0xf]
    %v361 = vld [vmem:[%s1 + $0x524] sm:$0xf]
    %v362 = vld [vmem:[%s1 + $0x528] sm:$0xf]
    %v363 = vld [vmem:[%s1 + $0x52c] sm:$0xf]
    %v364 = vld [vmem:[%s1 + $0x530] sm:$0xf]
    %v365 = vld [vmem:[%s1 + $0x534] sm:$0xf]
    %v366 = vld [vmem:[%s1 + $0x538] sm:$0xf]
    %v367 = vld [vmem:[%s1 + $0x53c] sm:$0xf]
    %v368 = vld [vmem:[%s1 + $0x540] sm:$0xf]
    %v369 = vld [vmem:[%s1 + $0x544] sm:$0xf]
    %v370 = vld [vmem:[%s1 + $0x548] sm:$0xf]
    %v371 = vld [vmem:[%s1 + $0x54c] sm:$0xf]
    %v372 = vld [vmem:[%s1 + $0x550] sm:$0xf]
    %v373 = vld [vmem:[%s1 + $0x554] sm:$0xf]
    %v374 = vld [vmem:[%s1 + $0x558] sm:$0xf]
    %v375 = vld [vmem:[%s1 + $0x55c] sm:$0xf]
    %v376 = vld [vmem:[%s1 + $0x560] sm:$0xf]
    %v377 = vld [vmem:[%s1 + $0x564] sm:$0xf]
    %v378 = vld [vmem:[%s1 + $0x568] sm:$0xf]
    %v379 = vld [vmem:[%s1 + $0x56c] sm:$0xf]
    %v380 = vld [vmem:[%s1 + $0x570] sm:$0xf]
    %v381 = vld [vmem:[%s1 + $0x574] sm:$0xf]
    %v382 = vld [vmem:[%s1 + $0x578] sm:$0xf]
    %v383 = vld [vmem:[%s1 + $0x57c] sm:$0xf]
    %v384 = vld [vmem:[%s1 + $0x580] sm:$0xf]
    %v385 = vld [vmem:[%s1 + $0x584] sm:$0xf]
    %v386 = vld [vmem:[%s1 + $0x588] sm:$0xf]
    %v387 = vld [vmem:[%s1 + $0x58c] sm:$0xf]
    %v388 = vld [vmem:[%s1 + $0x590] sm:$0xf]
    %v389 = vld [vmem:[%s1 + $0x594] sm:$0xf]
    %v390 = vld [vmem:[%s1 + $0x598] sm:$0xf]
    %v391 = vld [vmem:[%s1 + $0x59c] sm:$0xf]
    %v392 = vld [vmem:[%s1 + $0x5a0] sm:$0xf]
    %v393 = vld [vmem:[%s1 + $0x5a4] sm:$0xf]
    %v394 = vld [vmem:[%s1 + $0x5a8] sm:$0xf]
    %v395 = vld [vmem:[%s1 + $0x5ac] sm:$0xf]
    %v396 = vld [vmem:[%s1 + $0x5b0] sm:$0xf]
    %v397 = vld [vmem:[%s1 + $0x5b4] sm:$0xf]
    %v398 = vld [vmem:[%s1 + $0x5b8] sm:$0xf]
    %v399 = vld [vmem:[%s1 + $0x5bc] sm:$0xf]
    %v400 = vld [vmem:[%s1 + $0x5c0] sm:$0xf]
    %v401 = vld [vmem:[%s1 + $0x5c4] sm:$0xf]
    %v402 = vld [vmem:[%s1 + $0x5c8] sm:$0xf]
    %v403 = vld [vmem:[%s1 + $0x5cc] sm:$0xf]
    %v404 = vld [vmem:[%s1 + $0x5d0] sm:$0xf]
    %v405 = vld [vmem:[%s1 + $0x5d4] sm:$0xf]
    %v406 = vld [vmem:[%s1 + $0x5d8] sm:$0xf]
    %v407 = vld [vmem:[%s1 + $0x5dc] sm:$0xf]
    %v408 = vld [vmem:[%s1 + $0x5e0] sm:$0xf]
    %v409 = vld [vmem:[%s1 + $0x5e4] sm:$0xf]
    %v410 = vld [vmem:[%s1 + $0x5e8] sm:$0xf]
    %v411 = vld [vmem:[%s1 + $0x5ec] sm:$0xf]
    %v412 = vld [vmem:[%s1 + $0x5f0] sm:$0xf]
    %v413 = vld [vmem:[%s1 + $0x5f4] sm:$0xf]
    %v414 = vld [vmem:[%s1 + $0x5f8] sm:$0xf]
    %v415 = vld [vmem:[%s1 + $0x5fc] sm:$0xf]
    %v416 = vld [vmem:[%s1 + $0x600] sm:$0xf]
    %v417 = vld [vmem:[%s1 + $0x604] sm:$0xf]
    %v418 = vld [vmem:[%s1 + $0x608] sm:$0xf]
    %v419 = vld [vmem:[%s1 + $0x60c] sm:$0xf]
    %v420 = vld [vmem:[%s1 + $0x610] sm:$0xf]
    %v421 = vld [vmem:[%s1 + $0x614] sm:$0xf]
    %v422 = vld [vmem:[%s1 + $0x618] sm:$0xf]
    %v423 = vld [vmem:[%s1 + $0x61c] sm:$0xf]
    %v424 = vld [vmem:[%s1 + $0x620] sm:$0xf]
    %v425 = vld [vmem:[%s1 + $0x624] sm:$0xf]
    %v426 = vld [vmem:[%s1 + $0x628] sm:$0xf]
    %v427 = vld [vmem:[%s1 + $0x62c] sm:$0xf]
    %v428 = vld [vmem:[%s1 + $0x630] sm:$0xf]
    %v429 = vld [vmem:[%s1 + $0x634] sm:$0xf]
    %v430 = vld [vmem:[%s1 + $0x638] sm:$0xf]
    %v431 = vld [vmem:[%s1 + $0x63c] sm:$0xf]
    %v432 = vld [vmem:[%s2] sm:$0x1]
    %v434 = vlaneseq
    %v435 = vshrl.u32 %v434, 7
    %v436 = vsub.s32 0, %v435
    %v437 = vrot.slane %v432, %v436
    %v443 = vcombine.high %v28, %v28
    %v445 = vunpack.c.l.s4 1966171168
    %v446 = vunpack.c.0.s8 %v445
    %v447 = vlaneseq
    %v448 = vshrl.u32 %v447, 7
    %v449 = vsub.s32 %v446, %v448
    %v450 = vrot.slane %v28, %v449
    %v452 = vunpack.c.l.s4 1966171168
    %v453 = vunpack.c.0.s8 %v452
    %v454 = vlaneseq
    %v455 = vshrl.u32 %v454, 7
    %v456 = vsub.s32 %v453, %v455
    %v457 = vrot.slane %v443, %v456
    %v458 = vcombine.high %v450, %v450
    %v459 = vcombine.high %v457, %v457
    %v461 = vunpack.c.l.s4 1966171168
    %v462 = vunpack.c.0.s8 %v461
    %v463 = vlaneseq
    %v464 = vshrl.u32 %v463, 7
    %v465 = vsub.s32 %v462, %v464
    %v466 = vrot.slane %v450, %v465
    %v468 = vunpack.c.l.s4 1966171168
    %v469 = vunpack.c.0.s8 %v468
    %v470 = vlaneseq
    %v471 = vshrl.u32 %v470, 7
    %v472 = vsub.s32 %v469, %v471
    %v473 = vrot.slane %v457, %v472
    %v475 = vunpack.c.l.s4 1966171168
    %v476 = vunpack.c.0.s8 %v475
    %v477 = vlaneseq
    %v478 = vshrl.u32 %v477, 7
    %v479 = vsub.s32 %v476, %v478
    %v480 = vrot.slane %v458, %v479
    %v482 = vunpack.c.l.s4 1966171168
    %v483 = vunpack.c.0.s8 %v482
    %v484 = vlaneseq
    %v485 = vshrl.u32 %v484, 7
    %v486 = vsub.s32 %v483, %v485
    %v487 = vrot.slane %v459, %v486
    %v488 = vcombine.high %v466, %v466
    %v489 = vcombine.high %v473, %v473
    %v490 = vcombine.high %v480, %v480
    %v491 = vcombine.high %v487, %v487
    %v492 = vcombine.high %v29, %v29
    %v494 = vunpack.c.l.s4 1966171168
    %v495 = vunpack.c.0.s8 %v494
    %v496 = vlaneseq
    %v497 = vshrl.u32 %v496, 7
    %v498 = vsub.s32 %v495, %v497
    %v499 = vrot.slane %v29, %v498
    %v501 = vunpack.c.l.s4 1966171168
    %v502 = vunpack.c.0.s8 %v501
    %v503 = vlaneseq
    %v504 = vshrl.u32 %v503, 7
    %v505 = vsub.s32 %v502, %v504
    %v506 = vrot.slane %v492, %v505
    %v507 = vcombine.high %v499, %v499
    %v508 = vcombine.high %v506, %v506
    %v510 = vunpack.c.l.s4 1966171168
    %v511 = vunpack.c.0.s8 %v510
    %v512 = vlaneseq
    %v513 = vshrl.u32 %v512, 7
    %v514 = vsub.s32 %v511, %v513
    %v515 = vrot.slane %v499, %v514
    %v517 = vunpack.c.l.s4 1966171168
    %v518 = vunpack.c.0.s8 %v517
    %v519 = vlaneseq
    %v520 = vshrl.u32 %v519, 7
    %v521 = vsub.s32 %v518, %v520
    %v522 = vrot.slane %v506, %v521
    %v524 = vunpack.c.l.s4 1966171168
    %v525 = vunpack.c.0.s8 %v524
    %v526 = vlaneseq
    %v527 = vshrl.u32 %v526, 7
    %v528 = vsub.s32 %v525, %v527
    %v529 = vrot.slane %v507, %v528
    %v531 = vunpack.c.l.s4 1966171168
    %v532 = vunpack.c.0.s8 %v531
    %v533 = vlaneseq
    %v534 = vshrl.u32 %v533, 7
    %v535 = vsub.s32 %v532, %v534
    %v536 = vrot.slane %v508, %v535
    %v537 = vcombine.high %v515, %v515
    %v538 = vcombine.high %v522, %v522
    %v539 = vcombine.high %v529, %v529
    %v540 = vcombine.high %v536, %v536
    %v541 = vcombine.high %v30, %v30
    %v543 = vunpack.c.l.s4 1966171168
    %v544 = vunpack.c.0.s8 %v543
    %v545 = vlaneseq
    %v546 = vshrl.u32 %v545, 7
    %v547 = vsub.s32 %v544, %v546
    %v548 = vrot.slane %v30, %v547
    %v550 = vunpack.c.l.s4 1966171168
    %v551 = vunpack.c.0.s8 %v550
    %v552 = vlaneseq
    %v553 = vshrl.u32 %v552, 7
    %v554 = vsub.s32 %v551, %v553
    %v555 = vrot.slane %v541, %v554
    %v556 = vcombine.high %v548, %v548
    %v557 = vcombine.high %v555, %v555
    %v559 = vunpack.c.l.s4 1966171168
    %v560 = vunpack.c.0.s8 %v559
    %v561 = vlaneseq
    %v562 = vshrl.u32 %v561, 7
    %v563 = vsub.s32 %v560, %v562
    %v564 = vrot.slane %v548, %v563
    %v566 = vunpack.c.l.s4 1966171168
    %v567 = vunpack.c.0.s8 %v566
    %v568 = vlaneseq
    %v569 = vshrl.u32 %v568, 7
    %v570 = vsub.s32 %v567, %v569
    %v571 = vrot.slane %v555, %v570
    %v573 = vunpack.c.l.s4 1966171168
    %v574 = vunpack.c.0.s8 %v573
    %v575 = vlaneseq
    %v576 = vshrl.u32 %v575, 7
    %v577 = vsub.s32 %v574, %v576
    %v578 = vrot.slane %v556, %v577
    %v580 = vunpack.c.l.s4 1966171168
    %v581 = vunpack.c.0.s8 %v580
    %v582 = vlaneseq
    %v583 = vshrl.u32 %v582, 7
    %v584 = vsub.s32 %v581, %v583
    %v585 = vrot.slane %v557, %v584
    %v586 = vcombine.high %v564, %v564
    %v587 = vcombine.high %v571, %v571
    %v588 = vcombine.high %v578, %v578
    %v589 = vcombine.high %v585, %v585
    %v591 = vunpack.c.l.s4 1966171168
    %v592 = vunpack.c.0.s8 %v591
    %v593 = vlaneseq
    %v594 = vshrl.u32 %v593, 7
    %v595 = vsub.s32 %v592, %v594
    %v596 = vrot.slane %v31, %v595
    %v598 = vunpack.c.l.s4 1966171168
    %v599 = vunpack.c.0.s8 %v598
    %v600 = vlaneseq
    %v601 = vshrl.u32 %v600, 7
    %v602 = vsub.s32 %v599, %v601
    %v603 = vrot.slane %v596, %v602
    %v1029 = vunpack.c.l.b16 %v32
    %v1030 = vunpack.c.l.b16 %v33
    %v1031 = vunpack.c.l.b16 %v34
    %v1032 = vunpack.c.l.b16 %v35
    %v1033 = vunpack.c.l.b16 %v36
    %v1034 = vunpack.c.l.b16 %v37
    %v1035 = vunpack.c.l.b16 %v38
    %v1036 = vunpack.c.l.b16 %v39
    %v1037 = vunpack.c.l.b16 %v40
    %v1038 = vunpack.c.l.b16 %v41
    %v1039 = vunpack.c.l.b16 %v42
    %v1040 = vunpack.c.l.b16 %v43
    %v1041 = vunpack.c.l.b16 %v44
    %v1042 = vunpack.c.l.b16 %v45
    %v1043 = vunpack.c.l.b16 %v46
    %v1044 = vunpack.c.l.b16 %v47
    %v1045 = vunpack.c.l.b16 %v48
    %v1046 = vunpack.c.l.b16 %v49
    %v1047 = vunpack.c.l.b16 %v50
    %v1048 = vunpack.c.l.b16 %v51
    %v1049 = vunpack.c.l.b16 %v52
    %v1050 = vunpack.c.l.b16 %v53
    %v1051 = vunpack.c.l.b16 %v54
    %v1052 = vunpack.c.l.b16 %v55
    %v1053 = vunpack.c.l.b16 %v56
    %v1054 = vunpack.c.l.b16 %v57
    %v1055 = vunpack.c.l.b16 %v58
    %v1056 = vunpack.c.l.b16 %v59
    %v1057 = vunpack.c.l.b16 %v60
    %v1058 = vunpack.c.l.b16 %v61
    %v1059 = vunpack.c.l.b16 %v62
    %v1060 = vunpack.c.l.b16 %v63
    %v1061 = vunpack.c.l.b16 %v64
    %v1062 = vunpack.c.l.b16 %v65
    %v1063 = vunpack.c.l.b16 %v66
    %v1064 = vunpack.c.l.b16 %v67
    %v1065 = vunpack.c.l.b16 %v68
    %v1066 = vunpack.c.l.b16 %v69
    %v1067 = vunpack.c.l.b16 %v70
    %v1068 = vunpack.c.l.b16 %v71
    %v1069 = vunpack.c.l.b16 %v72
    %v1070 = vunpack.c.l.b16 %v73
    %v1071 = vunpack.c.l.b16 %v74
    %v1072 = vunpack.c.l.b16 %v75
    %v1073 = vunpack.c.l.b16 %v76
    %v1074 = vunpack.c.l.b16 %v77
    %v1075 = vunpack.c.l.b16 %v78
    %v1076 = vunpack.c.l.b16 %v79
    %v1077 = vunpack.c.l.b16 %v80
    %v1078 = vunpack.c.l.b16 %v81
    %v1079 = vunpack.c.l.b16 %v82
    %v1080 = vunpack.c.l.b16 %v83
    %v1081 = vunpack.c.l.b16 %v84
    %v1082 = vunpack.c.l.b16 %v85
    %v1083 = vunpack.c.l.b16 %v86
    %v1084 = vunpack.c.l.b16 %v87
    %v1085 = vunpack.c.l.b16 %v88
    %v1086 = vunpack.c.l.b16 %v89
    %v1087 = vunpack.c.l.b16 %v90
    %v1088 = vunpack.c.l.b16 %v91
    %v1089 = vunpack.c.l.b16 %v92
    %v1090 = vunpack.c.l.b16 %v93
    %v1091 = vunpack.c.l.b16 %v94
    %v1092 = vunpack.c.l.b16 %v95
    %v1093 = vunpack.c.l.b16 %v96
    %v1094 = vunpack.c.l.b16 %v97
    %v1095 = vunpack.c.l.b16 %v98
    %v1096 = vunpack.c.l.b16 %v99
    %v1097 = vunpack.c.l.b16 %v100
    %v1098 = vunpack.c.l.b16 %v101
    %v1099 = vunpack.c.l.b16 %v102
    %v1100 = vunpack.c.l.b16 %v103
    %v1101 = vunpack.c.l.b16 %v104
    %v1102 = vunpack.c.l.b16 %v105
    %v1103 = vunpack.c.l.b16 %v106
    %v1104 = vunpack.c.l.b16 %v107
    %v1105 = vunpack.c.l.b16 %v108
    %v1106 = vunpack.c.l.b16 %v109
    %v1107 = vunpack.c.l.b16 %v110
    %v1108 = vunpack.c.l.b16 %v111
    %v1109 = vunpack.c.l.b16 %v112
    %v1110 = vunpack.c.l.b16 %v113
    %v1111 = vunpack.c.l.b16 %v114
    %v1112 = vunpack.c.l.b16 %v115
    %v1113 = vunpack.c.l.b16 %v116
    %v1114 = vunpack.c.l.b16 %v117
    %v1115 = vunpack.c.l.b16 %v118
    %v1116 = vunpack.c.l.b16 %v119
    %v1117 = vunpack.c.l.b16 %v120
    %v1118 = vunpack.c.l.b16 %v121
    %v1119 = vunpack.c.l.b16 %v122
    %v1120 = vunpack.c.l.b16 %v123
    %v1121 = vunpack.c.l.b16 %v124
    %v1122 = vunpack.c.l.b16 %v125
    %v1123 = vunpack.c.l.b16 %v126
    %v1124 = vunpack.c.l.b16 %v127
    %v1125 = vunpack.c.l.b16 %v128
    %v1126 = vunpack.c.l.b16 %v129
    %v1127 = vunpack.c.l.b16 %v130
    %v1128 = vunpack.c.l.b16 %v131
    %v1129 = vunpack.c.l.b16 %v132
    %v1130 = vunpack.c.l.b16 %v133
    %v1131 = vunpack.c.l.b16 %v134
    %v1132 = vunpack.c.l.b16 %v135
    %v1133 = vunpack.c.l.b16 %v136
    %v1134 = vunpack.c.l.b16 %v137
    %v1135 = vunpack.c.l.b16 %v138
    %v1136 = vunpack.c.l.b16 %v139
    %v1137 = vunpack.c.l.b16 %v140
    %v1138 = vunpack.c.l.b16 %v141
    %v1139 = vunpack.c.l.b16 %v142
    %v1140 = vunpack.c.l.b16 %v143
    %v1141 = vunpack.c.l.b16 %v144
    %v1142 = vunpack.c.l.b16 %v145
    %v1143 = vunpack.c.l.b16 %v146
    %v1144 = vunpack.c.l.b16 %v147
    %v1145 = vunpack.c.l.b16 %v148
    %v1146 = vunpack.c.l.b16 %v149
    %v1147 = vunpack.c.l.b16 %v150
    %v1148 = vunpack.c.l.b16 %v151
    %v1149 = vunpack.c.l.b16 %v152
    %v1150 = vunpack.c.l.b16 %v153
    %v1151 = vunpack.c.l.b16 %v154
    %v1152 = vunpack.c.l.b16 %v155
    %v1153 = vunpack.c.l.b16 %v156
    %v1154 = vunpack.c.l.b16 %v157
    %v1155 = vunpack.c.l.b16 %v158
    %v1156 = vunpack.c.l.b16 %v159
    %v1157 = vunpack.c.l.b16 %v160
    %v1158 = vunpack.c.l.b16 %v161
    %v1159 = vunpack.c.l.b16 %v162
    %v1160 = vunpack.c.l.b16 %v163
    %v1161 = vunpack.c.l.b16 %v164
    %v1162 = vunpack.c.l.b16 %v165
    %v1163 = vunpack.c.l.b16 %v166
    %v1164 = vunpack.c.l.b16 %v167
    %v1165 = vunpack.c.l.b16 %v168
    %v1166 = vunpack.c.l.b16 %v169
    %v1167 = vunpack.c.l.b16 %v170
    %v1168 = vunpack.c.l.b16 %v171
    %v1169 = vunpack.c.l.b16 %v172
    %v1170 = vunpack.c.l.b16 %v173
    %v1171 = vunpack.c.l.b16 %v174
    %v1172 = vunpack.c.l.b16 %v175
    %v1173 = vunpack.c.l.b16 %v176
    %v1174 = vunpack.c.l.b16 %v177
    %v1175 = vunpack.c.l.b16 %v178
    %v1176 = vunpack.c.l.b16 %v179
    %v1177 = vunpack.c.l.b16 %v180
    %v1178 = vunpack.c.l.b16 %v181
    %v1179 = vunpack.c.l.b16 %v182
    %v1180 = vunpack.c.l.b16 %v183
    %v1181 = vunpack.c.l.b16 %v184
    %v1182 = vunpack.c.l.b16 %v185
    %v1183 = vunpack.c.l.b16 %v186
    %v1184 = vunpack.c.l.b16 %v187
    %v1185 = vunpack.c.l.b16 %v188
    %v1186 = vunpack.c.l.b16 %v189
    %v1187 = vunpack.c.l.b16 %v190
    %v1188 = vunpack.c.l.b16 %v191
    %v1189 = vunpack.c.l.b16 %v192
    %v1190 = vunpack.c.l.b16 %v193
    %v1191 = vunpack.c.l.b16 %v194
    %v1192 = vunpack.c.l.b16 %v195
    %v1193 = vunpack.c.l.b16 %v196
    %v1194 = vunpack.c.l.b16 %v197
    %v1195 = vunpack.c.l.b16 %v198
    %v1196 = vunpack.c.l.b16 %v199
    %v1197 = vunpack.c.l.b16 %v200
    %v1198 = vunpack.c.l.b16 %v201
    %v1199 = vunpack.c.l.b16 %v202
    %v1200 = vunpack.c.l.b16 %v203
    %v1201 = vunpack.c.l.b16 %v204
    %v1202 = vunpack.c.l.b16 %v205
    %v1203 = vunpack.c.l.b16 %v206
    %v1204 = vunpack.c.l.b16 %v207
    %v1205 = vunpack.c.l.b16 %v208
    %v1206 = vunpack.c.l.b16 %v209
    %v1207 = vunpack.c.l.b16 %v210
    %v1208 = vunpack.c.l.b16 %v211
    %v1209 = vunpack.c.l.b16 %v212
    %v1210 = vunpack.c.l.b16 %v213
    %v1211 = vunpack.c.l.b16 %v214
    %v1212 = vunpack.c.l.b16 %v215
    %v1213 = vunpack.c.l.b16 %v216
    %v1214 = vunpack.c.l.b16 %v217
    %v1215 = vunpack.c.l.b16 %v218
    %v1216 = vunpack.c.l.b16 %v219
    %v1217 = vunpack.c.l.b16 %v220
    %v1218 = vunpack.c.l.b16 %v221
    %v1219 = vunpack.c.l.b16 %v222
    %v1220 = vunpack.c.l.b16 %v223
    %v1221 = vunpack.c.l.b16 %v224
    %v1222 = vunpack.c.l.b16 %v225
    %v1223 = vunpack.c.l.b16 %v226
    %v1224 = vunpack.c.l.b16 %v227
    %v1225 = vunpack.c.l.b16 %v228
    %v1226 = vunpack.c.l.b16 %v229
    %v1227 = vunpack.c.l.b16 %v230
    %v1228 = vunpack.c.l.b16 %v231
    %v1229 = vunpack.c.l.b16 %v232
    %v1230 = vunpack.c.l.b16 %v233
    %v1231 = vunpack.c.l.b16 %v234
    %v1232 = vunpack.c.l.b16 %v235
    %v1233 = vunpack.c.l.b16 %v236
    %v1234 = vunpack.c.l.b16 %v237
    %v1235 = vunpack.c.l.b16 %v238
    %v1236 = vunpack.c.l.b16 %v239
    %v1237 = vunpack.c.l.b16 %v240
    %v1238 = vunpack.c.l.b16 %v241
    %v1239 = vunpack.c.l.b16 %v242
    %v1240 = vunpack.c.l.b16 %v243
    %v1241 = vunpack.c.l.b16 %v244
    %v1242 = vunpack.c.l.b16 %v245
    %v1243 = vunpack.c.l.b16 %v246
    %v1244 = vunpack.c.l.b16 %v247
    %v1245 = vunpack.c.l.b16 %v248
    %v1246 = vunpack.c.l.b16 %v249
    %v1247 = vunpack.c.l.b16 %v250
    %v1248 = vunpack.c.l.b16 %v251
    %v1249 = vunpack.c.l.b16 %v252
    %v1250 = vunpack.c.l.b16 %v253
    %v1251 = vunpack.c.l.b16 %v254
    %v1252 = vunpack.c.l.b16 %v255
    %v1253 = vunpack.c.l.b16 %v256
    %v1254 = vunpack.c.l.b16 %v257
    %v1255 = vunpack.c.l.b16 %v258
    %v1256 = vunpack.c.l.b16 %v259
    %v1257 = vunpack.c.l.b16 %v260
    %v1258 = vunpack.c.l.b16 %v261
    %v1259 = vunpack.c.l.b16 %v262
    %v1260 = vunpack.c.l.b16 %v263
    %v1261 = vunpack.c.l.b16 %v264
    %v1262 = vunpack.c.l.b16 %v265
    %v1263 = vunpack.c.l.b16 %v266
    %v1264 = vunpack.c.l.b16 %v267
    %v1265 = vunpack.c.l.b16 %v268
    %v1266 = vunpack.c.l.b16 %v269
    %v1267 = vunpack.c.l.b16 %v270
    %v1268 = vunpack.c.l.b16 %v271
    %v1269 = vunpack.c.l.b16 %v272
    %v1270 = vunpack.c.l.b16 %v273
    %v1271 = vunpack.c.l.b16 %v274
    %v1272 = vunpack.c.l.b16 %v275
    %v1273 = vunpack.c.l.b16 %v276
    %v1274 = vunpack.c.l.b16 %v277
    %v1275 = vunpack.c.l.b16 %v278
    %v1276 = vunpack.c.l.b16 %v279
    %v1277 = vunpack.c.l.b16 %v280
    %v1278 = vunpack.c.l.b16 %v281
    %v1279 = vunpack.c.l.b16 %v282
    %v1280 = vunpack.c.l.b16 %v283
    %v1281 = vunpack.c.l.b16 %v284
    %v1282 = vunpack.c.l.b16 %v285
    %v1283 = vunpack.c.l.b16 %v286
    %v1284 = vunpack.c.l.b16 %v287
    %v1285 = vunpack.c.l.b16 %v288
    %v1286 = vunpack.c.l.b16 %v289
    %v1287 = vunpack.c.l.b16 %v290
    %v1288 = vunpack.c.l.b16 %v291
    %v1289 = vunpack.c.l.b16 %v292
    %v1290 = vunpack.c.l.b16 %v293
    %v1291 = vunpack.c.l.b16 %v294
    %v1292 = vunpack.c.l.b16 %v295
    %v1293 = vunpack.c.l.b16 %v296
    %v1294 = vunpack.c.l.b16 %v297
    %v1295 = vunpack.c.l.b16 %v298
    %v1296 = vunpack.c.l.b16 %v299
    %v1297 = vunpack.c.l.b16 %v300
    %v1298 = vunpack.c.l.b16 %v301
    %v1299 = vunpack.c.l.b16 %v302
    %v1300 = vunpack.c.l.b16 %v303
    %v1301 = vunpack.c.l.b16 %v304
    %v1302 = vunpack.c.l.b16 %v305
    %v1303 = vunpack.c.l.b16 %v306
    %v1304 = vunpack.c.l.b16 %v307
    %v1305 = vunpack.c.l.b16 %v308
    %v1306 = vunpack.c.l.b16 %v309
    %v1307 = vunpack.c.l.b16 %v310
    %v1308 = vunpack.c.l.b16 %v311
    %v1309 = vunpack.c.l.b16 %v312
    %v1310 = vunpack.c.l.b16 %v313
    %v1311 = vunpack.c.l.b16 %v314
    %v1312 = vunpack.c.l.b16 %v315
    %v1313 = vunpack.c.l.b16 %v316
    %v1314 = vunpack.c.l.b16 %v317
    %v1315 = vunpack.c.l.b16 %v318
    %v1316 = vunpack.c.l.b16 %v319
    %v1317 = vunpack.c.l.b16 %v320
    %v1318 = vunpack.c.l.b16 %v321
    %v1319 = vunpack.c.l.b16 %v322
    %v1320 = vunpack.c.l.b16 %v323
    %v1321 = vunpack.c.l.b16 %v324
    %v1322 = vunpack.c.l.b16 %v325
    %v1323 = vunpack.c.l.b16 %v326
    %v1324 = vunpack.c.l.b16 %v327
    %v1325 = vunpack.c.l.b16 %v328
    %v1326 = vunpack.c.l.b16 %v329
    %v1327 = vunpack.c.l.b16 %v330
    %v1328 = vunpack.c.l.b16 %v331
    %v1329 = vunpack.c.l.b16 %v332
    %v1330 = vunpack.c.l.b16 %v333
    %v1331 = vunpack.c.l.b16 %v334
    %v1332 = vunpack.c.l.b16 %v335
    %v1333 = vunpack.c.l.b16 %v336
    %v1334 = vunpack.c.l.b16 %v337
    %v1335 = vunpack.c.l.b16 %v338
    %v1336 = vunpack.c.l.b16 %v339
    %v1337 = vunpack.c.l.b16 %v340
    %v1338 = vunpack.c.l.b16 %v341
    %v1339 = vunpack.c.l.b16 %v342
    %v1340 = vunpack.c.l.b16 %v343
    %v1341 = vunpack.c.l.b16 %v344
    %v1342 = vunpack.c.l.b16 %v345
    %v1343 = vunpack.c.l.b16 %v346
    %v1344 = vunpack.c.l.b16 %v347
    %v1345 = vunpack.c.l.b16 %v348
    %v1346 = vunpack.c.l.b16 %v349
    %v1347 = vunpack.c.l.b16 %v350
    %v1348 = vunpack.c.l.b16 %v351
    %v1349 = vunpack.c.l.b16 %v352
    %v1350 = vunpack.c.l.b16 %v353
    %v1351 = vunpack.c.l.b16 %v354
    %v1352 = vunpack.c.l.b16 %v355
    %v1353 = vunpack.c.l.b16 %v356
    %v1354 = vunpack.c.l.b16 %v357
    %v1355 = vunpack.c.l.b16 %v358
    %v1356 = vunpack.c.l.b16 %v359
    %v1357 = vunpack.c.l.b16 %v360
    %v1358 = vunpack.c.l.b16 %v361
    %v1359 = vunpack.c.l.b16 %v362
    %v1360 = vunpack.c.l.b16 %v363
    %v1361 = vunpack.c.l.b16 %v364
    %v1362 = vunpack.c.l.b16 %v365
    %v1363 = vunpack.c.l.b16 %v366
    %v1364 = vunpack.c.l.b16 %v367
    %v1365 = vunpack.c.l.b16 %v368
    %v1366 = vunpack.c.l.b16 %v369
    %v1367 = vunpack.c.l.b16 %v370
    %v1368 = vunpack.c.l.b16 %v371
    %v1369 = vunpack.c.l.b16 %v372
    %v1370 = vunpack.c.l.b16 %v373
    %v1371 = vunpack.c.l.b16 %v374
    %v1372 = vunpack.c.l.b16 %v375
    %v1373 = vunpack.c.l.b16 %v376
    %v1374 = vunpack.c.l.b16 %v377
    %v1375 = vunpack.c.l.b16 %v378
    %v1376 = vunpack.c.l.b16 %v379
    %v1377 = vunpack.c.l.b16 %v380
    %v1378 = vunpack.c.l.b16 %v381
    %v1379 = vunpack.c.l.b16 %v382
    %v1380 = vunpack.c.l.b16 %v383
    %v1381 = vunpack.c.l.b16 %v384
    %v1382 = vunpack.c.l.b16 %v385
    %v1383 = vunpack.c.l.b16 %v386
    %v1384 = vunpack.c.l.b16 %v387
    %v1385 = vunpack.c.l.b16 %v388
    %v1386 = vunpack.c.l.b16 %v389
    %v1387 = vunpack.c.l.b16 %v390
    %v1388 = vunpack.c.l.b16 %v391
    %v1389 = vunpack.c.l.b16 %v392
    %v1390 = vunpack.c.l.b16 %v393
    %v1391 = vunpack.c.l.b16 %v394
    %v1392 = vunpack.c.l.b16 %v395
    %v1393 = vunpack.c.l.b16 %v396
    %v1394 = vunpack.c.l.b16 %v397
    %v1395 = vunpack.c.l.b16 %v398
    %v1396 = vunpack.c.l.b16 %v399
    %v1397 = vunpack.c.l.b16 %v400
    %v1398 = vunpack.c.l.b16 %v401
    %v1399 = vunpack.c.l.b16 %v402
    %v1400 = vunpack.c.l.b16 %v403
    %v1401 = vunpack.c.l.b16 %v404
    %v1402 = vunpack.c.l.b16 %v405
    %v1403 = vunpack.c.l.b16 %v406
    %v1404 = vunpack.c.l.b16 %v407
    %v1405 = vunpack.c.l.b16 %v408
    %v1406 = vunpack.c.l.b16 %v409
    %v1407 = vunpack.c.l.b16 %v410
    %v1408 = vunpack.c.l.b16 %v411
    %v1409 = vunpack.c.l.b16 %v412
    %v1410 = vunpack.c.l.b16 %v413
    %v1411 = vunpack.c.l.b16 %v414
    %v1412 = vunpack.c.l.b16 %v415
    %v1413 = vunpack.c.l.b16 %v416
    %v1414 = vunpack.c.l.b16 %v417
    %v1415 = vunpack.c.l.b16 %v418
    %v1416 = vunpack.c.l.b16 %v419
    %v1417 = vunpack.c.l.b16 %v420
    %v1418 = vunpack.c.l.b16 %v421
    %v1419 = vunpack.c.l.b16 %v422
    %v1420 = vunpack.c.l.b16 %v423
    %v1421 = vunpack.c.l.b16 %v424
    %v1422 = vunpack.c.l.b16 %v425
    %v1423 = vunpack.c.l.b16 %v426
    %v1424 = vunpack.c.l.b16 %v427
    %v1425 = vunpack.c.l.b16 %v428
    %v1426 = vunpack.c.l.b16 %v429
    %v1427 = vunpack.c.l.b16 %v430
    %v1428 = vunpack.c.l.b16 %v431
    %v1429 = vpack.c.b16 %v1030, %v1029
    %v1430 = vpack.c.b16 %v1032, %v1031
    %v1431 = vpack.c.b16 %v1034, %v1033
    %v1432 = vpack.c.b16 %v1036, %v1035
    %v1433 = vpack.c.b16 %v1038, %v1037
    %v1434 = vpack.c.b16 %v1040, %v1039
    %v1435 = vpack.c.b16 %v1042, %v1041
    %v1436 = vpack.c.b16 %v1044, %v1043
    %v1437 = vpack.c.b16 %v1046, %v1045
    %v1438 = vpack.c.b16 %v1048, %v1047
    %v1439 = vpack.c.b16 %v1050, %v1049
    %v1440 = vpack.c.b16 %v1052, %v1051
    %v1441 = vpack.c.b16 %v1054, %v1053
    %v1442 = vpack.c.b16 %v1056, %v1055
    %v1443 = vpack.c.b16 %v1058, %v1057
    %v1444 = vpack.c.b16 %v1060, %v1059
    %v1445 = vpack.c.b16 %v1062, %v1061
    %v1446 = vpack.c.b16 %v1064, %v1063
    %v1447 = vpack.c.b16 %v1066, %v1065
    %v1448 = vpack.c.b16 %v1068, %v1067
    %v1449 = vpack.c.b16 %v1070, %v1069
    %v1450 = vpack.c.b16 %v1072, %v1071
    %v1451 = vpack.c.b16 %v1074, %v1073
    %v1452 = vpack.c.b16 %v1076, %v1075
    %v1453 = vpack.c.b16 %v1078, %v1077
    %v1454 = vpack.c.b16 %v1080, %v1079
    %v1455 = vpack.c.b16 %v1082, %v1081
    %v1456 = vpack.c.b16 %v1084, %v1083
    %v1457 = vpack.c.b16 %v1086, %v1085
    %v1458 = vpack.c.b16 %v1088, %v1087
    %v1459 = vpack.c.b16 %v1090, %v1089
    %v1460 = vpack.c.b16 %v1092, %v1091
    %v1461 = vpack.c.b16 %v1094, %v1093
    %v1462 = vpack.c.b16 %v1096, %v1095
    %v1463 = vpack.c.b16 %v1098, %v1097
    %v1464 = vpack.c.b16 %v1100, %v1099
    %v1465 = vpack.c.b16 %v1102, %v1101
    %v1466 = vpack.c.b16 %v1104, %v1103
    %v1467 = vpack.c.b16 %v1106, %v1105
    %v1468 = vpack.c.b16 %v1108, %v1107
    %v1469 = vpack.c.b16 %v1110, %v1109
    %v1470 = vpack.c.b16 %v1112, %v1111
    %v1471 = vpack.c.b16 %v1114, %v1113
    %v1472 = vpack.c.b16 %v1116, %v1115
    %v1473 = vpack.c.b16 %v1118, %v1117
    %v1474 = vpack.c.b16 %v1120, %v1119
    %v1475 = vpack.c.b16 %v1122, %v1121
    %v1476 = vpack.c.b16 %v1124, %v1123
    %v1477 = vpack.c.b16 %v1126, %v1125
    %v1478 = vpack.c.b16 %v1128, %v1127
    %v1479 = vpack.c.b16 %v1130, %v1129
    %v1480 = vpack.c.b16 %v1132, %v1131
    %v1481 = vpack.c.b16 %v1134, %v1133
    %v1482 = vpack.c.b16 %v1136, %v1135
    %v1483 = vpack.c.b16 %v1138, %v1137
    %v1484 = vpack.c.b16 %v1140, %v1139
    %v1485 = vpack.c.b16 %v1142, %v1141
    %v1486 = vpack.c.b16 %v1144, %v1143
    %v1487 = vpack.c.b16 %v1146, %v1145
    %v1488 = vpack.c.b16 %v1148, %v1147
    %v1489 = vpack.c.b16 %v1150, %v1149
    %v1490 = vpack.c.b16 %v1152, %v1151
    %v1491 = vpack.c.b16 %v1154, %v1153
    %v1492 = vpack.c.b16 %v1156, %v1155
    %v1493 = vpack.c.b16 %v1158, %v1157
    %v1494 = vpack.c.b16 %v1160, %v1159
    %v1495 = vpack.c.b16 %v1162, %v1161
    %v1496 = vpack.c.b16 %v1164, %v1163
    %v1497 = vpack.c.b16 %v1166, %v1165
    %v1498 = vpack.c.b16 %v1168, %v1167
    %v1499 = vpack.c.b16 %v1170, %v1169
    %v1500 = vpack.c.b16 %v1172, %v1171
    %v1501 = vpack.c.b16 %v1174, %v1173
    %v1502 = vpack.c.b16 %v1176, %v1175
    %v1503 = vpack.c.b16 %v1178, %v1177
    %v1504 = vpack.c.b16 %v1180, %v1179
    %v1505 = vpack.c.b16 %v1182, %v1181
    %v1506 = vpack.c.b16 %v1184, %v1183
    %v1507 = vpack.c.b16 %v1186, %v1185
    %v1508 = vpack.c.b16 %v1188, %v1187
    %v1509 = vpack.c.b16 %v1190, %v1189
    %v1510 = vpack.c.b16 %v1192, %v1191
    %v1511 = vpack.c.b16 %v1194, %v1193
    %v1512 = vpack.c.b16 %v1196, %v1195
    %v1513 = vpack.c.b16 %v1198, %v1197
    %v1514 = vpack.c.b16 %v1200, %v1199
    %v1515 = vpack.c.b16 %v1202, %v1201
    %v1516 = vpack.c.b16 %v1204, %v1203
    %v1517 = vpack.c.b16 %v1206, %v1205
    %v1518 = vpack.c.b16 %v1208, %v1207
    %v1519 = vpack.c.b16 %v1210, %v1209
    %v1520 = vpack.c.b16 %v1212, %v1211
    %v1521 = vpack.c.b16 %v1214, %v1213
    %v1522 = vpack.c.b16 %v1216, %v1215
    %v1523 = vpack.c.b16 %v1218, %v1217
    %v1524 = vpack.c.b16 %v1220, %v1219
    %v1525 = vpack.c.b16 %v1222, %v1221
    %v1526 = vpack.c.b16 %v1224, %v1223
    %v1527 = vpack.c.b16 %v1226, %v1225
    %v1528 = vpack.c.b16 %v1228, %v1227
    %v1529 = vpack.c.b16 %v1230, %v1229
    %v1530 = vpack.c.b16 %v1232, %v1231
    %v1531 = vpack.c.b16 %v1234, %v1233
    %v1532 = vpack.c.b16 %v1236, %v1235
    %v1533 = vpack.c.b16 %v1238, %v1237
    %v1534 = vpack.c.b16 %v1240, %v1239
    %v1535 = vpack.c.b16 %v1242, %v1241
    %v1536 = vpack.c.b16 %v1244, %v1243
    %v1537 = vpack.c.b16 %v1246, %v1245
    %v1538 = vpack.c.b16 %v1248, %v1247
    %v1539 = vpack.c.b16 %v1250, %v1249
    %v1540 = vpack.c.b16 %v1252, %v1251
    %v1541 = vpack.c.b16 %v1254, %v1253
    %v1542 = vpack.c.b16 %v1256, %v1255
    %v1543 = vpack.c.b16 %v1258, %v1257
    %v1544 = vpack.c.b16 %v1260, %v1259
    %v1545 = vpack.c.b16 %v1262, %v1261
    %v1546 = vpack.c.b16 %v1264, %v1263
    %v1547 = vpack.c.b16 %v1266, %v1265
    %v1548 = vpack.c.b16 %v1268, %v1267
    %v1549 = vpack.c.b16 %v1270, %v1269
    %v1550 = vpack.c.b16 %v1272, %v1271
    %v1551 = vpack.c.b16 %v1274, %v1273
    %v1552 = vpack.c.b16 %v1276, %v1275
    %v1553 = vpack.c.b16 %v1278, %v1277
    %v1554 = vpack.c.b16 %v1280, %v1279
    %v1555 = vpack.c.b16 %v1282, %v1281
    %v1556 = vpack.c.b16 %v1284, %v1283
    %v1557 = vpack.c.b16 %v1286, %v1285
    %v1558 = vpack.c.b16 %v1288, %v1287
    %v1559 = vpack.c.b16 %v1290, %v1289
    %v1560 = vpack.c.b16 %v1292, %v1291
    %v1561 = vpack.c.b16 %v1294, %v1293
    %v1562 = vpack.c.b16 %v1296, %v1295
    %v1563 = vpack.c.b16 %v1298, %v1297
    %v1564 = vpack.c.b16 %v1300, %v1299
    %v1565 = vpack.c.b16 %v1302, %v1301
    %v1566 = vpack.c.b16 %v1304, %v1303
    %v1567 = vpack.c.b16 %v1306, %v1305
    %v1568 = vpack.c.b16 %v1308, %v1307
    %v1569 = vpack.c.b16 %v1310, %v1309
    %v1570 = vpack.c.b16 %v1312, %v1311
    %v1571 = vpack.c.b16 %v1314, %v1313
    %v1572 = vpack.c.b16 %v1316, %v1315
    %v1573 = vpack.c.b16 %v1318, %v1317
    %v1574 = vpack.c.b16 %v1320, %v1319
    %v1575 = vpack.c.b16 %v1322, %v1321
    %v1576 = vpack.c.b16 %v1324, %v1323
    %v1577 = vpack.c.b16 %v1326, %v1325
    %v1578 = vpack.c.b16 %v1328, %v1327
    %v1579 = vpack.c.b16 %v1330, %v1329
    %v1580 = vpack.c.b16 %v1332, %v1331
    %v1581 = vpack.c.b16 %v1334, %v1333
    %v1582 = vpack.c.b16 %v1336, %v1335
    %v1583 = vpack.c.b16 %v1338, %v1337
    %v1584 = vpack.c.b16 %v1340, %v1339
    %v1585 = vpack.c.b16 %v1342, %v1341
    %v1586 = vpack.c.b16 %v1344, %v1343
    %v1587 = vpack.c.b16 %v1346, %v1345
    %v1588 = vpack.c.b16 %v1348, %v1347
    %v1589 = vpack.c.b16 %v1350, %v1349
    %v1590 = vpack.c.b16 %v1352, %v1351
    %v1591 = vpack.c.b16 %v1354, %v1353
    %v1592 = vpack.c.b16 %v1356, %v1355
    %v1593 = vpack.c.b16 %v1358, %v1357
    %v1594 = vpack.c.b16 %v1360, %v1359
    %v1595 = vpack.c.b16 %v1362, %v1361
    %v1596 = vpack.c.b16 %v1364, %v1363
    %v1597 = vpack.c.b16 %v1366, %v1365
    %v1598 = vpack.c.b16 %v1368, %v1367
    %v1599 = vpack.c.b16 %v1370, %v1369
    %v1600 = vpack.c.b16 %v1372, %v1371
    %v1601 = vpack.c.b16 %v1374, %v1373
    %v1602 = vpack.c.b16 %v1376, %v1375
    %v1603 = vpack.c.b16 %v1378, %v1377
    %v1604 = vpack.c.b16 %v1380, %v1379
    %v1605 = vpack.c.b16 %v1382, %v1381
    %v1606 = vpack.c.b16 %v1384, %v1383
    %v1607 = vpack.c.b16 %v1386, %v1385
    %v1608 = vpack.c.b16 %v1388, %v1387
    %v1609 = vpack.c.b16 %v1390, %v1389
    %v1610 = vpack.c.b16 %v1392, %v1391
    %v1611 = vpack.c.b16 %v1394, %v1393
    %v1612 = vpack.c.b16 %v1396, %v1395
    %v1613 = vpack.c.b16 %v1398, %v1397
    %v1614 = vpack.c.b16 %v1400, %v1399
    %v1615 = vpack.c.b16 %v1402, %v1401
    %v1616 = vpack.c.b16 %v1404, %v1403
    %v1617 = vpack.c.b16 %v1406, %v1405
    %v1618 = vpack.c.b16 %v1408, %v1407
    %v1619 = vpack.c.b16 %v1410, %v1409
    %v1620 = vpack.c.b16 %v1412, %v1411
    %v1621 = vpack.c.b16 %v1414, %v1413
    %v1622 = vpack.c.b16 %v1416, %v1415
    %v1623 = vpack.c.b16 %v1418, %v1417
    %v1624 = vpack.c.b16 %v1420, %v1419
    %v1625 = vpack.c.b16 %v1422, %v1421
    %v1626 = vpack.c.b16 %v1424, %v1423
    %v1627 = vpack.c.b16 %v1426, %v1425
    %v1628 = vpack.c.b16 %v1428, %v1427
    %1829 = vmatprep.subr.bf16.mxu0 0
    %1830 = vmatpush1.bf16.msra.mxu0 %v1436
    %1831 = vmatprep.subr.bf16.mxu0 0
    %1832 = vmatpush1.bf16.msra.mxu0 %v1435
    %1833 = vmatprep.subr.bf16.mxu0 0
    %1834 = vmatpush1.bf16.msra.mxu0 %v1434
    %1835 = vmatprep.subr.bf16.mxu0 0
    %1836 = vmatpush1.bf16.msra.mxu0 %v1433
    %1837 = vmatprep.subr.bf16.mxu0 0
    %1838 = vmatpush1.bf16.msra.mxu0 %v1432
    %1839 = vmatprep.subr.bf16.mxu0 0
    %1840 = vmatpush1.bf16.msra.mxu0 %v1431
    %1841 = vmatprep.subr.bf16.mxu0 0
    %1842 = vmatpush1.bf16.msra.mxu0 %v1430
    %1843 = vmatprep.subr.bf16.mxu0 0
    %1844 = vmatpush1.bf16.msra.mxu0 %v1429
    %1845 = vmatprep.subr.bf16.mxu0 0
    %1846 = vmatpush2.bf16.msra.mxu0 %v1444
    %1847 = vmatprep.subr.bf16.mxu0 0
    %1848 = vmatpush2.bf16.msra.mxu0 %v1443
    %1849 = vmatprep.subr.bf16.mxu0 0
    %1850 = vmatpush2.bf16.msra.mxu0 %v1442
    %1851 = vmatprep.subr.bf16.mxu0 0
    %1852 = vmatpush2.bf16.msra.mxu0 %v1441
    %1853 = vmatprep.subr.bf16.mxu0 0
    %1854 = vmatpush2.bf16.msra.mxu0 %v1440
    %1855 = vmatprep.subr.bf16.mxu0 0
    %1856 = vmatpush2.bf16.msra.mxu0 %v1439
    %1857 = vmatprep.subr.bf16.mxu0 0
    %1858 = vmatpush2.bf16.msra.mxu0 %v1438
    %1859 = vmatprep.subr.bf16.mxu0 0
    %1860 = vmatpush2.bf16.msra.mxu0 %v1437
    %1861 = vmatprep.mubr.bf16.mxu0 %v480
    %1862 = vmatmul.mubr.bf16.gmra.mxu0 %v466
    %v1863 = vpop.f32.mrf.mxu0
    %v1864 = vadd.f32 %v437, %v1863
    %v1865 = vpop.f32.mrf.mxu0
    %v1866 = vpop.f32.mrf.mxu0
    %v1867 = vpop.f32.mrf.mxu0
    %1868 = vdwg.mxu0
    %1869 = vmatprep.subr.bf16.mxu0 0
    %1870 = vmatpush1.bf16.msra.mxu0 %v1452
    %1871 = vmatprep.subr.bf16.mxu0 0
    %1872 = vmatpush1.bf16.msra.mxu0 %v1451
    %1873 = vmatprep.subr.bf16.mxu0 0
    %1874 = vmatpush1.bf16.msra.mxu0 %v1450
    %1875 = vmatprep.subr.bf16.mxu0 0
    %1876 = vmatpush1.bf16.msra.mxu0 %v1449
    %1877 = vmatprep.subr.bf16.mxu0 0
    %1878 = vmatpush1.bf16.msra.mxu0 %v1448
    %1879 = vmatprep.subr.bf16.mxu0 0
    %1880 = vmatpush1.bf16.msra.mxu0 %v1447
    %1881 = vmatprep.subr.bf16.mxu0 0
    %1882 = vmatpush1.bf16.msra.mxu0 %v1446
    %1883 = vmatprep.subr.bf16.mxu0 0
    %1884 = vmatpush1.bf16.msra.mxu0 %v1445
    %1885 = vmatprep.subr.bf16.mxu0 0
    %1886 = vmatpush2.bf16.msra.mxu0 %v1460
    %1887 = vmatprep.subr.bf16.mxu0 0
    %1888 = vmatpush2.bf16.msra.mxu0 %v1459
    %1889 = vmatprep.subr.bf16.mxu0 0
    %1890 = vmatpush2.bf16.msra.mxu0 %v1458
    %1891 = vmatprep.subr.bf16.mxu0 0
    %1892 = vmatpush2.bf16.msra.mxu0 %v1457
    %1893 = vmatprep.subr.bf16.mxu0 0
    %1894 = vmatpush2.bf16.msra.mxu0 %v1456
    %1895 = vmatprep.subr.bf16.mxu0 0
    %1896 = vmatpush2.bf16.msra.mxu0 %v1455
    %1897 = vmatprep.subr.bf16.mxu0 0
    %1898 = vmatpush2.bf16.msra.mxu0 %v1454
    %1899 = vmatprep.subr.bf16.mxu0 0
    %1900 = vmatpush2.bf16.msra.mxu0 %v1453
    %1901 = vmatprep.mubr.bf16.mxu0 %v490
    %1902 = vmatmul.mubr.bf16.gmra.mxu0 %v488
    %v1903 = vpop.f32.mrf.mxu0
    %v1904 = vadd.f32 %v1864, %v1903
    %v1905 = vpop.f32.mrf.mxu0
    %v1906 = vpop.f32.mrf.mxu0
    %v1907 = vpop.f32.mrf.mxu0
    %1908 = vdwg.mxu0
    %1909 = vmatprep.subr.bf16.mxu0 0
    %1910 = vmatpush1.bf16.msra.mxu0 %v1468
    %1911 = vmatprep.subr.bf16.mxu0 0
    %1912 = vmatpush1.bf16.msra.mxu0 %v1467
    %1913 = vmatprep.subr.bf16.mxu0 0
    %1914 = vmatpush1.bf16.msra.mxu0 %v1466
    %1915 = vmatprep.subr.bf16.mxu0 0
    %1916 = vmatpush1.bf16.msra.mxu0 %v1465
    %1917 = vmatprep.subr.bf16.mxu0 0
    %1918 = vmatpush1.bf16.msra.mxu0 %v1464
    %1919 = vmatprep.subr.bf16.mxu0 0
    %1920 = vmatpush1.bf16.msra.mxu0 %v1463
    %1921 = vmatprep.subr.bf16.mxu0 0
    %1922 = vmatpush1.bf16.msra.mxu0 %v1462
    %1923 = vmatprep.subr.bf16.mxu0 0
    %1924 = vmatpush1.bf16.msra.mxu0 %v1461
    %1925 = vmatprep.subr.bf16.mxu0 0
    %1926 = vmatpush2.bf16.msra.mxu0 %v1476
    %1927 = vmatprep.subr.bf16.mxu0 0
    %1928 = vmatpush2.bf16.msra.mxu0 %v1475
    %1929 = vmatprep.subr.bf16.mxu0 0
    %1930 = vmatpush2.bf16.msra.mxu0 %v1474
    %1931 = vmatprep.subr.bf16.mxu0 0
    %1932 = vmatpush2.bf16.msra.mxu0 %v1473
    %1933 = vmatprep.subr.bf16.mxu0 0
    %1934 = vmatpush2.bf16.msra.mxu0 %v1472
    %1935 = vmatprep.subr.bf16.mxu0 0
    %1936 = vmatpush2.bf16.msra.mxu0 %v1471
    %1937 = vmatprep.subr.bf16.mxu0 0
    %1938 = vmatpush2.bf16.msra.mxu0 %v1470
    %1939 = vmatprep.subr.bf16.mxu0 0
    %1940 = vmatpush2.bf16.msra.mxu0 %v1469
    %1941 = vmatprep.mubr.bf16.mxu0 %v487
    %1942 = vmatmul.mubr.bf16.gmra.mxu0 %v473
    %v1943 = vpop.f32.mrf.mxu0
    %v1944 = vadd.f32 %v1904, %v1943
    %v1945 = vpop.f32.mrf.mxu0
    %v1946 = vpop.f32.mrf.mxu0
    %v1947 = vpop.f32.mrf.mxu0
    %1948 = vdwg.mxu0
    %1949 = vmatprep.subr.bf16.mxu0 0
    %1950 = vmatpush1.bf16.msra.mxu0 %v1484
    %1951 = vmatprep.subr.bf16.mxu0 0
    %1952 = vmatpush1.bf16.msra.mxu0 %v1483
    %1953 = vmatprep.subr.bf16.mxu0 0
    %1954 = vmatpush1.bf16.msra.mxu0 %v1482
    %1955 = vmatprep.subr.bf16.mxu0 0
    %1956 = vmatpush1.bf16.msra.mxu0 %v1481
    %1957 = vmatprep.subr.bf16.mxu0 0
    %1958 = vmatpush1.bf16.msra.mxu0 %v1480
    %1959 = vmatprep.subr.bf16.mxu0 0
    %1960 = vmatpush1.bf16.msra.mxu0 %v1479
    %1961 = vmatprep.subr.bf16.mxu0 0
    %1962 = vmatpush1.bf16.msra.mxu0 %v1478
    %1963 = vmatprep.subr.bf16.mxu0 0
    %1964 = vmatpush1.bf16.msra.mxu0 %v1477
    %1965 = vmatprep.subr.bf16.mxu0 0
    %1966 = vmatpush2.bf16.msra.mxu0 %v1492
    %1967 = vmatprep.subr.bf16.mxu0 0
    %1968 = vmatpush2.bf16.msra.mxu0 %v1491
    %1969 = vmatprep.subr.bf16.mxu0 0
    %1970 = vmatpush2.bf16.msra.mxu0 %v1490
    %1971 = vmatprep.subr.bf16.mxu0 0
    %1972 = vmatpush2.bf16.msra.mxu0 %v1489
    %1973 = vmatprep.subr.bf16.mxu0 0
    %1974 = vmatpush2.bf16.msra.mxu0 %v1488
    %1975 = vmatprep.subr.bf16.mxu0 0
    %1976 = vmatpush2.bf16.msra.mxu0 %v1487
    %1977 = vmatprep.subr.bf16.mxu0 0
    %1978 = vmatpush2.bf16.msra.mxu0 %v1486
    %1979 = vmatprep.subr.bf16.mxu0 0
    %1980 = vmatpush2.bf16.msra.mxu0 %v1485
    %1981 = vmatprep.mubr.bf16.mxu0 %v491
    %1982 = vmatmul.mubr.bf16.gmra.mxu0 %v489
    %v1983 = vpop.f32.mrf.mxu0
    %v1984 = vadd.f32 %v1944, %v1983
    %v1985 = vpop.f32.mrf.mxu0
    %v1986 = vpop.f32.mrf.mxu0
    %v1987 = vpop.f32.mrf.mxu0
    %1988 = vdwg.mxu0
    %1989 = vmatprep.subr.bf16.mxu0 0
    %1990 = vmatpush1.bf16.msra.mxu0 %v1500
    %1991 = vmatprep.subr.bf16.mxu0 0
    %1992 = vmatpush1.bf16.msra.mxu0 %v1499
    %1993 = vmatprep.subr.bf16.mxu0 0
    %1994 = vmatpush1.bf16.msra.mxu0 %v1498
    %1995 = vmatprep.subr.bf16.mxu0 0
    %1996 = vmatpush1.bf16.msra.mxu0 %v1497
    %1997 = vmatprep.subr.bf16.mxu0 0
    %1998 = vmatpush1.bf16.msra.mxu0 %v1496
    %1999 = vmatprep.subr.bf16.mxu0 0
    %2000 = vmatpush1.bf16.msra.mxu0 %v1495
    %2001 = vmatprep.subr.bf16.mxu0 0
    %2002 = vmatpush1.bf16.msra.mxu0 %v1494
    %2003 = vmatprep.subr.bf16.mxu0 0
    %2004 = vmatpush1.bf16.msra.mxu0 %v1493
    %2005 = vmatprep.subr.bf16.mxu0 0
    %2006 = vmatpush2.bf16.msra.mxu0 %v1508
    %2007 = vmatprep.subr.bf16.mxu0 0
    %2008 = vmatpush2.bf16.msra.mxu0 %v1507
    %2009 = vmatprep.subr.bf16.mxu0 0
    %2010 = vmatpush2.bf16.msra.mxu0 %v1506
    %2011 = vmatprep.subr.bf16.mxu0 0
    %2012 = vmatpush2.bf16.msra.mxu0 %v1505
    %2013 = vmatprep.subr.bf16.mxu0 0
    %2014 = vmatpush2.bf16.msra.mxu0 %v1504
    %2015 = vmatprep.subr.bf16.mxu0 0
    %2016 = vmatpush2.bf16.msra.mxu0 %v1503
    %2017 = vmatprep.subr.bf16.mxu0 0
    %2018 = vmatpush2.bf16.msra.mxu0 %v1502
    %2019 = vmatprep.subr.bf16.mxu0 0
    %2020 = vmatpush2.bf16.msra.mxu0 %v1501
    %2021 = vmatprep.mubr.bf16.mxu0 %v529
    %2022 = vmatmul.mubr.bf16.gmra.mxu0 %v515
    %v2023 = vpop.f32.mrf.mxu0
    %v2024 = vadd.f32 %v1984, %v2023
    %v2025 = vpop.f32.mrf.mxu0
    %v2026 = vpop.f32.mrf.mxu0
    %v2027 = vpop.f32.mrf.mxu0
    %2028 = vdwg.mxu0
    %2029 = vmatprep.subr.bf16.mxu0 0
    %2030 = vmatpush1.bf16.msra.mxu0 %v1516
    %2031 = vmatprep.subr.bf16.mxu0 0
    %2032 = vmatpush1.bf16.msra.mxu0 %v1515
    %2033 = vmatprep.subr.bf16.mxu0 0
    %2034 = vmatpush1.bf16.msra.mxu0 %v1514
    %2035 = vmatprep.subr.bf16.mxu0 0
    %2036 = vmatpush1.bf16.msra.mxu0 %v1513
    %2037 = vmatprep.subr.bf16.mxu0 0
    %2038 = vmatpush1.bf16.msra.mxu0 %v1512
    %2039 = vmatprep.subr.bf16.mxu0 0
    %2040 = vmatpush1.bf16.msra.mxu0 %v1511
    %2041 = vmatprep.subr.bf16.mxu0 0
    %2042 = vmatpush1.bf16.msra.mxu0 %v1510
    %2043 = vmatprep.subr.bf16.mxu0 0
    %2044 = vmatpush1.bf16.msra.mxu0 %v1509
    %2045 = vmatprep.subr.bf16.mxu0 0
    %2046 = vmatpush2.bf16.msra.mxu0 %v1524
    %2047 = vmatprep.subr.bf16.mxu0 0
    %2048 = vmatpush2.bf16.msra.mxu0 %v1523
    %2049 = vmatprep.subr.bf16.mxu0 0
    %2050 = vmatpush2.bf16.msra.mxu0 %v1522
    %2051 = vmatprep.subr.bf16.mxu0 0
    %2052 = vmatpush2.bf16.msra.mxu0 %v1521
    %2053 = vmatprep.subr.bf16.mxu0 0
    %2054 = vmatpush2.bf16.msra.mxu0 %v1520
    %2055 = vmatprep.subr.bf16.mxu0 0
    %2056 = vmatpush2.bf16.msra.mxu0 %v1519
    %2057 = vmatprep.subr.bf16.mxu0 0
    %2058 = vmatpush2.bf16.msra.mxu0 %v1518
    %2059 = vmatprep.subr.bf16.mxu0 0
    %2060 = vmatpush2.bf16.msra.mxu0 %v1517
    %2061 = vmatprep.mubr.bf16.mxu0 %v539
    %2062 = vmatmul.mubr.bf16.gmra.mxu0 %v537
    %v2063 = vpop.f32.mrf.mxu0
    %v2064 = vadd.f32 %v2024, %v2063
    %v2065 = vpop.f32.mrf.mxu0
    %v2066 = vpop.f32.mrf.mxu0
    %v2067 = vpop.f32.mrf.mxu0
    %2068 = vdwg.mxu0
    %2069 = vmatprep.subr.bf16.mxu0 0
    %2070 = vmatpush1.bf16.msra.mxu0 %v1532
    %2071 = vmatprep.subr.bf16.mxu0 0
    %2072 = vmatpush1.bf16.msra.mxu0 %v1531
    %2073 = vmatprep.subr.bf16.mxu0 0
    %2074 = vmatpush1.bf16.msra.mxu0 %v1530
    %2075 = vmatprep.subr.bf16.mxu0 0
    %2076 = vmatpush1.bf16.msra.mxu0 %v1529
    %2077 = vmatprep.subr.bf16.mxu0 0
    %2078 = vmatpush1.bf16.msra.mxu0 %v1528
    %2079 = vmatprep.subr.bf16.mxu0 0
    %2080 = vmatpush1.bf16.msra.mxu0 %v1527
    %2081 = vmatprep.subr.bf16.mxu0 0
    %2082 = vmatpush1.bf16.msra.mxu0 %v1526
    %2083 = vmatprep.subr.bf16.mxu0 0
    %2084 = vmatpush1.bf16.msra.mxu0 %v1525
    %2085 = vmatprep.subr.bf16.mxu0 0
    %2086 = vmatpush2.bf16.msra.mxu0 %v1540
    %2087 = vmatprep.subr.bf16.mxu0 0
    %2088 = vmatpush2.bf16.msra.mxu0 %v1539
    %2089 = vmatprep.subr.bf16.mxu0 0
    %2090 = vmatpush2.bf16.msra.mxu0 %v1538
    %2091 = vmatprep.subr.bf16.mxu0 0
    %2092 = vmatpush2.bf16.msra.mxu0 %v1537
    %2093 = vmatprep.subr.bf16.mxu0 0
    %2094 = vmatpush2.bf16.msra.mxu0 %v1536
    %2095 = vmatprep.subr.bf16.mxu0 0
    %2096 = vmatpush2.bf16.msra.mxu0 %v1535
    %2097 = vmatprep.subr.bf16.mxu0 0
    %2098 = vmatpush2.bf16.msra.mxu0 %v1534
    %2099 = vmatprep.subr.bf16.mxu0 0
    %2100 = vmatpush2.bf16.msra.mxu0 %v1533
    %2101 = vmatprep.mubr.bf16.mxu0 %v536
    %2102 = vmatmul.mubr.bf16.gmra.mxu0 %v522
    %v2103 = vpop.f32.mrf.mxu0
    %v2104 = vadd.f32 %v2064, %v2103
    %v2105 = vpop.f32.mrf.mxu0
    %v2106 = vpop.f32.mrf.mxu0
    %v2107 = vpop.f32.mrf.mxu0
    %2108 = vdwg.mxu0
    %2109 = vmatprep.subr.bf16.mxu0 0
    %2110 = vmatpush1.bf16.msra.mxu0 %v1548
    %2111 = vmatprep.subr.bf16.mxu0 0
    %2112 = vmatpush1.bf16.msra.mxu0 %v1547
    %2113 = vmatprep.subr.bf16.mxu0 0
    %2114 = vmatpush1.bf16.msra.mxu0 %v1546
    %2115 = vmatprep.subr.bf16.mxu0 0
    %2116 = vmatpush1.bf16.msra.mxu0 %v1545
    %2117 = vmatprep.subr.bf16.mxu0 0
    %2118 = vmatpush1.bf16.msra.mxu0 %v1544
    %2119 = vmatprep.subr.bf16.mxu0 0
    %2120 = vmatpush1.bf16.msra.mxu0 %v1543
    %2121 = vmatprep.subr.bf16.mxu0 0
    %2122 = vmatpush1.bf16.msra.mxu0 %v1542
    %2123 = vmatprep.subr.bf16.mxu0 0
    %2124 = vmatpush1.bf16.msra.mxu0 %v1541
    %2125 = vmatprep.subr.bf16.mxu0 0
    %2126 = vmatpush2.bf16.msra.mxu0 %v1556
    %2127 = vmatprep.subr.bf16.mxu0 0
    %2128 = vmatpush2.bf16.msra.mxu0 %v1555
    %2129 = vmatprep.subr.bf16.mxu0 0
    %2130 = vmatpush2.bf16.msra.mxu0 %v1554
    %2131 = vmatprep.subr.bf16.mxu0 0
    %2132 = vmatpush2.bf16.msra.mxu0 %v1553
    %2133 = vmatprep.subr.bf16.mxu0 0
    %2134 = vmatpush2.bf16.msra.mxu0 %v1552
    %2135 = vmatprep.subr.bf16.mxu0 0
    %2136 = vmatpush2.bf16.msra.mxu0 %v1551
    %2137 = vmatprep.subr.bf16.mxu0 0
    %2138 = vmatpush2.bf16.msra.mxu0 %v1550
    %2139 = vmatprep.subr.bf16.mxu0 0
    %2140 = vmatpush2.bf16.msra.mxu0 %v1549
    %2141 = vmatprep.mubr.bf16.mxu0 %v540
    %2142 = vmatmul.mubr.bf16.gmra.mxu0 %v538
    %v2143 = vpop.f32.mrf.mxu0
    %v2144 = vadd.f32 %v2104, %v2143
    %v2145 = vpop.f32.mrf.mxu0
    %v2146 = vpop.f32.mrf.mxu0
    %v2147 = vpop.f32.mrf.mxu0
    %2148 = vdwg.mxu0
    %2149 = vmatprep.subr.bf16.mxu0 0
    %2150 = vmatpush1.bf16.msra.mxu0 %v1564
    %2151 = vmatprep.subr.bf16.mxu0 0
    %2152 = vmatpush1.bf16.msra.mxu0 %v1563
    %2153 = vmatprep.subr.bf16.mxu0 0
    %2154 = vmatpush1.bf16.msra.mxu0 %v1562
    %2155 = vmatprep.subr.bf16.mxu0 0
    %2156 = vmatpush1.bf16.msra.mxu0 %v1561
    %2157 = vmatprep.subr.bf16.mxu0 0
    %2158 = vmatpush1.bf16.msra.mxu0 %v1560
    %2159 = vmatprep.subr.bf16.mxu0 0
    %2160 = vmatpush1.bf16.msra.mxu0 %v1559
    %2161 = vmatprep.subr.bf16.mxu0 0
    %2162 = vmatpush1.bf16.msra.mxu0 %v1558
    %2163 = vmatprep.subr.bf16.mxu0 0
    %2164 = vmatpush1.bf16.msra.mxu0 %v1557
    %2165 = vmatprep.subr.bf16.mxu0 0
    %2166 = vmatpush2.bf16.msra.mxu0 %v1572
    %2167 = vmatprep.subr.bf16.mxu0 0
    %2168 = vmatpush2.bf16.msra.mxu0 %v1571
    %2169 = vmatprep.subr.bf16.mxu0 0
    %2170 = vmatpush2.bf16.msra.mxu0 %v1570
    %2171 = vmatprep.subr.bf16.mxu0 0
    %2172 = vmatpush2.bf16.msra.mxu0 %v1569
    %2173 = vmatprep.subr.bf16.mxu0 0
    %2174 = vmatpush2.bf16.msra.mxu0 %v1568
    %2175 = vmatprep.subr.bf16.mxu0 0
    %2176 = vmatpush2.bf16.msra.mxu0 %v1567
    %2177 = vmatprep.subr.bf16.mxu0 0
    %2178 = vmatpush2.bf16.msra.mxu0 %v1566
    %2179 = vmatprep.subr.bf16.mxu0 0
    %2180 = vmatpush2.bf16.msra.mxu0 %v1565
    %2181 = vmatprep.mubr.bf16.mxu0 %v578
    %2182 = vmatmul.mubr.bf16.gmra.mxu0 %v564
    %v2183 = vpop.f32.mrf.mxu0
    %v2184 = vadd.f32 %v2144, %v2183
    %v2185 = vpop.f32.mrf.mxu0
    %v2186 = vpop.f32.mrf.mxu0
    %v2187 = vpop.f32.mrf.mxu0
    %2188 = vdwg.mxu0
    %2189 = vmatprep.subr.bf16.mxu0 0
    %2190 = vmatpush1.bf16.msra.mxu0 %v1580
    %2191 = vmatprep.subr.bf16.mxu0 0
    %2192 = vmatpush1.bf16.msra.mxu0 %v1579
    %2193 = vmatprep.subr.bf16.mxu0 0
    %2194 = vmatpush1.bf16.msra.mxu0 %v1578
    %2195 = vmatprep.subr.bf16.mxu0 0
    %2196 = vmatpush1.bf16.msra.mxu0 %v1577
    %2197 = vmatprep.subr.bf16.mxu0 0
    %2198 = vmatpush1.bf16.msra.mxu0 %v1576
    %2199 = vmatprep.subr.bf16.mxu0 0
    %2200 = vmatpush1.bf16.msra.mxu0 %v1575
    %2201 = vmatprep.subr.bf16.mxu0 0
    %2202 = vmatpush1.bf16.msra.mxu0 %v1574
    %2203 = vmatprep.subr.bf16.mxu0 0
    %2204 = vmatpush1.bf16.msra.mxu0 %v1573
    %2205 = vmatprep.subr.bf16.mxu0 0
    %2206 = vmatpush2.bf16.msra.mxu0 %v1588
    %2207 = vmatprep.subr.bf16.mxu0 0
    %2208 = vmatpush2.bf16.msra.mxu0 %v1587
    %2209 = vmatprep.subr.bf16.mxu0 0
    %2210 = vmatpush2.bf16.msra.mxu0 %v1586
    %2211 = vmatprep.subr.bf16.mxu0 0
    %2212 = vmatpush2.bf16.msra.mxu0 %v1585
    %2213 = vmatprep.subr.bf16.mxu0 0
    %2214 = vmatpush2.bf16.msra.mxu0 %v1584
    %2215 = vmatprep.subr.bf16.mxu0 0
    %2216 = vmatpush2.bf16.msra.mxu0 %v1583
    %2217 = vmatprep.subr.bf16.mxu0 0
    %2218 = vmatpush2.bf16.msra.mxu0 %v1582
    %2219 = vmatprep.subr.bf16.mxu0 0
    %2220 = vmatpush2.bf16.msra.mxu0 %v1581
    %2221 = vmatprep.mubr.bf16.mxu0 %v588
    %2222 = vmatmul.mubr.bf16.gmra.mxu0 %v586
    %v2223 = vpop.f32.mrf.mxu0
    %v2224 = vadd.f32 %v2184, %v2223
    %v2225 = vpop.f32.mrf.mxu0
    %v2226 = vpop.f32.mrf.mxu0
    %v2227 = vpop.f32.mrf.mxu0
    %2228 = vdwg.mxu0
    %2229 = vmatprep.subr.bf16.mxu0 0
    %2230 = vmatpush1.bf16.msra.mxu0 %v1596
    %2231 = vmatprep.subr.bf16.mxu0 0
    %2232 = vmatpush1.bf16.msra.mxu0 %v1595
    %2233 = vmatprep.subr.bf16.mxu0 0
    %2234 = vmatpush1.bf16.msra.mxu0 %v1594
    %2235 = vmatprep.subr.bf16.mxu0 0
    %2236 = vmatpush1.bf16.msra.mxu0 %v1593
    %2237 = vmatprep.subr.bf16.mxu0 0
    %2238 = vmatpush1.bf16.msra.mxu0 %v1592
    %2239 = vmatprep.subr.bf16.mxu0 0
    %2240 = vmatpush1.bf16.msra.mxu0 %v1591
    %2241 = vmatprep.subr.bf16.mxu0 0
    %2242 = vmatpush1.bf16.msra.mxu0 %v1590
    %2243 = vmatprep.subr.bf16.mxu0 0
    %2244 = vmatpush1.bf16.msra.mxu0 %v1589
    %2245 = vmatprep.subr.bf16.mxu0 0
    %2246 = vmatpush2.bf16.msra.mxu0 %v1604
    %2247 = vmatprep.subr.bf16.mxu0 0
    %2248 = vmatpush2.bf16.msra.mxu0 %v1603
    %2249 = vmatprep.subr.bf16.mxu0 0
    %2250 = vmatpush2.bf16.msra.mxu0 %v1602
    %2251 = vmatprep.subr.bf16.mxu0 0
    %2252 = vmatpush2.bf16.msra.mxu0 %v1601
    %2253 = vmatprep.subr.bf16.mxu0 0
    %2254 = vmatpush2.bf16.msra.mxu0 %v1600
    %2255 = vmatprep.subr.bf16.mxu0 0
    %2256 = vmatpush2.bf16.msra.mxu0 %v1599
    %2257 = vmatprep.subr.bf16.mxu0 0
    %2258 = vmatpush2.bf16.msra.mxu0 %v1598
    %2259 = vmatprep.subr.bf16.mxu0 0
    %2260 = vmatpush2.bf16.msra.mxu0 %v1597
    %2261 = vmatprep.mubr.bf16.mxu0 %v585
    %2262 = vmatmul.mubr.bf16.gmra.mxu0 %v571
    %v2263 = vpop.f32.mrf.mxu0
    %v2264 = vadd.f32 %v2224, %v2263
    %v2265 = vpop.f32.mrf.mxu0
    %v2266 = vpop.f32.mrf.mxu0
    %v2267 = vpop.f32.mrf.mxu0
    %2268 = vdwg.mxu0
    %2269 = vmatprep.subr.bf16.mxu0 0
    %2270 = vmatpush1.bf16.msra.mxu0 %v1612
    %2271 = vmatprep.subr.bf16.mxu0 0
    %2272 = vmatpush1.bf16.msra.mxu0 %v1611
    %2273 = vmatprep.subr.bf16.mxu0 0
    %2274 = vmatpush1.bf16.msra.mxu0 %v1610
    %2275 = vmatprep.subr.bf16.mxu0 0
    %2276 = vmatpush1.bf16.msra.mxu0 %v1609
    %2277 = vmatprep.subr.bf16.mxu0 0
    %2278 = vmatpush1.bf16.msra.mxu0 %v1608
    %2279 = vmatprep.subr.bf16.mxu0 0
    %2280 = vmatpush1.bf16.msra.mxu0 %v1607
    %2281 = vmatprep.subr.bf16.mxu0 0
    %2282 = vmatpush1.bf16.msra.mxu0 %v1606
    %2283 = vmatprep.subr.bf16.mxu0 0
    %2284 = vmatpush1.bf16.msra.mxu0 %v1605
    %2285 = vmatprep.subr.bf16.mxu0 0
    %2286 = vmatpush2.bf16.msra.mxu0 %v1620
    %2287 = vmatprep.subr.bf16.mxu0 0
    %2288 = vmatpush2.bf16.msra.mxu0 %v1619
    %2289 = vmatprep.subr.bf16.mxu0 0
    %2290 = vmatpush2.bf16.msra.mxu0 %v1618
    %2291 = vmatprep.subr.bf16.mxu0 0
    %2292 = vmatpush2.bf16.msra.mxu0 %v1617
    %2293 = vmatprep.subr.bf16.mxu0 0
    %2294 = vmatpush2.bf16.msra.mxu0 %v1616
    %2295 = vmatprep.subr.bf16.mxu0 0
    %2296 = vmatpush2.bf16.msra.mxu0 %v1615
    %2297 = vmatprep.subr.bf16.mxu0 0
    %2298 = vmatpush2.bf16.msra.mxu0 %v1614
    %2299 = vmatprep.subr.bf16.mxu0 0
    %2300 = vmatpush2.bf16.msra.mxu0 %v1613
    %2301 = vmatprep.mubr.bf16.mxu0 %v589
    %2302 = vmatmul.mubr.bf16.gmra.mxu0 %v587
    %v2303 = vpop.f32.mrf.mxu0
    %v2304 = vadd.f32 %v2264, %v2303
    %v2305 = vpop.f32.mrf.mxu0
    %v2306 = vpop.f32.mrf.mxu0
    %v2307 = vpop.f32.mrf.mxu0
    %2308 = vdwg.mxu0
    %2309 = vmatprep.subr.bf16.mxu0 0
    %2310 = vmatpush1.bf16.msra.mxu0 %v1628
    %2311 = vmatprep.subr.bf16.mxu0 0
    %2312 = vmatpush1.bf16.msra.mxu0 %v1627
    %2313 = vmatprep.subr.bf16.mxu0 0
    %2314 = vmatpush1.bf16.msra.mxu0 %v1626
    %2315 = vmatprep.subr.bf16.mxu0 0
    %2316 = vmatpush1.bf16.msra.mxu0 %v1625
    %2317 = vmatprep.subr.bf16.mxu0 0
    %2318 = vmatpush1.bf16.msra.mxu0 %v1624
    %2319 = vmatprep.subr.bf16.mxu0 0
    %2320 = vmatpush1.bf16.msra.mxu0 %v1623
    %2321 = vmatprep.subr.bf16.mxu0 0
    %2322 = vmatpush1.bf16.msra.mxu0 %v1622
    %2323 = vmatprep.subr.bf16.mxu0 0
    %2324 = vmatpush1.bf16.msra.mxu0 %v1621
    %2325 = vmatprep.subr.bf16.mxu0 0
    %2326 = vmatpush2.bf16.msra.mxu0 0
    %2327 = vmatprep.subr.bf16.mxu0 0
    %2328 = vmatpush2.bf16.msra.mxu0 0
    %2329 = vmatprep.subr.bf16.mxu0 0
    %2330 = vmatpush2.bf16.msra.mxu0 0
    %2331 = vmatprep.subr.bf16.mxu0 0
    %2332 = vmatpush2.bf16.msra.mxu0 0
    %2333 = vmatprep.subr.bf16.mxu0 0
    %2334 = vmatpush2.bf16.msra.mxu0 0
    %2335 = vmatprep.subr.bf16.mxu0 0
    %2336 = vmatpush2.bf16.msra.mxu0 0
    %2337 = vmatprep.subr.bf16.mxu0 0
    %2338 = vmatpush2.bf16.msra.mxu0 0
    %2339 = vmatprep.subr.bf16.mxu0 0
    %2340 = vmatpush2.bf16.msra.mxu0 0
    %2341 = vmatprep.mubr.bf16.mxu0 0
    %2342 = vmatmul.mubr.bf16.gmra.mxu0 %v603
    %v2343 = vpop.f32.mrf.mxu0
    %v2344 = vadd.f32 %v2304, %v2343
    %v2345 = vpop.f32.mrf.mxu0
    %v2346 = vpop.f32.mrf.mxu0
    %v2347 = vpop.f32.mrf.mxu0
    %2348 = vdwg.mxu0
    %v2349 = vmax.f32 %v2344, 0.0
    %v2350 = vpack.c.bf16 %v2349, %v2349
    %v2351 = vld [vmem:[%s3] sm:$0xf]
    %v2352 = vld [vmem:[%s3 + $0x4] sm:$0xf]
    %v2353 = vld [vmem:[%s3 + $0x8] sm:$0xf]
    %v2354 = vld [vmem:[%s3 + $0xc] sm:$0xf]
    %v2355 = vld [vmem:[%s3 + $0x10] sm:$0xf]
    %v2356 = vld [vmem:[%s3 + $0x14] sm:$0xf]
    %v2357 = vld [vmem:[%s3 + $0x18] sm:$0xf]
    %v2358 = vld [vmem:[%s3 + $0x1c] sm:$0xf]
    %v2359 = vld [vmem:[%s3 + $0x20] sm:$0xf]
    %v2360 = vld [vmem:[%s3 + $0x24] sm:$0xf]
    %v2361 = vld [vmem:[%s3 + $0x28] sm:$0xf]
    %v2362 = vld [vmem:[%s3 + $0x2c] sm:$0xf]
    %v2363 = vld [vmem:[%s3 + $0x30] sm:$0xf]
    %v2364 = vld [vmem:[%s3 + $0x34] sm:$0xf]
    %v2365 = vld [vmem:[%s3 + $0x38] sm:$0xf]
    %v2366 = vld [vmem:[%s3 + $0x3c] sm:$0xf]
    %v2367 = vld [vmem:[%s4] sm:$0x1]
    %v2369 = vlaneseq
    %v2370 = vshrl.u32 %v2369, 7
    %v2371 = vsub.s32 0, %v2370
    %v2372 = vrot.slane %v2367, %v2371
    %v2390 = vunpack.c.l.b16 %v2351
    %v2391 = vunpack.c.l.b16 %v2352
    %v2392 = vunpack.c.l.b16 %v2353
    %v2393 = vunpack.c.l.b16 %v2354
    %v2394 = vunpack.c.l.b16 %v2355
    %v2395 = vunpack.c.l.b16 %v2356
    %v2396 = vunpack.c.l.b16 %v2357
    %v2397 = vunpack.c.l.b16 %v2358
    %v2398 = vunpack.c.l.b16 %v2359
    %v2399 = vunpack.c.l.b16 %v2360
    %v2400 = vunpack.c.l.b16 %v2361
    %v2401 = vunpack.c.l.b16 %v2362
    %v2402 = vunpack.c.l.b16 %v2363
    %v2403 = vunpack.c.l.b16 %v2364
    %v2404 = vunpack.c.l.b16 %v2365
    %v2405 = vunpack.c.l.b16 %v2366
    %v2406 = vpack.c.b16 %v2391, %v2390
    %v2407 = vpack.c.b16 %v2393, %v2392
    %v2408 = vpack.c.b16 %v2395, %v2394
    %v2409 = vpack.c.b16 %v2397, %v2396
    %v2410 = vpack.c.b16 %v2399, %v2398
    %v2411 = vpack.c.b16 %v2401, %v2400
    %v2412 = vpack.c.b16 %v2403, %v2402
    %v2413 = vpack.c.b16 %v2405, %v2404
    %2422 = vmatprep.subr.bf16.mxu0 0
    %2423 = vmatpush1.bf16.msra.mxu0 %v2413
    %2424 = vmatprep.subr.bf16.mxu0 0
    %2425 = vmatpush1.bf16.msra.mxu0 %v2412
    %2426 = vmatprep.subr.bf16.mxu0 0
    %2427 = vmatpush1.bf16.msra.mxu0 %v2411
    %2428 = vmatprep.subr.bf16.mxu0 0
    %2429 = vmatpush1.bf16.msra.mxu0 %v2410
    %2430 = vmatprep.subr.bf16.mxu0 0
    %2431 = vmatpush1.bf16.msra.mxu0 %v2409
    %2432 = vmatprep.subr.bf16.mxu0 0
    %2433 = vmatpush1.bf16.msra.mxu0 %v2408
    %2434 = vmatprep.subr.bf16.mxu0 0
    %2435 = vmatpush1.bf16.msra.mxu0 %v2407
    %2436 = vmatprep.subr.bf16.mxu0 0
    %2437 = vmatpush1.bf16.msra.mxu0 %v2406
    %2438 = vmatprep.subr.bf16.mxu0 0
    %2439 = vmatpush2.bf16.msra.mxu0 0
    %2440 = vmatprep.subr.bf16.mxu0 0
    %2441 = vmatpush2.bf16.msra.mxu0 0
    %2442 = vmatprep.subr.bf16.mxu0 0
    %2443 = vmatpush2.bf16.msra.mxu0 0
    %2444 = vmatprep.subr.bf16.mxu0 0
    %2445 = vmatpush2.bf16.msra.mxu0 0
    %2446 = vmatprep.subr.bf16.mxu0 0
    %2447 = vmatpush2.bf16.msra.mxu0 0
    %2448 = vmatprep.subr.bf16.mxu0 0
    %2449 = vmatpush2.bf16.msra.mxu0 0
    %2450 = vmatprep.subr.bf16.mxu0 0
    %2451 = vmatpush2.bf16.msra.mxu0 0
    %2452 = vmatprep.subr.bf16.mxu0 0
    %2453 = vmatpush2.bf16.msra.mxu0 0
    %2454 = vmatprep.mubr.bf16.mxu0 0
    %2455 = vmatmul.mubr.bf16.gmra.mxu0 %v2350
    %v2456 = vpop.f32.mrf.mxu0
    %v2457 = vadd.f32 %v2372, %v2456
    %v2458 = vpop.f32.mrf.mxu0
    %v2459 = vpop.f32.mrf.mxu0
    %v2460 = vpop.f32.mrf.mxu0
    %2461 = vdwg.mxu0
    %v2462 = vmax.f32 %v2457, 0.0
    %v2463 = vpack.c.bf16 %v2462, %v2462
    %v2464 = vld [vmem:[%s5] sm:$0xf]
    %v2465 = vld [vmem:[%s5 + $0x4] sm:$0xf]
    %v2466 = vld [vmem:[%s5 + $0x8] sm:$0xf]
    %v2467 = vld [vmem:[%s5 + $0xc] sm:$0xf]
    %v2468 = vld [vmem:[%s5 + $0x10] sm:$0xf]
    %v2469 = vld [vmem:[%s5 + $0x14] sm:$0xf]
    %v2470 = vld [vmem:[%s5 + $0x18] sm:$0xf]
    %v2471 = vld [vmem:[%s5 + $0x1c] sm:$0xf]
    %v2472 = vld [vmem:[%s5 + $0x20] sm:$0xf]
    %v2473 = vld [vmem:[%s5 + $0x24] sm:$0xf]
    %v2474 = vld [vmem:[%s5 + $0x28] sm:$0xf]
    %v2475 = vld [vmem:[%s5 + $0x2c] sm:$0xf]
    %v2476 = vld [vmem:[%s5 + $0x30] sm:$0xf]
    %v2477 = vld [vmem:[%s5 + $0x34] sm:$0xf]
    %v2478 = vld [vmem:[%s5 + $0x38] sm:$0xf]
    %v2479 = vld [vmem:[%s5 + $0x3c] sm:$0xf]
    %v2480 = vld [vmem:[%s6] sm:$0x1]
    %v2482 = vlaneseq
    %v2483 = vshrl.u32 %v2482, 7
    %v2484 = vsub.s32 0, %v2483
    %v2485 = vrot.slane %v2480, %v2484
    %v2503 = vunpack.c.l.b16 %v2464
    %v2504 = vunpack.c.l.b16 %v2465
    %v2505 = vunpack.c.l.b16 %v2466
    %v2506 = vunpack.c.l.b16 %v2467
    %v2507 = vunpack.c.l.b16 %v2468
    %v2508 = vunpack.c.l.b16 %v2469
    %v2509 = vunpack.c.l.b16 %v2470
    %v2510 = vunpack.c.l.b16 %v2471
    %v2511 = vunpack.c.l.b16 %v2472
    %v2512 = vunpack.c.l.b16 %v2473
    %v2513 = vunpack.c.l.b16 %v2474
    %v2514 = vunpack.c.l.b16 %v2475
    %v2515 = vunpack.c.l.b16 %v2476
    %v2516 = vunpack.c.l.b16 %v2477
    %v2517 = vunpack.c.l.b16 %v2478
    %v2518 = vunpack.c.l.b16 %v2479
    %v2519 = vpack.c.b16 %v2504, %v2503
    %v2520 = vpack.c.b16 %v2506, %v2505
    %v2521 = vpack.c.b16 %v2508, %v2507
    %v2522 = vpack.c.b16 %v2510, %v2509
    %v2523 = vpack.c.b16 %v2512, %v2511
    %v2524 = vpack.c.b16 %v2514, %v2513
    %v2525 = vpack.c.b16 %v2516, %v2515
    %v2526 = vpack.c.b16 %v2518, %v2517
    %2535 = vmatprep.subr.bf16.mxu0 0
    %2536 = vmatpush1.bf16.msra.mxu0 %v2526
    %2537 = vmatprep.subr.bf16.mxu0 0
    %2538 = vmatpush1.bf16.msra.mxu0 %v2525
    %2539 = vmatprep.subr.bf16.mxu0 0
    %2540 = vmatpush1.bf16.msra.mxu0 %v2524
    %2541 = vmatprep.subr.bf16.mxu0 0
    %2542 = vmatpush1.bf16.msra.mxu0 %v2523
    %2543 = vmatprep.subr.bf16.mxu0 0
    %2544 = vmatpush1.bf16.msra.mxu0 %v2522
    %2545 = vmatprep.subr.bf16.mxu0 0
    %2546 = vmatpush1.bf16.msra.mxu0 %v2521
    %2547 = vmatprep.subr.bf16.mxu0 0
    %2548 = vmatpush1.bf16.msra.mxu0 %v2520
    %2549 = vmatprep.subr.bf16.mxu0 0
    %2550 = vmatpush1.bf16.msra.mxu0 %v2519
    %2551 = vmatprep.subr.bf16.mxu0 0
    %2552 = vmatpush2.bf16.msra.mxu0 0
    %2553 = vmatprep.subr.bf16.mxu0 0
    %2554 = vmatpush2.bf16.msra.mxu0 0
    %2555 = vmatprep.subr.bf16.mxu0 0
    %2556 = vmatpush2.bf16.msra.mxu0 0
    %2557 = vmatprep.subr.bf16.mxu0 0
    %2558 = vmatpush2.bf16.msra.mxu0 0
    %2559 = vmatprep.subr.bf16.mxu0 0
    %2560 = vmatpush2.bf16.msra.mxu0 0
    %2561 = vmatprep.subr.bf16.mxu0 0
    %2562 = vmatpush2.bf16.msra.mxu0 0
    %2563 = vmatprep.subr.bf16.mxu0 0
    %2564 = vmatpush2.bf16.msra.mxu0 0
    %2565 = vmatprep.subr.bf16.mxu0 0
    %2566 = vmatpush2.bf16.msra.mxu0 0
    %2567 = vmatprep.mubr.bf16.mxu0 0
    %2568 = vmatmul.mubr.bf16.gmra.mxu0 %v2463
    %v2569 = vpop.f32.mrf.mxu0
    %v2570 = vadd.f32 %v2485, %v2569
    %v2571 = vpop.f32.mrf.mxu0
    %v2572 = vpop.f32.mrf.mxu0
    %v2573 = vpop.f32.mrf.mxu0
    %2574 = vdwg.mxu0
    %2575 = vst [vmem:[#allocation2] sm:$0x3] %v2570
    // Predicated region
    $region30: #{lenet5_forward.5} parent=1 // pred_check
      _
    $region31: #{lenet5_forward.5} parent=1 // pred_check_branch
      %2577 = sbr.rel (0) target = $region33
    $region32: #{lenet5_forward.5} parent=1 // pred_region
      %s2579 = ssub.s32 32, 32
      %2580 = vsyncadd [#allocation3], %s2579
      %s2582 = sshll.u32 [#allocation2], 4
      %s2583 = int_to_ptr.vmem [resolvable:$true] %s2582
      %2585 = dma.vmem_to_hbm [thread:$0]  %s2583, 32, %s7, [#allocation3]
    $region33: #{lenet5_forward.5} parent=1 // pred_fallthru
      _
    // Predicated region
    $region34: #{lenet5_forward.5} parent=1 // pred_check
      _
    $region35: #{lenet5_forward.5} parent=1 // pred_check_branch
      %2587 = sbr.rel (0) target = $region37
    $region36: #{lenet5_forward.5} parent=1 // pred_region
      %2588 = dma.done [#allocation3], 32
    $region37: #{lenet5_forward.5} parent=1 // pred_fallthru
      _
    %2589 = vsyncpa [#allocation3], 1

</llo_original>
